<compile_context>
chip_gen: v7x
topology: tpu7x:2x2x1
jax: 0.10.0
libtpu: 0.0.40
codegen_flags: <defaults>
</compile_context>

<pallas_src>
import functools

import jax
import jax.numpy as jnp
import numpy as np
from jax.experimental import pallas as pl
from jax.experimental.pallas import tpu as pltpu


# ----------------------------------------------------------------------------
# Pallas kernel: one (Bt, N, C) slab of batch elements per grid step.
# ----------------------------------------------------------------------------
def gpsa_kernel(x_ref, posg_ref, omg_ref, wqkv_ref, wp_ref, pb_ref, o_ref, *,
                num_heads, head_dim, batch_block, tokens):
    H, hd, Bt, N = num_heads, head_dim, batch_block, tokens
    C = H * hd

    # Fused QKV projection on the flattened (Bt*N, C) slab (bf16 MXU, f32 acc),
    # downcast the whole intermediate to bf16 once.
    xf = x_ref[...].reshape(Bt * N, C)                                   # bf16
    qkv = jnp.dot(xf, wqkv_ref[...],
                  preferred_element_type=jnp.float32).astype(jnp.bfloat16)  # (Bt*N, 3C)

    # Single head relayout of the whole slab per tensor: (Bt*N, C) -> (Bt*H, N, hd).
    def to_heads(m):
        return (m.reshape(Bt, N, H, hd)
                 .transpose(0, 2, 1, 3)
                 .reshape(Bt * H, N, hd))

    qh = to_heads(qkv[:, 0:C])          # scale folded into Wq outside the kernel
    kh = to_heads(qkv[:, C:2 * C])
    vh = to_heads(qkv[:, 2 * C:3 * C])

    # Content scores: head-batched q @ k^T over all Bt*H heads in one call.
    s = jnp.einsum("bnd,bmd->bnm", qh, kh,
                   preferred_element_type=jnp.float32)                   # (Bt*H, N, N)

    # Patch softmax in f32.  The gate (1 - sigmoid(g)) is folded into the
    # normalization factor, and the post-blend renormalization is dropped:
    # (1-g)*softmax + g*softmax sums to 1 up to rounding (matches PyTorch).
    s = s - jnp.max(s, axis=-1, keepdims=True)
    p = jnp.exp(s).reshape(Bt, H, N, N)
    omg = omg_ref[...].reshape(1, H, 1, 1)                               # 1 - sigmoid(gate)
    row_scale = omg * pl.reciprocal(jnp.sum(p, axis=-1, keepdims=True),
                                    approx=True)
    attn = p * row_scale + posg_ref[...]          # pos_g (H,N,N) broadcasts over Bt
    attn = attn.reshape(Bt * H, N, N).astype(jnp.bfloat16)

    # Head-batched attn @ v over all Bt*H heads in one call.
    oh = jnp.einsum("bnm,bmd->bnd", attn, vh,
                    preferred_element_type=jnp.float32)                  # (Bt*H, N, hd)

    # One inverse relayout + fused output projection over the whole slab
    # (no scratch-slab round trip).
    out = (oh.reshape(Bt, H, N, hd)
             .transpose(0, 2, 1, 3)
             .reshape(Bt * N, C)
             .astype(jnp.bfloat16))
    y = jnp.dot(out, wp_ref[...],
                preferred_element_type=jnp.float32) + pb_ref[...]
    o_ref[...] = y.reshape(Bt, N, C).astype(o_ref.dtype)                 # bf16 out


def _pick_batch_block(B):
    # Keep the parallel grid >= 2 steps where possible (v7x has 2 TensorCores),
    # while still batching a few elements per step for MXU efficiency.
    for bt in (4, 2, 1):
        if B % bt == 0 and B // bt >= 2:
            return bt
    return 1


def gpsa_forward(x, rel, params, *, num_heads, batch_block=None):
    B, N, C = x.shape
    head_dim = C // num_heads
    scale = head_dim ** (-0.5)
    bt = batch_block or _pick_batch_block(B)
    assert B % bt == 0

    # --- one-time parameter prep (outside the kernel) -------------------------
    # scale folded into Wq; Q/K/V weights fused; bf16 for the MXU.
    wqkvT = jnp.concatenate(
        [(params["wq"] * scale).T, params["wk"].T, params["wv"].T],
        axis=1).astype(jnp.bfloat16)                          # (C, 3C)
    wpT = params["wp"].T.astype(jnp.bfloat16)                 # (C, C)
    pb = params["pb"].reshape(1, C).astype(jnp.float32)

    # positional attention: parameter-only -> precompute the softmax once and
    # pre-scale by sigmoid(gate) so the kernel only does p*row_scale + pos_g.
    pos_score = (jnp.einsum("tnm,ht->hnm", rel, params["pos_w"])
                 + params["pos_b"][:, None, None])            # (H, N, N)
    pos_soft = jax.nn.softmax(pos_score, axis=-1)
    gate = jax.nn.sigmoid(params["gating"]).astype(jnp.float32)       # (H,)
    pos_g = (gate[:, None, None] * pos_soft).astype(jnp.float32)      # (H, N, N)
    # TODO(synk): for large models (H>=16, N>=400) store pos_g in bf16 and add
    # a head-tile grid axis so the (H,N,N) tensor fits v7x's 64 MiB VMEM.
    omg = (1.0 - gate).reshape(num_heads, 1)                          # (H, 1)

    x_bf16 = x.astype(jnp.bfloat16)

    kernel = functools.partial(gpsa_kernel, num_heads=num_heads,
                               head_dim=head_dim, batch_block=bt, tokens=N)

    # --- VMEM budget (includes the qkv / attention intermediates) ------------
    H = num_heads
    elem_bytes = (
        bt * N * 3 * C * (4 + 2)            # qkv f32 acc + bf16 copy
        + 3 * bt * N * C * 2                # q/k/v head relayouts (bf16)
        + bt * H * N * N * (4 + 4 + 2)      # scores f32, blended attn f32, attn bf16
        + bt * N * C * (4 + 2 + 4))         # attn@v f32, relayout bf16, proj acc f32
    resident_bytes = (
        H * N * N * 4                       # gate-scaled positional softmax (1 buf)
        + (3 * C * C + C * C) * 2           # fused QKV + proj weights (bf16)
        + C * 4 + H * 4)                    # proj bias + gate
    block_bytes = 2 * (bt * N * C * 2) * 2  # double-buffered x / out blocks (bf16)
    vmem_est = block_bytes + resident_bytes + elem_bytes

    try:
        dev_vmem = int(getattr(pltpu.get_tpu_info(), "vmem_capacity_bytes", 0)) \
            or (64 << 20)
    except Exception:
        dev_vmem = 64 << 20                 # conservative (v7x per-TC VMEM)
    vmem_limit = int(min(dev_vmem - (8 << 20), max(8 << 20, 2 * vmem_est)))

    def run(single_buffer_constants):
        def cspec(shape, idx):
            # Grid-invariant operands: single-buffer them (constant index map).
            if single_buffer_constants:
                return pl.BlockSpec(shape, idx, pipeline_mode=pl.Buffered(1))
            return pl.BlockSpec(shape, idx)

        return pl.pallas_call(
            kernel,
            out_shape=jax.ShapeDtypeStruct((B, N, C), jnp.bfloat16),
            grid_spec=pltpu.PrefetchScalarGridSpec(
                num_scalar_prefetch=0,
                grid=(B // bt,),
                in_specs=[
                    pl.BlockSpec((bt, N, C), lambda b: (b, 0, 0)),          # x (bf16)
                    cspec((num_heads, N, N), lambda b: (0, 0, 0)),          # gate*softmax(pos)
                    cspec((num_heads, 1), lambda b: (0, 0)),                # 1 - gate
                    cspec((C, 3 * C), lambda b: (0, 0)),                    # [scale*Wq|Wk|Wv]^T
                    cspec((C, C), lambda b: (0, 0)),                        # Wp^T
                    cspec((1, C), lambda b: (0, 0)),                        # proj bias
                ],
                out_specs=pl.BlockSpec((bt, N, C), lambda b: (b, 0, 0)),
            ),
            compiler_params=pltpu.CompilerParams(
                dimension_semantics=("parallel",),
                vmem_limit_bytes=vmem_limit),
        )(x_bf16, pos_g, omg, wqkvT, wpT, pb)

    try:
        return jax.block_until_ready(run(True))
    except Exception:
        # Fallback for JAX builds that reject pl.Buffered(1) on pallas_call
        # BlockSpecs: identical kernel, default (double-buffered) constants.
        return jax.block_until_ready(run(False))


# ----------------------------------------------------------------------------
# Parameter / rel_indices setup (plain JAX glue) mirroring GPSA.__init__,
# local_init, and get_rel_indices.
# ----------------------------------------------------------------------------
def make_rel_indices(H, W):
    ax_w = jnp.arange(W)
    ax_h = jnp.arange(H)
    indx = ax_w[None, :] - ax_w[:, None]                    # (W, W)
    indx = jnp.tile(indx, (H, H))                           # (N, N)
    indy = ax_h[None, :] - ax_h[:, None]                    # (H, H)
    indy = jnp.repeat(jnp.repeat(indy, W, axis=0), W, axis=1)
    indd = indx ** 2 + indy ** 2
    return jnp.stack([indx, indy, indd], axis=0).astype(jnp.float32)   # (3, N, N)


def trunc_normal(key, shape, std=0.02):
    return jnp.clip(jax.random.normal(key, shape) * std,
                    -2 * std, 2 * std).astype(jnp.float32)


def make_params(key, dim, num_heads, locality_strength=1.0):
    k1, k2, k3, k4 = jax.random.split(key, 4)
    params = {
        "wq": trunc_normal(k1, (dim, dim)),
        "wk": trunc_normal(k2, (dim, dim)),
        "wv": jnp.eye(dim, dtype=jnp.float32),      # local_init: v.weight = I
        "wp": trunc_normal(k3, (dim, dim)),
        "pb": jnp.zeros((dim,), jnp.float32),       # proj bias init 0
        "pos_b": jnp.zeros((num_heads,), jnp.float32),
        "gating": jnp.ones((num_heads,), jnp.float32),
    }
    # pos_proj weight: trunc-normal init, then local_init overrides.
    # np.array(...) makes a WRITABLE copy (np.asarray of a jax array is read-only).
    pos_w = np.array(jax.device_get(trunc_normal(k4, (num_heads, 3))),
                     dtype=np.float32)
    kernel_size = int(num_heads ** 0.5)
    center = (kernel_size - 1) / 2 if kernel_size % 2 == 0 else kernel_size // 2
    for h1 in range(kernel_size):
        for h2 in range(kernel_size):
            position = h1 + kernel_size * h2
            pos_w[position, 2] = -1.0
            pos_w[position, 1] = 2.0 * (h1 - center)
            pos_w[position, 0] = 2.0 * (h2 - center)
    pos_w = pos_w * locality_strength
    params["pos_w"] = jnp.asarray(pos_w, jnp.float32)
    return params


# ----------------------------------------------------------------------------
# Pure-JAX reference (mirrors the PyTorch forward). matmul_dtype=bf16 mirrors
# the kernel's bf16-MXU / f32-accumulation precision for a tight check.
# ----------------------------------------------------------------------------
def gpsa_reference(x, rel, params, *, num_heads, matmul_dtype=jnp.float32):
    B, N, C = x.shape
    hd = C // num_heads
    scale = hd ** (-0.5)
    md = matmul_dtype

    def mm(a, b):
        return jnp.matmul(a.astype(md), b.astype(md),
                          preferred_element_type=jnp.float32)

    wq_t = (params["wq"] * scale).T if md == jnp.bfloat16 else params["wq"].T
    q = mm(x, wq_t)
    k = mm(x, params["wk"].T)
    v = mm(x, params["wv"].T)
    q = q.reshape(B, N, num_heads, hd).transpose(0, 2, 1, 3)
    k = k.reshape(B, N, num_heads, hd).transpose(0, 2, 1, 3)
    v = v.reshape(B, N, num_heads, hd).transpose(0, 2, 1, 3)

    patch = jnp.einsum("bhnd,bhmd->bhnm", q.astype(md), k.astype(md),
                       preferred_element_type=jnp.float32)
    if md != jnp.bfloat16:
        patch = patch * scale
    patch = jax.nn.softmax(patch, axis=-1)

    rel_nm3 = rel.transpose(1, 2, 0)                          # (N, N, 3)
    pos = (jnp.einsum("nmt,ht->hnm", rel_nm3, params["pos_w"])
           + params["pos_b"][:, None, None])
    pos = jax.nn.softmax(pos, axis=-1)[None]                  # (1, H, N, N)

    g = jax.nn.sigmoid(params["gating"]).reshape(1, num_heads, 1, 1)
    attn = (1.0 - g) * patch + g * pos
    attn = attn / attn.sum(-1, keepdims=True)

    out = jnp.einsum("bhnm,bhmd->bhnd", attn.astype(md), v.astype(md),
                     preferred_element_type=jnp.float32)
    out = out.transpose(0, 2, 1, 3).reshape(B, N, C)
    return mm(out, params["wp"].T) + params["pb"]


if __name__ == "__main__":
    B = 2
    num_heads = 4
    dim = 32                  # C; head_dim = 8
    Hs = Ws = 4
    N = Hs * Ws               # 16 tokens

    key = jax.random.PRNGKey(0)
    kx, kp = jax.random.split(key)
    x = jax.random.normal(kx, (B, N, dim), dtype=jnp.float32)
    params = make_params(kp, dim, num_heads, locality_strength=1.0)
    rel = make_rel_indices(Hs, Ws)                            # (3, N, N)

    out = gpsa_forward(x, rel, params, num_heads=num_heads)
    out = jax.block_until_ready(out)
    out_np = np.asarray(out, dtype=np.float32)                # kernel emits bf16

    # check vs a reference that mirrors the kernel's bf16-matmul precision
    # (tolerance accounts for the bf16 output store).
    ref_bf16 = np.asarray(gpsa_reference(x, rel, params, num_heads=num_heads,
                                         matmul_dtype=jnp.bfloat16),
                          dtype=np.float32)
    np.testing.assert_allclose(out_np, ref_bf16, rtol=1e-2, atol=1e-2)

    # loose sanity check vs the pure-f32 PyTorch-equivalent math
    ref_f32 = np.asarray(gpsa_reference(x, rel, params, num_heads=num_heads,
                                        matmul_dtype=jnp.float32),
                         dtype=np.float32)
    np.testing.assert_allclose(out_np, ref_f32, rtol=1e-1, atol=5e-2)

    print("KERNEL_OK")
</pallas_src>

<mosaic_0001>
module attributes {stable_mosaic.version = 11 : i64} {
  func.func @gpsa_kernel(%arg0: i32, %arg1: memref<1x16x32xbf16, #tpu.memory_space<vmem>>, %arg2: memref<4x16x16xf32, #tpu.memory_space<vmem>>, %arg3: memref<4x1xf32, #tpu.memory_space<vmem>>, %arg4: memref<32x96xbf16, #tpu.memory_space<vmem>>, %arg5: memref<32x32xbf16, #tpu.memory_space<vmem>>, %arg6: memref<1x32xf32, #tpu.memory_space<vmem>>, %arg7: memref<1x16x32xbf16, #tpu.memory_space<vmem>>) attributes {dimension_semantics = [#tpu.dimension_semantics<parallel>], iteration_bounds = array<i64: 2>, scalar_prefetch = 0 : i64, scratch_operands = 0 : i64, tpu.core_type = #tpu.core_type<tc>, window_params = [{transform_indices = @transform_0, window_bounds = array<i64: 1, 16, 32>}, {pipeline_mode = #tpu.pipeline_mode<synchronous>, transform_indices = @transform_1, window_bounds = array<i64: 4, 16, 16>}, {pipeline_mode = #tpu.pipeline_mode<synchronous>, transform_indices = @transform_2, window_bounds = array<i64: 4, 1>}, {pipeline_mode = #tpu.pipeline_mode<synchronous>, transform_indices = @transform_3, window_bounds = array<i64: 32, 96>}, {pipeline_mode = #tpu.pipeline_mode<synchronous>, transform_indices = @transform_4, window_bounds = array<i64: 32, 32>}, {pipeline_mode = #tpu.pipeline_mode<synchronous>, transform_indices = @transform_5, window_bounds = array<i64: 1, 32>}, {transform_indices = @transform_6, window_bounds = array<i64: 1, 16, 32>}]} {
    %c0 = arith.constant 0 : index
    %c0_0 = arith.constant 0 : index
    %c0_1 = arith.constant 0 : index
    %0 = vector.load %arg1[%c0, %c0_0, %c0_1] : memref<1x16x32xbf16, #tpu.memory_space<vmem>>, vector<1x16x32xbf16>
    %1 = vector.shape_cast %0 : vector<1x16x32xbf16> to vector<16x32xbf16>
    %c0_2 = arith.constant 0 : index
    %c0_3 = arith.constant 0 : index
    %2 = vector.load %arg4[%c0_2, %c0_3] : memref<32x96xbf16, #tpu.memory_space<vmem>>, vector<32x96xbf16>
    %cst = arith.constant dense<0.000000e+00> : vector<16x96xf32>
    %3 = tpu.matmul %1, %2, %cst {dimension_numbers = #tpu.dot_dimension_numbers<[1], [0], [0], [1], [0, 0, 1, 1], [], []>} : vector<16x32xbf16>, vector<32x96xbf16>, vector<16x96xf32> -> vector<16x96xf32>
    %4 = arith.truncf %3 : vector<16x96xf32> to vector<16x96xbf16>
    %5 = vector.extract_strided_slice %4 {offsets = [0, 0], sizes = [16, 32], strides = [1, 1]} : vector<16x96xbf16> to vector<16x32xbf16>
    %6 = vector.shape_cast %5 : vector<16x32xbf16> to vector<1x16x4x8xbf16>
    %7 = tpu.transpose %6, [0, 2, 1, 3] : vector<1x16x4x8xbf16> -> vector<1x4x16x8xbf16>
    %8 = vector.shape_cast %7 : vector<1x4x16x8xbf16> to vector<4x16x8xbf16>
    %9 = vector.extract_strided_slice %4 {offsets = [0, 32], sizes = [16, 32], strides = [1, 1]} : vector<16x96xbf16> to vector<16x32xbf16>
    %10 = vector.shape_cast %9 : vector<16x32xbf16> to vector<1x16x4x8xbf16>
    %11 = tpu.transpose %10, [0, 2, 1, 3] : vector<1x16x4x8xbf16> -> vector<1x4x16x8xbf16>
    %12 = vector.shape_cast %11 : vector<1x4x16x8xbf16> to vector<4x16x8xbf16>
    %13 = vector.extract_strided_slice %4 {offsets = [0, 64], sizes = [16, 32], strides = [1, 1]} : vector<16x96xbf16> to vector<16x32xbf16>
    %14 = vector.shape_cast %13 : vector<16x32xbf16> to vector<1x16x4x8xbf16>
    %15 = tpu.transpose %14, [0, 2, 1, 3] : vector<1x16x4x8xbf16> -> vector<1x4x16x8xbf16>
    %16 = vector.shape_cast %15 : vector<1x4x16x8xbf16> to vector<4x16x8xbf16>
    "tpu.trace_start"() <{level = 10 : i32, message = "bnd,bmd->bnm"}> : () -> ()
    %cst_4 = arith.constant dense<0.000000e+00> : vector<4x16x16xf32>
    %17 = tpu.matmul %8, %12, %cst_4 {dimension_numbers = #tpu.dot_dimension_numbers<[2], [2], [1], [1], [0, 0, 0, 1, 1, 1], [0], [0]>} : vector<4x16x8xbf16>, vector<4x16x8xbf16>, vector<4x16x16xf32> -> vector<4x16x16xf32>
    "tpu.trace_stop"() : () -> ()
    %cst_5 = arith.constant dense<0xFF800000> : vector<4x16xf32>
    %18 = vector.multi_reduction <maximumf>, %17, %cst_5 [2] : vector<4x16x16xf32> to vector<4x16xf32>
    %19 = vector.shape_cast %18 : vector<4x16xf32> to vector<4x16x1xf32>
    %20 = vector.broadcast %19 : vector<4x16x1xf32> to vector<4x16x16xf32>
    %21 = arith.subf %17, %20 : vector<4x16x16xf32>
    %22 = math.exp %21 : vector<4x16x16xf32>
    %23 = vector.shape_cast %22 : vector<4x16x16xf32> to vector<1x4x16x16xf32>
    %c0_6 = arith.constant 0 : index
    %c0_7 = arith.constant 0 : index
    %24 = vector.load %arg3[%c0_6, %c0_7] : memref<4x1xf32, #tpu.memory_space<vmem>>, vector<4x1xf32>
    %25 = vector.shape_cast %24 : vector<4x1xf32> to vector<1x4x1x1xf32>
    %cst_8 = arith.constant dense<0.000000e+00> : vector<1x4x16xf32>
    %26 = vector.multi_reduction <add>, %23, %cst_8 [3] : vector<1x4x16x16xf32> to vector<1x4x16xf32>
    %27 = vector.shape_cast %26 : vector<1x4x16xf32> to vector<1x4x16x1xf32>
    %28 = tpu.reciprocal %27 {approx = true} : vector<1x4x16x1xf32> -> vector<1x4x16x1xf32>
    %29 = vector.broadcast %25 : vector<1x4x1x1xf32> to vector<1x4x16x1xf32>
    %30 = arith.mulf %29, %28 : vector<1x4x16x1xf32>
    %31 = vector.broadcast %30 : vector<1x4x16x1xf32> to vector<1x4x16x16xf32>
    %32 = arith.mulf %23, %31 : vector<1x4x16x16xf32>
    %c0_9 = arith.constant 0 : index
    %c0_10 = arith.constant 0 : index
    %c0_11 = arith.constant 0 : index
    %33 = vector.load %arg2[%c0_9, %c0_10, %c0_11] : memref<4x16x16xf32, #tpu.memory_space<vmem>>, vector<4x16x16xf32>
    %34 = vector.shape_cast %33 : vector<4x16x16xf32> to vector<1x4x16x16xf32>
    %35 = arith.addf %32, %34 : vector<1x4x16x16xf32>
    %36 = vector.shape_cast %35 : vector<1x4x16x16xf32> to vector<4x16x16xf32>
    %37 = arith.truncf %36 : vector<4x16x16xf32> to vector<4x16x16xbf16>
    "tpu.trace_start"() <{level = 10 : i32, message = "bnm,bmd->bnd"}> : () -> ()
    %cst_12 = arith.constant dense<0.000000e+00> : vector<4x16x8xf32>
    %38 = tpu.matmul %37, %16, %cst_12 {dimension_numbers = #tpu.dot_dimension_numbers<[2], [1], [1], [2], [0, 0, 0, 1, 1, 2], [0], [0]>} : vector<4x16x16xbf16>, vector<4x16x8xbf16>, vector<4x16x8xf32> -> vector<4x16x8xf32>
    "tpu.trace_stop"() : () -> ()
    %39 = vector.shape_cast %38 : vector<4x16x8xf32> to vector<1x4x16x8xf32>
    %40 = tpu.transpose %39, [0, 2, 1, 3] : vector<1x4x16x8xf32> -> vector<1x16x4x8xf32>
    %41 = vector.shape_cast %40 : vector<1x16x4x8xf32> to vector<16x32xf32>
    %42 = arith.truncf %41 : vector<16x32xf32> to vector<16x32xbf16>
    %c0_13 = arith.constant 0 : index
    %c0_14 = arith.constant 0 : index
    %43 = vector.load %arg5[%c0_13, %c0_14] : memref<32x32xbf16, #tpu.memory_space<vmem>>, vector<32x32xbf16>
    %cst_15 = arith.constant dense<0.000000e+00> : vector<16x32xf32>
    %44 = tpu.matmul %42, %43, %cst_15 {dimension_numbers = #tpu.dot_dimension_numbers<[1], [0], [0], [1], [0, 0, 1, 1], [], []>} : vector<16x32xbf16>, vector<32x32xbf16>, vector<16x32xf32> -> vector<16x32xf32>
    %c0_16 = arith.constant 0 : index
    %c0_17 = arith.constant 0 : index
    %45 = vector.load %arg6[%c0_16, %c0_17] : memref<1x32xf32, #tpu.memory_space<vmem>>, vector<1x32xf32>
    %46 = vector.broadcast %45 : vector<1x32xf32> to vector<16x32xf32>
    %47 = arith.addf %44, %46 : vector<16x32xf32>
    %48 = vector.shape_cast %47 : vector<16x32xf32> to vector<1x16x32xf32>
    %49 = arith.truncf %48 : vector<1x16x32xf32> to vector<1x16x32xbf16>
    %c0_18 = arith.constant 0 : index
    %c0_19 = arith.constant 0 : index
    %c0_20 = arith.constant 0 : index
    %50 = vector.load %arg7[%c0_18, %c0_19, %c0_20] : memref<1x16x32xbf16, #tpu.memory_space<vmem>>, vector<1x16x32xbf16>
    tpu.vector_store %arg7[%c0_18, %c0_19, %c0_20], %49 {strides = array<i32>} : memref<1x16x32xbf16, #tpu.memory_space<vmem>>, vector<1x16x32xbf16>,
    return
  }
  func.func @transform_0(%arg0: i32) -> (i32, i32, i32) {
    %c0_i32 = arith.constant 0 : i32
    %c0_i32_0 = arith.constant 0 : i32
    %c0_i32_1 = arith.constant 0 : i32
    return %arg0, %c0_i32, %c0_i32_0 : i32, i32, i32
  }
  func.func @transform_1(%arg0: i32) -> (i32, i32, i32) {
    %c0_i32 = arith.constant 0 : i32
    %c0_i32_0 = arith.constant 0 : i32
    %c0_i32_1 = arith.constant 0 : i32
    %c0_i32_2 = arith.constant 0 : i32
    return %c0_i32, %c0_i32_0, %c0_i32_1 : i32, i32, i32
  }
  func.func @transform_2(%arg0: i32) -> (i32, i32) {
    %c0_i32 = arith.constant 0 : i32
    %c0_i32_0 = arith.constant 0 : i32
    %c0_i32_1 = arith.constant 0 : i32
    return %c0_i32, %c0_i32_0 : i32, i32
  }
  func.func @transform_3(%arg0: i32) -> (i32, i32) {
    %c0_i32 = arith.constant 0 : i32
    %c0_i32_0 = arith.constant 0 : i32
    %c0_i32_1 = arith.constant 0 : i32
    return %c0_i32, %c0_i32_0 : i32, i32
  }
  func.func @transform_4(%arg0: i32) -> (i32, i32) {
    %c0_i32 = arith.constant 0 : i32
    %c0_i32_0 = arith.constant 0 : i32
    %c0_i32_1 = arith.constant 0 : i32
    return %c0_i32, %c0_i32_0 : i32, i32
  }
  func.func @transform_5(%arg0: i32) -> (i32, i32) {
    %c0_i32 = arith.constant 0 : i32
    %c0_i32_0 = arith.constant 0 : i32
    %c0_i32_1 = arith.constant 0 : i32
    return %c0_i32, %c0_i32_0 : i32, i32
  }
  func.func @transform_6(%arg0: i32) -> (i32, i32, i32) {
    %c0_i32 = arith.constant 0 : i32
    %c0_i32_0 = arith.constant 0 : i32
    %c0_i32_1 = arith.constant 0 : i32
    return %arg0, %c0_i32, %c0_i32_0 : i32, i32, i32
  }
}

module attributes {stable_mosaic.version = 11 : i64} {
  func.func @gpsa_kernel(%arg0: i32, %arg1: memref<1x16x32xbf16, #tpu.memory_space<vmem>>, %arg2: memref<4x16x16xf32, #tpu.memory_space<vmem>>, %arg3: memref<4x1xf32, #tpu.memory_space<vmem>>, %arg4: memref<32x96xbf16, #tpu.memory_space<vmem>>, %arg5: memref<32x32xbf16, #tpu.memory_space<vmem>>, %arg6: memref<1x32xf32, #tpu.memory_space<vmem>>, %arg7: memref<1x16x32xbf16, #tpu.memory_space<vmem>>) attributes {dimension_semantics = [#tpu.dimension_semantics<parallel>], iteration_bounds = array<i64: 2>, scalar_prefetch = 0 : i64, scratch_operands = 0 : i64, tpu.core_type = #tpu.core_type<tc>, window_params = [{transform_indices = @transform_0, window_bounds = array<i64: 1, 16, 32>}, {pipeline_mode = #tpu.pipeline_mode<synchronous>, transform_indices = @transform_1, window_bounds = array<i64: 4, 16, 16>}, {pipeline_mode = #tpu.pipeline_mode<synchronous>, transform_indices = @transform_2, window_bounds = array<i64: 4, 1>}, {pipeline_mode = #tpu.pipeline_mode<synchronous>, transform_indices = @transform_3, window_bounds = array<i64: 32, 96>}, {pipeline_mode = #tpu.pipeline_mode<synchronous>, transform_indices = @transform_4, window_bounds = array<i64: 32, 32>}, {pipeline_mode = #tpu.pipeline_mode<synchronous>, transform_indices = @transform_5, window_bounds = array<i64: 1, 32>}, {transform_indices = @transform_6, window_bounds = array<i64: 1, 16, 32>}]} {
    %c0 = arith.constant 0 : index
    %c0_0 = arith.constant 0 : index
    %c0_1 = arith.constant 0 : index
    %0 = vector.load %arg1[%c0, %c0_0, %c0_1] : memref<1x16x32xbf16, #tpu.memory_space<vmem>>, vector<1x16x32xbf16>
    %1 = vector.shape_cast %0 : vector<1x16x32xbf16> to vector<16x32xbf16>
    %c0_2 = arith.constant 0 : index
    %c0_3 = arith.constant 0 : index
    %2 = vector.load %arg4[%c0_2, %c0_3] : memref<32x96xbf16, #tpu.memory_space<vmem>>, vector<32x96xbf16>
    %cst = arith.constant dense<0.000000e+00> : vector<16x96xf32>
    %3 = tpu.matmul %1, %2, %cst {dimension_numbers = #tpu.dot_dimension_numbers<[1], [0], [0], [1], [0, 0, 1, 1], [], []>} : vector<16x32xbf16>, vector<32x96xbf16>, vector<16x96xf32> -> vector<16x96xf32>
    %4 = arith.truncf %3 : vector<16x96xf32> to vector<16x96xbf16>
    %5 = vector.extract_strided_slice %4 {offsets = [0, 0], sizes = [16, 32], strides = [1, 1]} : vector<16x96xbf16> to vector<16x32xbf16>
    %6 = vector.shape_cast %5 : vector<16x32xbf16> to vector<1x16x4x8xbf16>
    %7 = tpu.transpose %6, [0, 2, 1, 3] : vector<1x16x4x8xbf16> -> vector<1x4x16x8xbf16>
    %8 = vector.shape_cast %7 : vector<1x4x16x8xbf16> to vector<4x16x8xbf16>
    %9 = vector.extract_strided_slice %4 {offsets = [0, 32], sizes = [16, 32], strides = [1, 1]} : vector<16x96xbf16> to vector<16x32xbf16>
    %10 = vector.shape_cast %9 : vector<16x32xbf16> to vector<1x16x4x8xbf16>
    %11 = tpu.transpose %10, [0, 2, 1, 3] : vector<1x16x4x8xbf16> -> vector<1x4x16x8xbf16>
    %12 = vector.shape_cast %11 : vector<1x4x16x8xbf16> to vector<4x16x8xbf16>
    %13 = vector.extract_strided_slice %4 {offsets = [0, 64], sizes = [16, 32], strides = [1, 1]} : vector<16x96xbf16> to vector<16x32xbf16>
    %14 = vector.shape_cast %13 : vector<16x32xbf16> to vector<1x16x4x8xbf16>
    %15 = tpu.transpose %14, [0, 2, 1, 3] : vector<1x16x4x8xbf16> -> vector<1x4x16x8xbf16>
    %16 = vector.shape_cast %15 : vector<1x4x16x8xbf16> to vector<4x16x8xbf16>
    "tpu.trace_start"() <{level = 10 : i32, message = "bnd,bmd->bnm"}> : () -> ()
    %cst_4 = arith.constant dense<0.000000e+00> : vector<4x16x16xf32>
    %17 = tpu.matmul %8, %12, %cst_4 {dimension_numbers = #tpu.dot_dimension_numbers<[2], [2], [1], [1], [0, 0, 0, 1, 1, 1], [0], [0]>} : vector<4x16x8xbf16>, vector<4x16x8xbf16>, vector<4x16x16xf32> -> vector<4x16x16xf32>
    "tpu.trace_stop"() : () -> ()
    %cst_5 = arith.constant dense<0xFF800000> : vector<4x16xf32>
    %18 = vector.multi_reduction <maximumf>, %17, %cst_5 [2] : vector<4x16x16xf32> to vector<4x16xf32>
    %19 = vector.shape_cast %18 : vector<4x16xf32> to vector<4x16x1xf32>
    %20 = vector.broadcast %19 : vector<4x16x1xf32> to vector<4x16x16xf32>
    %21 = arith.subf %17, %20 : vector<4x16x16xf32>
    %22 = math.exp %21 : vector<4x16x16xf32>
    %23 = vector.shape_cast %22 : vector<4x16x16xf32> to vector<1x4x16x16xf32>
    %c0_6 = arith.constant 0 : index
    %c0_7 = arith.constant 0 : index
    %24 = vector.load %arg3[%c0_6, %c0_7] : memref<4x1xf32, #tpu.memory_space<vmem>>, vector<4x1xf32>
    %25 = vector.shape_cast %24 : vector<4x1xf32> to vector<1x4x1x1xf32>
    %cst_8 = arith.constant dense<0.000000e+00> : vector<1x4x16xf32>
    %26 = vector.multi_reduction <add>, %23, %cst_8 [3] : vector<1x4x16x16xf32> to vector<1x4x16xf32>
    %27 = vector.shape_cast %26 : vector<1x4x16xf32> to vector<1x4x16x1xf32>
    %28 = tpu.reciprocal %27 {approx = true} : vector<1x4x16x1xf32> -> vector<1x4x16x1xf32>
    %29 = vector.broadcast %25 : vector<1x4x1x1xf32> to vector<1x4x16x1xf32>
    %30 = arith.mulf %29, %28 : vector<1x4x16x1xf32>
    %31 = vector.broadcast %30 : vector<1x4x16x1xf32> to vector<1x4x16x16xf32>
    %32 = arith.mulf %23, %31 : vector<1x4x16x16xf32>
    %c0_9 = arith.constant 0 : index
    %c0_10 = arith.constant 0 : index
    %c0_11 = arith.constant 0 : index
    %33 = vector.load %arg2[%c0_9, %c0_10, %c0_11] : memref<4x16x16xf32, #tpu.memory_space<vmem>>, vector<4x16x16xf32>
    %34 = vector.shape_cast %33 : vector<4x16x16xf32> to vector<1x4x16x16xf32>
    %35 = arith.addf %32, %34 : vector<1x4x16x16xf32>
    %36 = vector.shape_cast %35 : vector<1x4x16x16xf32> to vector<4x16x16xf32>
    %37 = arith.truncf %36 : vector<4x16x16xf32> to vector<4x16x16xbf16>
    "tpu.trace_start"() <{level = 10 : i32, message = "bnm,bmd->bnd"}> : () -> ()
    %cst_12 = arith.constant dense<0.000000e+00> : vector<4x16x8xf32>
    %38 = tpu.matmul %37, %16, %cst_12 {dimension_numbers = #tpu.dot_dimension_numbers<[2], [1], [1], [2], [0, 0, 0, 1, 1, 2], [0], [0]>} : vector<4x16x16xbf16>, vector<4x16x8xbf16>, vector<4x16x8xf32> -> vector<4x16x8xf32>
    "tpu.trace_stop"() : () -> ()
    %39 = vector.shape_cast %38 : vector<4x16x8xf32> to vector<1x4x16x8xf32>
    %40 = tpu.transpose %39, [0, 2, 1, 3] : vector<1x4x16x8xf32> -> vector<1x16x4x8xf32>
    %41 = vector.shape_cast %40 : vector<1x16x4x8xf32> to vector<16x32xf32>
    %42 = arith.truncf %41 : vector<16x32xf32> to vector<16x32xbf16>
    %c0_13 = arith.constant 0 : index
    %c0_14 = arith.constant 0 : index
    %43 = vector.load %arg5[%c0_13, %c0_14] : memref<32x32xbf16, #tpu.memory_space<vmem>>, vector<32x32xbf16>
    %cst_15 = arith.constant dense<0.000000e+00> : vector<16x32xf32>
    %44 = tpu.matmul %42, %43, %cst_15 {dimension_numbers = #tpu.dot_dimension_numbers<[1], [0], [0], [1], [0, 0, 1, 1], [], []>} : vector<16x32xbf16>, vector<32x32xbf16>, vector<16x32xf32> -> vector<16x32xf32>
    %c0_16 = arith.constant 0 : index
    %c0_17 = arith.constant 0 : index
    %45 = vector.load %arg6[%c0_16, %c0_17] : memref<1x32xf32, #tpu.memory_space<vmem>>, vector<1x32xf32>
    %46 = vector.broadcast %45 : vector<1x32xf32> to vector<16x32xf32>
    %47 = arith.addf %44, %46 : vector<16x32xf32>
    %48 = vector.shape_cast %47 : vector<16x32xf32> to vector<1x16x32xf32>
    %49 = arith.truncf %48 : vector<1x16x32xf32> to vector<1x16x32xbf16>
    %c0_18 = arith.constant 0 : index
    %c0_19 = arith.constant 0 : index
    %c0_20 = arith.constant 0 : index
    %50 = vector.load %arg7[%c0_18, %c0_19, %c0_20] : memref<1x16x32xbf16, #tpu.memory_space<vmem>>, vector<1x16x32xbf16>
    tpu.vector_store %arg7[%c0_18, %c0_19, %c0_20], %49 {strides = array<i32>} : memref<1x16x32xbf16, #tpu.memory_space<vmem>>, vector<1x16x32xbf16>,
    return
  }
  func.func @transform_0(%arg0: i32) -> (i32, i32, i32) {
    %c0_i32 = arith.constant 0 : i32
    %c0_i32_0 = arith.constant 0 : i32
    %c0_i32_1 = arith.constant 0 : i32
    return %arg0, %c0_i32, %c0_i32_0 : i32, i32, i32
  }
  func.func @transform_1(%arg0: i32) -> (i32, i32, i32) {
    %c0_i32 = arith.constant 0 : i32
    %c0_i32_0 = arith.constant 0 : i32
    %c0_i32_1 = arith.constant 0 : i32
    %c0_i32_2 = arith.constant 0 : i32
    return %c0_i32, %c0_i32_0, %c0_i32_1 : i32, i32, i32
  }
  func.func @transform_2(%arg0: i32) -> (i32, i32) {
    %c0_i32 = arith.constant 0 : i32
    %c0_i32_0 = arith.constant 0 : i32
    %c0_i32_1 = arith.constant 0 : i32
    return %c0_i32, %c0_i32_0 : i32, i32
  }
  func.func @transform_3(%arg0: i32) -> (i32, i32) {
    %c0_i32 = arith.constant 0 : i32
    %c0_i32_0 = arith.constant 0 : i32
    %c0_i32_1 = arith.constant 0 : i32
    return %c0_i32, %c0_i32_0 : i32, i32
  }
  func.func @transform_4(%arg0: i32) -> (i32, i32) {
    %c0_i32 = arith.constant 0 : i32
    %c0_i32_0 = arith.constant 0 : i32
    %c0_i32_1 = arith.constant 0 : i32
    return %c0_i32, %c0_i32_0 : i32, i32
  }
  func.func @transform_5(%arg0: i32) -> (i32, i32) {
    %c0_i32 = arith.constant 0 : i32
    %c0_i32_0 = arith.constant 0 : i32
    %c0_i32_1 = arith.constant 0 : i32
    return %c0_i32, %c0_i32_0 : i32, i32
  }
  func.func @transform_6(%arg0: i32) -> (i32, i32, i32) {
    %c0_i32 = arith.constant 0 : i32
    %c0_i32_0 = arith.constant 0 : i32
    %c0_i32_1 = arith.constant 0 : i32
    return %arg0, %c0_i32, %c0_i32_0 : i32, i32, i32
  }
}

</mosaic_0001>

<llo_original>
// kernel: tpu_custom_call.1
$region0: #{tpu_custom_call.1}
  #allocation0 [shape = 'u32[]', space=smem, size = 0x4, offset = 0x4, fixed_abs, tag = 'smem constant byte address 0x4 - core index']
  #allocation1 [shape = 'u32[144,128]{1,0:T(1,128)}', space=vmem, size = 0x12000, scoped, tag = 'internal scratch']
  %s0 = inlined_call_operand.hbm [shape: bf16[2,16,32], index: 0, kind: input, shape index: {}]
  %s1 = inlined_call_operand.hbm [shape: f32[4,16,16], index: 1, kind: input, shape index: {}]
  %s2 = inlined_call_operand.vmem [shape: f32[4,1], index: 2, kind: input, shape index: {}]
  %s3 = inlined_call_operand.vmem [shape: bf16[32,96], index: 3, kind: input, shape index: {}]
  %s4 = inlined_call_operand.hbm [shape: bf16[32,32], index: 4, kind: input, shape index: {}]
  %s5 = inlined_call_operand.vmem [shape: f32[1,32], index: 5, kind: input, shape index: {}]
  %s6 = inlined_call_operand.hbm [shape: bf16[2,16,32], index: 6, kind: output, shape index: {}]
  %s7 = sld [smem:[#allocation0]]
  $region69: #{tpu_custom_call.1} parent=0
    _
  %s9 = ssub.s32 1, %s7
  %s10 = scalar_select 0, %s9, %s7
  $region1: #{tpu_custom_call.1} parent=0
    #allocation2 [shape = 'u8[8192]{0}', space=vmem, size = 0x2000, scoped, tag = 'input window, operand 0']
    #allocation3 [shape = 's32[2]{0}', space=sflag, size = 0x8, scoped, tag = 'scoped memory for tpu_custom_call.1']
    #allocation4 [shape = 's32[2]{0}', space=sflag, size = 0x8, scoped, tag = 'scoped memory for tpu_custom_call.1']
    #allocation5 [shape = 'u8[32768]{0}', space=vmem, size = 0x8000, scoped, tag = 'input window, operand 1, single buffered']
    #allocation6 [shape = 's32[1]{0}', space=sflag, size = 0x4, scoped, tag = 'scoped memory for tpu_custom_call.1']
    #allocation7 [shape = 'u8[8192]{0}', space=vmem, size = 0x2000, scoped, tag = 'input window, operand 4, single buffered']
    #allocation8 [shape = 'u8[8192]{0}', space=vmem, size = 0x2000, scoped, tag = 'output window, operand 0']
    %11 = vsyncpa [#allocation3], 0
    %s12 = scalar_lea.sflag [#allocation3], 1
    %13 = vsyncpa %s12, 0
    %14 = vsyncpa [#allocation6], 0
    %15 = vsyncpa [#allocation4], 0
    %s16 = scalar_lea.sflag [#allocation4], 1
    %17 = vsyncpa %s16, 0
    loop: start=0, step=1, limit=4
    $region2: #{tpu_custom_call.1} parent=1 // loop_pre_header
      _
    $region3: #{tpu_custom_call.1} parent=1 // loop_header
      %s19 = sphi 0, %s23
      %p20 = scmp.ge.s32.totalorder %s19, 4
      %s29 = sphi 0, %s31
      %s32 = sphi 0, %s29
      %s33 = sphi 0, %s32
      %s49 = sphi 0, %s33
      %s53 = sphi 0, %s53
      %s55 = sphi 0, %s53
      %s56 = sphi 0, %s55
      %s70 = sphi 0, %s56
      %s74 = sphi 0, %s74
      %s76 = sphi 0, %s74
      %s77 = sphi 0, %s76
      %s91 = sphi 0, %s77
      %s95 = sphi 0, %s95
      %s97 = sphi 0, %s95
      %s98 = sphi 0, %s97
      %s112 = sphi 0, %s98
      %s116 = sphi 0, %s116
      %s118 = sphi 0, %s116
      %s119 = sphi 0, %s118
      %s133 = sphi 0, %s119
      %s137 = sphi 0, %s137
      %s139 = sphi 0, %s137
      %s140 = sphi 0, %s139
      %s154 = sphi 0, %s140
      %s160 = sphi 0, %s162
      %s163 = sphi 0, %s160
      %s164 = sphi 0, %s163
      %s180 = sphi 0, %s164
    $region4: #{tpu_custom_call.1} parent=1 // loop_header_branch
      %22 = sbr.rel (%p20) target = $region8
    $region5: #{tpu_custom_call.1} parent=1 // loop_body
      %s24 = ssub.s32 %s19, 1
      %s25 = ssub.s32 %s19, 2
      %s26 = sadd.s32 %s19, 1
      %s27 = ssub.s32 %s19, %s26
      %p28 = scmp.eq.s32.totalorder %s27, 0
      %s30 = sadd.s32 %s29, 1
      %s31 = scalar_select %p28, %s29, %s30
      %p34 = pneg %p28
      %p35 = scmp.eq.s32.totalorder %s19, 1
      %p36 = por %p34, %p35
      %p37 = scmp.ne.s32.totalorder %s29, %s32
      %p38 = scmp.eq.s32.totalorder %s19, 0
      %p39 = por %p37, %p38
      %p40 = scmp.ne.s32.totalorder %s29, %s32
      %p41 = scmp.eq.s32.totalorder %s24, 1
      %p42 = por %p40, %p41
      %p43 = scmp.ne.s32.totalorder %s32, %s33
      %p44 = scmp.eq.s32.totalorder %s24, 0
      %p45 = por %p43, %p44
      %p46 = scmp.ne.s32.totalorder %s32, %s33
      %p47 = scmp.eq.s32.totalorder %s25, 1
      %p48 = por %p46, %p47
      %p50 = scmp.ne.s32.totalorder %s33, %s49
      %p51 = scmp.eq.s32.totalorder %s25, 0
      %p52 = por %p50, %p51
      %s54 = sadd.s32 %s53, 1
      %p57 = scmp.eq.s32.totalorder %s19, 1
      %p58 = scmp.ne.s32.totalorder %s53, %s55
      %p59 = scmp.eq.s32.totalorder %s19, 0
      %p60 = por %p58, %p59
      %p61 = scmp.ne.s32.totalorder %s53, %s55
      %p62 = scmp.eq.s32.totalorder %s24, 1
      %p63 = por %p61, %p62
      %p64 = scmp.ne.s32.totalorder %s55, %s56
      %p65 = scmp.eq.s32.totalorder %s24, 0
      %p66 = por %p64, %p65
      %p67 = scmp.ne.s32.totalorder %s55, %s56
      %p68 = scmp.eq.s32.totalorder %s25, 1
      %p69 = por %p67, %p68
      %p71 = scmp.ne.s32.totalorder %s56, %s70
      %p72 = scmp.eq.s32.totalorder %s25, 0
      %p73 = por %p71, %p72
      %s75 = sadd.s32 %s74, 1
      %p78 = scmp.eq.s32.totalorder %s19, 1
      %p79 = scmp.ne.s32.totalorder %s74, %s76
      %p80 = scmp.eq.s32.totalorder %s19, 0
      %p81 = por %p79, %p80
      %p82 = scmp.ne.s32.totalorder %s74, %s76
      %p83 = scmp.eq.s32.totalorder %s24, 1
      %p84 = por %p82, %p83
      %p85 = scmp.ne.s32.totalorder %s76, %s77
      %p86 = scmp.eq.s32.totalorder %s24, 0
      %p87 = por %p85, %p86
      %p88 = scmp.ne.s32.totalorder %s76, %s77
      %p89 = scmp.eq.s32.totalorder %s25, 1
      %p90 = por %p88, %p89
      %p92 = scmp.ne.s32.totalorder %s77, %s91
      %p93 = scmp.eq.s32.totalorder %s25, 0
      %p94 = por %p92, %p93
      %s96 = sadd.s32 %s95, 1
      %p99 = scmp.eq.s32.totalorder %s19, 1
      %p100 = scmp.ne.s32.totalorder %s95, %s97
      %p101 = scmp.eq.s32.totalorder %s19, 0
      %p102 = por %p100, %p101
      %p103 = scmp.ne.s32.totalorder %s95, %s97
      %p104 = scmp.eq.s32.totalorder %s24, 1
      %p105 = por %p103, %p104
      %p106 = scmp.ne.s32.totalorder %s97, %s98
      %p107 = scmp.eq.s32.totalorder %s24, 0
      %p108 = por %p106, %p107
      %p109 = scmp.ne.s32.totalorder %s97, %s98
      %p110 = scmp.eq.s32.totalorder %s25, 1
      %p111 = por %p109, %p110
      %p113 = scmp.ne.s32.totalorder %s98, %s112
      %p114 = scmp.eq.s32.totalorder %s25, 0
      %p115 = por %p113, %p114
      %s117 = sadd.s32 %s116, 1
      %p120 = scmp.eq.s32.totalorder %s19, 1
      %p121 = scmp.ne.s32.totalorder %s116, %s118
      %p122 = scmp.eq.s32.totalorder %s19, 0
      %p123 = por %p121, %p122
      %p124 = scmp.ne.s32.totalorder %s116, %s118
      %p125 = scmp.eq.s32.totalorder %s24, 1
      %p126 = por %p124, %p125
      %p127 = scmp.ne.s32.totalorder %s118, %s119
      %p128 = scmp.eq.s32.totalorder %s24, 0
      %p129 = por %p127, %p128
      %p130 = scmp.ne.s32.totalorder %s118, %s119
      %p131 = scmp.eq.s32.totalorder %s25, 1
      %p132 = por %p130, %p131
      %p134 = scmp.ne.s32.totalorder %s119, %s133
      %p135 = scmp.eq.s32.totalorder %s25, 0
      %p136 = por %p134, %p135
      %s138 = sadd.s32 %s137, 1
      %p141 = scmp.eq.s32.totalorder %s19, 1
      %p142 = scmp.ne.s32.totalorder %s137, %s139
      %p143 = scmp.eq.s32.totalorder %s19, 0
      %p144 = por %p142, %p143
      %p145 = scmp.ne.s32.totalorder %s137, %s139
      %p146 = scmp.eq.s32.totalorder %s24, 1
      %p147 = por %p145, %p146
      %p148 = scmp.ne.s32.totalorder %s139, %s140
      %p149 = scmp.eq.s32.totalorder %s24, 0
      %p150 = por %p148, %p149
      %p151 = scmp.ne.s32.totalorder %s139, %s140
      %p152 = scmp.eq.s32.totalorder %s25, 1
      %p153 = por %p151, %p152
      %p155 = scmp.ne.s32.totalorder %s140, %s154
      %p156 = scmp.eq.s32.totalorder %s25, 0
      %p157 = por %p155, %p156
      %s158 = ssub.s32 %s19, %s26
      %p159 = scmp.eq.s32.totalorder %s158, 0
      %s161 = sadd.s32 %s160, 1
      %s162 = scalar_select %p159, %s160, %s161
      %p165 = pneg %p159
      %p166 = scmp.eq.s32.totalorder %s19, 1
      %p167 = por %p165, %p166
      %p168 = scmp.ne.s32.totalorder %s160, %s163
      %p169 = scmp.eq.s32.totalorder %s19, 0
      %p170 = por %p168, %p169
      %p171 = scmp.ne.s32.totalorder %s160, %s163
      %p172 = scmp.eq.s32.totalorder %s24, 1
      %p173 = por %p171, %p172
      %p174 = scmp.ne.s32.totalorder %s163, %s164
      %p175 = scmp.eq.s32.totalorder %s24, 0
      %p176 = por %p174, %p175
      %p177 = scmp.ne.s32.totalorder %s163, %s164
      %p178 = scmp.eq.s32.totalorder %s25, 1
      %p179 = por %p177, %p178
      %p181 = scmp.ne.s32.totalorder %s164, %s180
      %p182 = scmp.eq.s32.totalorder %s25, 0
      %p183 = por %p181, %p182
      %p184 = scmp.le.s32.totalorder 1, %s19
      %p185 = scmp.lt.s32.totalorder %s19, 3
      %p186 = pnand %p184, %p185
      %p187 = pneg %p186
      // Predicated region
      $region9: #{tpu_custom_call.1} parent=5 // pred_check
        _
      $region10: #{tpu_custom_call.1} parent=5 // pred_check_branch
        %189 = sbr.rel (%p186) target = $region12
      $region11: #{tpu_custom_call.1} parent=5 // pred_region
        %s190 = ssub.s32 %s19, 1
        // Predicated region
        $region13: #{tpu_custom_call.1} parent=11 // pred_check
          %p191 = pneg %p66
        $region14: #{tpu_custom_call.1} parent=11 // pred_check_branch
          %193 = sbr.rel (%p191) target = $region16
        $region15: #{tpu_custom_call.1} parent=11 // pred_region
          %s195 = ssub.s32 1024, 1024
          %196 = vsyncadd [#allocation6], %s195
          %s197 = sshll.u32 [#allocation5], 4
          %s198 = int_to_ptr.vmem [resolvable:$true] %s197
          %203 = dma.hbm_to_vmem [thread:$0]  %s1, 1024, %s198, [#allocation6], 128, 128, 8
        $region16: #{tpu_custom_call.1} parent=11 // pred_fallthru
          _
        // Predicated region
        $region17: #{tpu_custom_call.1} parent=11 // pred_check
          %p204 = pneg %p87
        $region18: #{tpu_custom_call.1} parent=11 // pred_check_branch
          %206 = sbr.rel (%p204) target = $region20
        $region19: #{tpu_custom_call.1} parent=11 // pred_region
          _
        $region20: #{tpu_custom_call.1} parent=11 // pred_fallthru
          _
        // Predicated region
        $region21: #{tpu_custom_call.1} parent=11 // pred_check
          %p207 = pneg %p108
        $region22: #{tpu_custom_call.1} parent=11 // pred_check_branch
          %209 = sbr.rel (%p207) target = $region24
        $region23: #{tpu_custom_call.1} parent=11 // pred_region
          _
        $region24: #{tpu_custom_call.1} parent=11 // pred_fallthru
          _
        // Predicated region
        $region25: #{tpu_custom_call.1} parent=11 // pred_check
          %p210 = pneg %p129
        $region26: #{tpu_custom_call.1} parent=11 // pred_check_branch
          %212 = sbr.rel (%p210) target = $region28
        $region27: #{tpu_custom_call.1} parent=11 // pred_region
          %s214 = ssub.s32 256, 256
          %215 = vsyncadd [#allocation6], %s214
          %s216 = sshll.u32 [#allocation7], 4
          %s217 = int_to_ptr.vmem [resolvable:$true] %s216
          %222 = dma.hbm_to_vmem [thread:$0]  %s4, 256, %s217, [#allocation6], 64, 64, 4
        $region28: #{tpu_custom_call.1} parent=11 // pred_fallthru
          _
        // Predicated region
        $region29: #{tpu_custom_call.1} parent=11 // pred_check
          %p223 = pneg %p150
        $region30: #{tpu_custom_call.1} parent=11 // pred_check_branch
          %225 = sbr.rel (%p223) target = $region32
        $region31: #{tpu_custom_call.1} parent=11 // pred_region
          _
        $region32: #{tpu_custom_call.1} parent=11 // pred_fallthru
          _
      $region12: #{tpu_custom_call.1} parent=5 // pred_fallthru
        _
      %p226 = scmp.lt.s32.totalorder %s19, 2
      // Predicated region
      $region33: #{tpu_custom_call.1} parent=5 // pred_check
        %p227 = pneg %p226
      $region34: #{tpu_custom_call.1} parent=5 // pred_check_branch
        %229 = sbr.rel (%p227) target = $region36
      $region35: #{tpu_custom_call.1} parent=5 // pred_region
        // Predicated region
        $region37: #{tpu_custom_call.1} parent=35 // pred_check
          %p230 = pneg %p39
        $region38: #{tpu_custom_call.1} parent=35 // pred_check_branch
          %232 = sbr.rel (%p230) target = $region40
        $region39: #{tpu_custom_call.1} parent=35 // pred_region
          %s233 = sand.u32 %s29, 1
          %s234 = scalar_lea.sflag [#allocation3], %s233
          %s235 = sand.u32 %s29, 1
          %s236 = smul.addr %s235, 8
          %s237 = scalar_lea.vmem [#allocation2], %s236
          %s239 = ssub.s32 128, 128
          %240 = vsyncadd %s234, %s239
          %s241 = smul.addr %s19, 2
          %s242 = smul.addr %s241, 64
          %s243 = scalar_lea.hbm %s0, %s242
          %s244 = sshll.u32 %s237, 4
          %s245 = int_to_ptr.vmem [resolvable:$true] %s244
          %250 = dma.hbm_to_vmem [thread:$0]  %s243, 128, %s245, %s234, 64, 64, 4
        $region40: #{tpu_custom_call.1} parent=35 // pred_fallthru
          _
      $region36: #{tpu_custom_call.1} parent=5 // pred_fallthru
        _
      %p251 = scmp.le.s32.totalorder 1, %s19
      %p252 = scmp.lt.s32.totalorder %s19, 3
      %p253 = pnand %p251, %p252
      %p254 = pneg %p253
      // Predicated region
      $region41: #{tpu_custom_call.1} parent=5 // pred_check
        _
      $region42: #{tpu_custom_call.1} parent=5 // pred_check_branch
        %256 = sbr.rel (%p253) target = $region44
      $region43: #{tpu_custom_call.1} parent=5 // pred_region
        %s257 = ssub.s32 %s19, 1
        %s258 = sand.u32 %s32, 1
        %s259 = scalar_lea.sflag [#allocation3], %s258
        %s260 = sand.u32 %s32, 1
        %s261 = smul.addr %s260, 8
        %s262 = scalar_lea.vmem [#allocation2], %s261
        // Predicated region
        $region45: #{tpu_custom_call.1} parent=43 // pred_check
          %p263 = pneg %p45
        $region46: #{tpu_custom_call.1} parent=43 // pred_check_branch
          %265 = sbr.rel (%p263) target = $region48
        $region47: #{tpu_custom_call.1} parent=43 // pred_region
          %266 = dma.done %s259, 128
        $region48: #{tpu_custom_call.1} parent=43 // pred_fallthru
          _
        // Predicated region
        $region49: #{tpu_custom_call.1} parent=43 // pred_check
          %p267 = pneg %p66
        $region50: #{tpu_custom_call.1} parent=43 // pred_check_branch
          %269 = sbr.rel (%p267) target = $region52
        $region51: #{tpu_custom_call.1} parent=43 // pred_region
          %270 = dma.done [#allocation6], 1024
        $region52: #{tpu_custom_call.1} parent=43 // pred_fallthru
          _
        // Predicated region
        $region53: #{tpu_custom_call.1} parent=43 // pred_check
          %p271 = pneg %p129
        $region54: #{tpu_custom_call.1} parent=43 // pred_check_branch
          %273 = sbr.rel (%p271) target = $region56
        $region55: #{tpu_custom_call.1} parent=43 // pred_region
          %274 = dma.done [#allocation6], 256
        $region56: #{tpu_custom_call.1} parent=43 // pred_fallthru
          _
        %s275 = sand.u32 %s32, 1
        %s276 = scalar_lea.sflag [#allocation3], %s275
        %s277 = sand.u32 %s32, 1
        %s278 = smul.addr %s277, 8
        %s279 = scalar_lea.vmem [#allocation2], %s278
        %p280 = pneg %p45
        %p281 = pneg %p42
        %p282 = pneg %p66
        %p283 = pneg %p63
        %p284 = pneg %p87
        %p285 = pneg %p84
        %p286 = pneg %p108
        %p287 = pneg %p105
        %p288 = pneg %p129
        %p289 = pneg %p126
        %p290 = pneg %p150
        %p291 = pneg %p147
        %p292 = pneg %p176
        %p293 = pneg %p173
        %s294 = sand.u32 %s163, 1
        %s295 = scalar_lea.sflag [#allocation4], %s294
        %s296 = sand.u32 %s163, 1
        %s297 = smul.addr %s296, 8
        %s298 = scalar_lea.vmem [#allocation8], %s297
        %v300 = vld [vmem:[%s262] sm:$0xf]
        %v301 = vld [vmem:[%s262 + $0x4] sm:$0xf]
        %v302 = vld [vmem:[%s3] sm:$0xf]
        %v303 = vld [vmem:[%s3 + $0x4] sm:$0xf]
        %v304 = vld [vmem:[%s3 + $0x8] sm:$0xf]
        %v305 = vld [vmem:[%s3 + $0xc] sm:$0xf]
        %v308 = vunpack.c.l.b16 %v300
        %v309 = vunpack.c.l.b16 %v301
        %v310 = vpack.c.b16 %v309, %v308
        %v315 = vunpack.c.l.b16 %v302
        %v316 = vunpack.c.l.b16 %v303
        %v317 = vunpack.c.l.b16 %v304
        %v318 = vunpack.c.l.b16 %v305
        %v319 = vpack.c.b16 %v316, %v315
        %v320 = vpack.c.b16 %v318, %v317
        %vm323 = vcmask 261120
        %v325 = vsel %vm323, %v310, 0
        %327 = vmatprep.subr.bf16.mxu0 0
        %328 = vmatpush1.bf16.msra.mxu0 %v319
        %329 = vmatprep.subr.bf16.mxu0 0
        %330 = vmatpush1.bf16.msra.mxu0 %v320
        %331 = vmatprep.subr.bf16.mxu0 0
        %332 = vmatpush1.bf16.msra.mxu0 0
        %333 = vmatprep.subr.bf16.mxu0 0
        %334 = vmatpush1.bf16.msra.mxu0 0
        %335 = vmatprep.subr.bf16.mxu0 0
        %336 = vmatpush1.bf16.msra.mxu0 0
        %337 = vmatprep.subr.bf16.mxu0 0
        %338 = vmatpush1.bf16.msra.mxu0 0
        %339 = vmatprep.subr.bf16.mxu0 0
        %340 = vmatpush1.bf16.msra.mxu0 0
        %341 = vmatprep.subr.bf16.mxu0 0
        %342 = vmatpush1.bf16.msra.mxu0 0
        %343 = vmatprep.subr.bf16.mxu0 0
        %344 = vmatpush1.bf16.msra.mxu0 0
        %345 = vmatprep.subr.bf16.mxu0 0
        %346 = vmatpush1.bf16.msra.mxu0 0
        %347 = vmatprep.subr.bf16.mxu0 0
        %348 = vmatpush1.bf16.msra.mxu0 0
        %349 = vmatprep.subr.bf16.mxu0 0
        %350 = vmatpush1.bf16.msra.mxu0 0
        %351 = vmatprep.subr.bf16.mxu0 0
        %352 = vmatpush1.bf16.msra.mxu0 0
        %353 = vmatprep.subr.bf16.mxu0 0
        %354 = vmatpush1.bf16.msra.mxu0 0
        %355 = vmatprep.subr.bf16.mxu0 0
        %356 = vmatpush1.bf16.msra.mxu0 0
        %357 = vmatprep.subr.bf16.mxu0 0
        %358 = vmatpush1.bf16.msra.mxu0 0
        %359 = vmatprep.mubr.bf16.mxu0 0
        %360 = vmatmul.mubr.bf16.gmra.mrb[0].mxu0 %v325
        %v361 = vpop.f32.mrb[0].mxu0
        %v362 = vadd.f32 0.0, %v361
        %v363 = vpop.f32.mrb[0].mxu0
        %v364 = vpop.f32.mrb[0].mxu0
        %v365 = vadd.f32 0.0, %v364
        %v366 = vpop.f32.mrb[0].mxu0
        %367 = vdwg.mxu0
        %v368 = vpack.c.bf16 %v365, %v362
        %370 = vrot.lane.b32.xlu0 %v368, 120
        %v371 = vpop.permute.xlu0 %370
        %372 = vrot.lane.b32.xlu0 %v368, 112
        %v373 = vpop.permute.xlu0 %372
        %374 = vrot.lane.b32.xlu0 %v368, 104
        %v375 = vpop.permute.xlu0 %374
        %v378 = vpack.i.b16 %v371, %v368
        %v380 = vshrl.u32 %v368, 16
        %v381 = vshrl.u32 %v371, 16
        %v382 = vpack.i.b16 %v381, %v380
        %v386 = vpack.i.b16 %v375, %v373
        %v388 = vshrl.u32 %v373, 16
        %v389 = vshrl.u32 %v375, 16
        %v390 = vpack.i.b16 %v389, %v388
        %v393 = vpack.i.b16 0, 0
        %v395 = vshrl.u32 0, 16
        %v396 = vpack.i.b16 %v395, %v395
        %v398 = vcombine.high %v378, %v393
        %v400 = vunpack.c.l.s4 1983009808
        %v401 = vunpack.c.0.s8 %v400
        %v402 = vlaneseq
        %v403 = vshrl.u32 %v402, 7
        %v404 = vsub.s32 %v401, %v403
        %v405 = vrot.slane %v378, %v404
        %v407 = vunpack.c.l.s4 1983009808
        %v408 = vunpack.c.0.s8 %v407
        %v409 = vlaneseq
        %v410 = vshrl.u32 %v409, 7
        %v411 = vsub.s32 %v408, %v410
        %v412 = vrot.slane %v398, %v411
        %v413 = vcombine.high %v386, %v393
        %v415 = vunpack.c.l.s4 1983009808
        %v416 = vunpack.c.0.s8 %v415
        %v417 = vlaneseq
        %v418 = vshrl.u32 %v417, 7
        %v419 = vsub.s32 %v416, %v418
        %v420 = vrot.slane %v386, %v419
        %v422 = vunpack.c.l.s4 1983009808
        %v423 = vunpack.c.0.s8 %v422
        %v424 = vlaneseq
        %v425 = vshrl.u32 %v424, 7
        %v426 = vsub.s32 %v423, %v425
        %v427 = vrot.slane %v413, %v426
        %v428 = vcombine.low %v405, %v420
        %v429 = vcombine.high %v405, %v420
        %v431 = vunpack.c.l.s4 1934713408
        %v432 = vunpack.c.0.s8 %v431
        %v433 = vlaneseq
        %v434 = vshrl.u32 %v433, 7
        %v435 = vsub.s32 %v432, %v434
        %v436 = vrot.slane %v428, %v435
        %v438 = vunpack.c.l.s4 1934713408
        %v439 = vunpack.c.0.s8 %v438
        %v440 = vlaneseq
        %v441 = vshrl.u32 %v440, 7
        %v442 = vsub.s32 %v439, %v441
        %v443 = vrot.slane %v429, %v442
        %v444 = vcombine.low %v412, %v427
        %v445 = vcombine.high %v412, %v427
        %v447 = vunpack.c.l.s4 1934713408
        %v448 = vunpack.c.0.s8 %v447
        %v449 = vlaneseq
        %v450 = vshrl.u32 %v449, 7
        %v451 = vsub.s32 %v448, %v450
        %v452 = vrot.slane %v444, %v451
        %v454 = vunpack.c.l.s4 1934713408
        %v455 = vunpack.c.0.s8 %v454
        %v456 = vlaneseq
        %v457 = vshrl.u32 %v456, 7
        %v458 = vsub.s32 %v455, %v457
        %v459 = vrot.slane %v445, %v458
        %v460 = vcombine.high %v436, 0
        %v461 = vcombine.high %v443, 0
        %v462 = vcombine.high %v452, 0
        %v463 = vcombine.high %v459, 0
        %v464 = vcombine.high %v382, %v396
        %v466 = vunpack.c.l.s4 1983009808
        %v467 = vunpack.c.0.s8 %v466
        %v468 = vlaneseq
        %v469 = vshrl.u32 %v468, 7
        %v470 = vsub.s32 %v467, %v469
        %v471 = vrot.slane %v382, %v470
        %v473 = vunpack.c.l.s4 1983009808
        %v474 = vunpack.c.0.s8 %v473
        %v475 = vlaneseq
        %v476 = vshrl.u32 %v475, 7
        %v477 = vsub.s32 %v474, %v476
        %v478 = vrot.slane %v464, %v477
        %v479 = vcombine.high %v390, %v396
        %v481 = vunpack.c.l.s4 1983009808
        %v482 = vunpack.c.0.s8 %v481
        %v483 = vlaneseq
        %v484 = vshrl.u32 %v483, 7
        %v485 = vsub.s32 %v482, %v484
        %v486 = vrot.slane %v390, %v485
        %v488 = vunpack.c.l.s4 1983009808
        %v489 = vunpack.c.0.s8 %v488
        %v490 = vlaneseq
        %v491 = vshrl.u32 %v490, 7
        %v492 = vsub.s32 %v489, %v491
        %v493 = vrot.slane %v479, %v492
        %v494 = vcombine.low %v471, %v486
        %v495 = vcombine.high %v471, %v486
        %v497 = vunpack.c.l.s4 1934713408
        %v498 = vunpack.c.0.s8 %v497
        %v499 = vlaneseq
        %v500 = vshrl.u32 %v499, 7
        %v501 = vsub.s32 %v498, %v500
        %v502 = vrot.slane %v494, %v501
        %v504 = vunpack.c.l.s4 1934713408
        %v505 = vunpack.c.0.s8 %v504
        %v506 = vlaneseq
        %v507 = vshrl.u32 %v506, 7
        %v508 = vsub.s32 %v505, %v507
        %v509 = vrot.slane %v495, %v508
        %v510 = vcombine.low %v478, %v493
        %v511 = vcombine.high %v478, %v493
        %v513 = vunpack.c.l.s4 1934713408
        %v514 = vunpack.c.0.s8 %v513
        %v515 = vlaneseq
        %v516 = vshrl.u32 %v515, 7
        %v517 = vsub.s32 %v514, %v516
        %v518 = vrot.slane %v510, %v517
        %v520 = vunpack.c.l.s4 1934713408
        %v521 = vunpack.c.0.s8 %v520
        %v522 = vlaneseq
        %v523 = vshrl.u32 %v522, 7
        %v524 = vsub.s32 %v521, %v523
        %v525 = vrot.slane %v511, %v524
        %v526 = vcombine.high %v502, 0
        %v527 = vcombine.high %v509, 0
        %v528 = vcombine.high %v518, 0
        %v529 = vcombine.high %v525, 0
        %v530 = vcombine.low %v436, %v443
        %v532 = vunpack.c.l.s4 1983009808
        %v533 = vunpack.c.0.s8 %v532
        %v534 = vlaneseq
        %v535 = vshrl.u32 %v534, 7
        %v536 = vsub.s32 %v533, %v535
        %v537 = vrot.slane %v530, %v536
        %v538 = vcombine.low %v460, %v461
        %v540 = vunpack.c.l.s4 1983009808
        %v541 = vunpack.c.0.s8 %v540
        %v542 = vlaneseq
        %v543 = vshrl.u32 %v542, 7
        %v544 = vsub.s32 %v541, %v543
        %v545 = vrot.slane %v538, %v544
        %v546 = vcombine.low %v452, %v459
        %v548 = vunpack.c.l.s4 1983009808
        %v549 = vunpack.c.0.s8 %v548
        %v550 = vlaneseq
        %v551 = vshrl.u32 %v550, 7
        %v552 = vsub.s32 %v549, %v551
        %v553 = vrot.slane %v546, %v552
        %v554 = vcombine.low %v462, %v463
        %v556 = vunpack.c.l.s4 1983009808
        %v557 = vunpack.c.0.s8 %v556
        %v558 = vlaneseq
        %v559 = vshrl.u32 %v558, 7
        %v560 = vsub.s32 %v557, %v559
        %v561 = vrot.slane %v554, %v560
        %v562 = vcombine.low %v537, %v545
        %v564 = vunpack.c.l.s4 1934713408
        %v565 = vunpack.c.0.s8 %v564
        %v566 = vlaneseq
        %v567 = vshrl.u32 %v566, 7
        %v568 = vsub.s32 %v565, %v567
        %v569 = vrot.slane %v562, %v568
        %v570 = vcombine.low %v553, %v561
        %v572 = vunpack.c.l.s4 1934713408
        %v573 = vunpack.c.0.s8 %v572
        %v574 = vlaneseq
        %v575 = vshrl.u32 %v574, 7
        %v576 = vsub.s32 %v573, %v575
        %v577 = vrot.slane %v570, %v576
        %v578 = vcombine.low %v569, %v577
        %v579 = vcombine.high %v569, %v577
        %v580 = vcombine.low %v502, %v509
        %v582 = vunpack.c.l.s4 1983009808
        %v583 = vunpack.c.0.s8 %v582
        %v584 = vlaneseq
        %v585 = vshrl.u32 %v584, 7
        %v586 = vsub.s32 %v583, %v585
        %v587 = vrot.slane %v580, %v586
        %v588 = vcombine.low %v526, %v527
        %v590 = vunpack.c.l.s4 1983009808
        %v591 = vunpack.c.0.s8 %v590
        %v592 = vlaneseq
        %v593 = vshrl.u32 %v592, 7
        %v594 = vsub.s32 %v591, %v593
        %v595 = vrot.slane %v588, %v594
        %v596 = vcombine.low %v518, %v525
        %v598 = vunpack.c.l.s4 1983009808
        %v599 = vunpack.c.0.s8 %v598
        %v600 = vlaneseq
        %v601 = vshrl.u32 %v600, 7
        %v602 = vsub.s32 %v599, %v601
        %v603 = vrot.slane %v596, %v602
        %v604 = vcombine.low %v528, %v529
        %v606 = vunpack.c.l.s4 1983009808
        %v607 = vunpack.c.0.s8 %v606
        %v608 = vlaneseq
        %v609 = vshrl.u32 %v608, 7
        %v610 = vsub.s32 %v607, %v609
        %v611 = vrot.slane %v604, %v610
        %v612 = vcombine.low %v587, %v595
        %v614 = vunpack.c.l.s4 1934713408
        %v615 = vunpack.c.0.s8 %v614
        %v616 = vlaneseq
        %v617 = vshrl.u32 %v616, 7
        %v618 = vsub.s32 %v615, %v617
        %v619 = vrot.slane %v612, %v618
        %v620 = vcombine.low %v603, %v611
        %v622 = vunpack.c.l.s4 1934713408
        %v623 = vunpack.c.0.s8 %v622
        %v624 = vlaneseq
        %v625 = vshrl.u32 %v624, 7
        %v626 = vsub.s32 %v623, %v625
        %v627 = vrot.slane %v620, %v626
        %v628 = vcombine.low %v619, %v627
        %v629 = vcombine.high %v619, %v627
        %v632 = vpack.i.b16 %v628, %v578
        %v633 = vshrl.u32 %v578, 16
        %v634 = vshrl.u32 %v628, 16
        %v635 = vpack.i.b16 %v634, %v633
        %v638 = vpack.i.b16 %v629, %v579
        %v639 = vshrl.u32 %v579, 16
        %v640 = vshrl.u32 %v629, 16
        %v641 = vpack.i.b16 %v640, %v639
        %642 = vrot.lane.b32.xlu0 %v368, 96
        %v643 = vpop.permute.xlu0 %642
        %644 = vrot.lane.b32.xlu0 %v371, 96
        %v645 = vpop.permute.xlu0 %644
        %646 = vrot.lane.b32.xlu0 %v373, 96
        %v647 = vpop.permute.xlu0 %646
        %648 = vrot.lane.b32.xlu0 %v375, 96
        %v649 = vpop.permute.xlu0 %648
        %v652 = vpack.i.b16 %v645, %v643
        %v654 = vshrl.u32 %v643, 16
        %v655 = vshrl.u32 %v645, 16
        %v656 = vpack.i.b16 %v655, %v654
        %v660 = vpack.i.b16 %v649, %v647
        %v662 = vshrl.u32 %v647, 16
        %v663 = vshrl.u32 %v649, 16
        %v664 = vpack.i.b16 %v663, %v662
        %v666 = vcombine.high %v652, %v393
        %v668 = vunpack.c.l.s4 1983009808
        %v669 = vunpack.c.0.s8 %v668
        %v670 = vlaneseq
        %v671 = vshrl.u32 %v670, 7
        %v672 = vsub.s32 %v669, %v671
        %v673 = vrot.slane %v652, %v672
        %v675 = vunpack.c.l.s4 1983009808
        %v676 = vunpack.c.0.s8 %v675
        %v677 = vlaneseq
        %v678 = vshrl.u32 %v677, 7
        %v679 = vsub.s32 %v676, %v678
        %v680 = vrot.slane %v666, %v679
        %v681 = vcombine.high %v660, %v393
        %v683 = vunpack.c.l.s4 1983009808
        %v684 = vunpack.c.0.s8 %v683
        %v685 = vlaneseq
        %v686 = vshrl.u32 %v685, 7
        %v687 = vsub.s32 %v684, %v686
        %v688 = vrot.slane %v660, %v687
        %v690 = vunpack.c.l.s4 1983009808
        %v691 = vunpack.c.0.s8 %v690
        %v692 = vlaneseq
        %v693 = vshrl.u32 %v692, 7
        %v694 = vsub.s32 %v691, %v693
        %v695 = vrot.slane %v681, %v694
        %v696 = vcombine.low %v673, %v688
        %v697 = vcombine.high %v673, %v688
        %v699 = vunpack.c.l.s4 1934713408
        %v700 = vunpack.c.0.s8 %v699
        %v701 = vlaneseq
        %v702 = vshrl.u32 %v701, 7
        %v703 = vsub.s32 %v700, %v702
        %v704 = vrot.slane %v696, %v703
        %v706 = vunpack.c.l.s4 1934713408
        %v707 = vunpack.c.0.s8 %v706
        %v708 = vlaneseq
        %v709 = vshrl.u32 %v708, 7
        %v710 = vsub.s32 %v707, %v709
        %v711 = vrot.slane %v697, %v710
        %v712 = vcombine.low %v680, %v695
        %v713 = vcombine.high %v680, %v695
        %v715 = vunpack.c.l.s4 1934713408
        %v716 = vunpack.c.0.s8 %v715
        %v717 = vlaneseq
        %v718 = vshrl.u32 %v717, 7
        %v719 = vsub.s32 %v716, %v718
        %v720 = vrot.slane %v712, %v719
        %v722 = vunpack.c.l.s4 1934713408
        %v723 = vunpack.c.0.s8 %v722
        %v724 = vlaneseq
        %v725 = vshrl.u32 %v724, 7
        %v726 = vsub.s32 %v723, %v725
        %v727 = vrot.slane %v713, %v726
        %v728 = vcombine.high %v704, 0
        %v729 = vcombine.high %v711, 0
        %v730 = vcombine.high %v720, 0
        %v731 = vcombine.high %v727, 0
        %v732 = vcombine.high %v656, %v396
        %v734 = vunpack.c.l.s4 1983009808
        %v735 = vunpack.c.0.s8 %v734
        %v736 = vlaneseq
        %v737 = vshrl.u32 %v736, 7
        %v738 = vsub.s32 %v735, %v737
        %v739 = vrot.slane %v656, %v738
        %v741 = vunpack.c.l.s4 1983009808
        %v742 = vunpack.c.0.s8 %v741
        %v743 = vlaneseq
        %v744 = vshrl.u32 %v743, 7
        %v745 = vsub.s32 %v742, %v744
        %v746 = vrot.slane %v732, %v745
        %v747 = vcombine.high %v664, %v396
        %v749 = vunpack.c.l.s4 1983009808
        %v750 = vunpack.c.0.s8 %v749
        %v751 = vlaneseq
        %v752 = vshrl.u32 %v751, 7
        %v753 = vsub.s32 %v750, %v752
        %v754 = vrot.slane %v664, %v753
        %v756 = vunpack.c.l.s4 1983009808
        %v757 = vunpack.c.0.s8 %v756
        %v758 = vlaneseq
        %v759 = vshrl.u32 %v758, 7
        %v760 = vsub.s32 %v757, %v759
        %v761 = vrot.slane %v747, %v760
        %v762 = vcombine.low %v739, %v754
        %v763 = vcombine.high %v739, %v754
        %v765 = vunpack.c.l.s4 1934713408
        %v766 = vunpack.c.0.s8 %v765
        %v767 = vlaneseq
        %v768 = vshrl.u32 %v767, 7
        %v769 = vsub.s32 %v766, %v768
        %v770 = vrot.slane %v762, %v769
        %v772 = vunpack.c.l.s4 1934713408
        %v773 = vunpack.c.0.s8 %v772
        %v774 = vlaneseq
        %v775 = vshrl.u32 %v774, 7
        %v776 = vsub.s32 %v773, %v775
        %v777 = vrot.slane %v763, %v776
        %v778 = vcombine.low %v746, %v761
        %v779 = vcombine.high %v746, %v761
        %v781 = vunpack.c.l.s4 1934713408
        %v782 = vunpack.c.0.s8 %v781
        %v783 = vlaneseq
        %v784 = vshrl.u32 %v783, 7
        %v785 = vsub.s32 %v782, %v784
        %v786 = vrot.slane %v778, %v785
        %v788 = vunpack.c.l.s4 1934713408
        %v789 = vunpack.c.0.s8 %v788
        %v790 = vlaneseq
        %v791 = vshrl.u32 %v790, 7
        %v792 = vsub.s32 %v789, %v791
        %v793 = vrot.slane %v779, %v792
        %v794 = vcombine.high %v770, 0
        %v795 = vcombine.high %v777, 0
        %v796 = vcombine.high %v786, 0
        %v797 = vcombine.high %v793, 0
        %v798 = vcombine.low %v704, %v711
        %v800 = vunpack.c.l.s4 1983009808
        %v801 = vunpack.c.0.s8 %v800
        %v802 = vlaneseq
        %v803 = vshrl.u32 %v802, 7
        %v804 = vsub.s32 %v801, %v803
        %v805 = vrot.slane %v798, %v804
        %v806 = vcombine.low %v728, %v729
        %v808 = vunpack.c.l.s4 1983009808
        %v809 = vunpack.c.0.s8 %v808
        %v810 = vlaneseq
        %v811 = vshrl.u32 %v810, 7
        %v812 = vsub.s32 %v809, %v811
        %v813 = vrot.slane %v806, %v812
        %v814 = vcombine.low %v720, %v727
        %v816 = vunpack.c.l.s4 1983009808
        %v817 = vunpack.c.0.s8 %v816
        %v818 = vlaneseq
        %v819 = vshrl.u32 %v818, 7
        %v820 = vsub.s32 %v817, %v819
        %v821 = vrot.slane %v814, %v820
        %v822 = vcombine.low %v730, %v731
        %v824 = vunpack.c.l.s4 1983009808
        %v825 = vunpack.c.0.s8 %v824
        %v826 = vlaneseq
        %v827 = vshrl.u32 %v826, 7
        %v828 = vsub.s32 %v825, %v827
        %v829 = vrot.slane %v822, %v828
        %v830 = vcombine.low %v805, %v813
        %v832 = vunpack.c.l.s4 1934713408
        %v833 = vunpack.c.0.s8 %v832
        %v834 = vlaneseq
        %v835 = vshrl.u32 %v834, 7
        %v836 = vsub.s32 %v833, %v835
        %v837 = vrot.slane %v830, %v836
        %v838 = vcombine.low %v821, %v829
        %v840 = vunpack.c.l.s4 1934713408
        %v841 = vunpack.c.0.s8 %v840
        %v842 = vlaneseq
        %v843 = vshrl.u32 %v842, 7
        %v844 = vsub.s32 %v841, %v843
        %v845 = vrot.slane %v838, %v844
        %v846 = vcombine.low %v837, %v845
        %v847 = vcombine.high %v837, %v845
        %v848 = vcombine.low %v770, %v777
        %v850 = vunpack.c.l.s4 1983009808
        %v851 = vunpack.c.0.s8 %v850
        %v852 = vlaneseq
        %v853 = vshrl.u32 %v852, 7
        %v854 = vsub.s32 %v851, %v853
        %v855 = vrot.slane %v848, %v854
        %v856 = vcombine.low %v794, %v795
        %v858 = vunpack.c.l.s4 1983009808
        %v859 = vunpack.c.0.s8 %v858
        %v860 = vlaneseq
        %v861 = vshrl.u32 %v860, 7
        %v862 = vsub.s32 %v859, %v861
        %v863 = vrot.slane %v856, %v862
        %v864 = vcombine.low %v786, %v793
        %v866 = vunpack.c.l.s4 1983009808
        %v867 = vunpack.c.0.s8 %v866
        %v868 = vlaneseq
        %v869 = vshrl.u32 %v868, 7
        %v870 = vsub.s32 %v867, %v869
        %v871 = vrot.slane %v864, %v870
        %v872 = vcombine.low %v796, %v797
        %v874 = vunpack.c.l.s4 1983009808
        %v875 = vunpack.c.0.s8 %v874
        %v876 = vlaneseq
        %v877 = vshrl.u32 %v876, 7
        %v878 = vsub.s32 %v875, %v877
        %v879 = vrot.slane %v872, %v878
        %v880 = vcombine.low %v855, %v863
        %v882 = vunpack.c.l.s4 1934713408
        %v883 = vunpack.c.0.s8 %v882
        %v884 = vlaneseq
        %v885 = vshrl.u32 %v884, 7
        %v886 = vsub.s32 %v883, %v885
        %v887 = vrot.slane %v880, %v886
        %v888 = vcombine.low %v871, %v879
        %v890 = vunpack.c.l.s4 1934713408
        %v891 = vunpack.c.0.s8 %v890
        %v892 = vlaneseq
        %v893 = vshrl.u32 %v892, 7
        %v894 = vsub.s32 %v891, %v893
        %v895 = vrot.slane %v888, %v894
        %v896 = vcombine.low %v887, %v895
        %v897 = vcombine.high %v887, %v895
        %v900 = vpack.i.b16 %v896, %v846
        %v901 = vshrl.u32 %v846, 16
        %v902 = vshrl.u32 %v896, 16
        %v903 = vpack.i.b16 %v902, %v901
        %v906 = vpack.i.b16 %v897, %v847
        %v907 = vshrl.u32 %v847, 16
        %v908 = vshrl.u32 %v897, 16
        %v909 = vpack.i.b16 %v908, %v907
        %910 = vrot.lane.b32.xlu0 %v368, 64
        %v911 = vpop.permute.xlu0 %910
        %912 = vrot.lane.b32.xlu0 %v371, 64
        %v913 = vpop.permute.xlu0 %912
        %914 = vrot.lane.b32.xlu0 %v373, 64
        %v915 = vpop.permute.xlu0 %914
        %916 = vrot.lane.b32.xlu0 %v375, 64
        %v917 = vpop.permute.xlu0 %916
        %v920 = vpack.i.b16 %v913, %v911
        %v922 = vshrl.u32 %v911, 16
        %v923 = vshrl.u32 %v913, 16
        %v924 = vpack.i.b16 %v923, %v922
        %v928 = vpack.i.b16 %v917, %v915
        %v930 = vshrl.u32 %v915, 16
        %v931 = vshrl.u32 %v917, 16
        %v932 = vpack.i.b16 %v931, %v930
        %v934 = vcombine.high %v920, %v393
        %v936 = vunpack.c.l.s4 1983009808
        %v937 = vunpack.c.0.s8 %v936
        %v938 = vlaneseq
        %v939 = vshrl.u32 %v938, 7
        %v940 = vsub.s32 %v937, %v939
        %v941 = vrot.slane %v920, %v940
        %v943 = vunpack.c.l.s4 1983009808
        %v944 = vunpack.c.0.s8 %v943
        %v945 = vlaneseq
        %v946 = vshrl.u32 %v945, 7
        %v947 = vsub.s32 %v944, %v946
        %v948 = vrot.slane %v934, %v947
        %v949 = vcombine.high %v928, %v393
        %v951 = vunpack.c.l.s4 1983009808
        %v952 = vunpack.c.0.s8 %v951
        %v953 = vlaneseq
        %v954 = vshrl.u32 %v953, 7
        %v955 = vsub.s32 %v952, %v954
        %v956 = vrot.slane %v928, %v955
        %v958 = vunpack.c.l.s4 1983009808
        %v959 = vunpack.c.0.s8 %v958
        %v960 = vlaneseq
        %v961 = vshrl.u32 %v960, 7
        %v962 = vsub.s32 %v959, %v961
        %v963 = vrot.slane %v949, %v962
        %v964 = vcombine.low %v941, %v956
        %v965 = vcombine.high %v941, %v956
        %v967 = vunpack.c.l.s4 1934713408
        %v968 = vunpack.c.0.s8 %v967
        %v969 = vlaneseq
        %v970 = vshrl.u32 %v969, 7
        %v971 = vsub.s32 %v968, %v970
        %v972 = vrot.slane %v964, %v971
        %v974 = vunpack.c.l.s4 1934713408
        %v975 = vunpack.c.0.s8 %v974
        %v976 = vlaneseq
        %v977 = vshrl.u32 %v976, 7
        %v978 = vsub.s32 %v975, %v977
        %v979 = vrot.slane %v965, %v978
        %v980 = vcombine.low %v948, %v963
        %v981 = vcombine.high %v948, %v963
        %v983 = vunpack.c.l.s4 1934713408
        %v984 = vunpack.c.0.s8 %v983
        %v985 = vlaneseq
        %v986 = vshrl.u32 %v985, 7
        %v987 = vsub.s32 %v984, %v986
        %v988 = vrot.slane %v980, %v987
        %v990 = vunpack.c.l.s4 1934713408
        %v991 = vunpack.c.0.s8 %v990
        %v992 = vlaneseq
        %v993 = vshrl.u32 %v992, 7
        %v994 = vsub.s32 %v991, %v993
        %v995 = vrot.slane %v981, %v994
        %v996 = vcombine.high %v972, 0
        %v997 = vcombine.high %v979, 0
        %v998 = vcombine.high %v988, 0
        %v999 = vcombine.high %v995, 0
        %v1000 = vcombine.high %v924, %v396
        %v1002 = vunpack.c.l.s4 1983009808
        %v1003 = vunpack.c.0.s8 %v1002
        %v1004 = vlaneseq
        %v1005 = vshrl.u32 %v1004, 7
        %v1006 = vsub.s32 %v1003, %v1005
        %v1007 = vrot.slane %v924, %v1006
        %v1009 = vunpack.c.l.s4 1983009808
        %v1010 = vunpack.c.0.s8 %v1009
        %v1011 = vlaneseq
        %v1012 = vshrl.u32 %v1011, 7
        %v1013 = vsub.s32 %v1010, %v1012
        %v1014 = vrot.slane %v1000, %v1013
        %v1015 = vcombine.high %v932, %v396
        %v1017 = vunpack.c.l.s4 1983009808
        %v1018 = vunpack.c.0.s8 %v1017
        %v1019 = vlaneseq
        %v1020 = vshrl.u32 %v1019, 7
        %v1021 = vsub.s32 %v1018, %v1020
        %v1022 = vrot.slane %v932, %v1021
        %v1024 = vunpack.c.l.s4 1983009808
        %v1025 = vunpack.c.0.s8 %v1024
        %v1026 = vlaneseq
        %v1027 = vshrl.u32 %v1026, 7
        %v1028 = vsub.s32 %v1025, %v1027
        %v1029 = vrot.slane %v1015, %v1028
        %v1030 = vcombine.low %v1007, %v1022
        %v1031 = vcombine.high %v1007, %v1022
        %v1033 = vunpack.c.l.s4 1934713408
        %v1034 = vunpack.c.0.s8 %v1033
        %v1035 = vlaneseq
        %v1036 = vshrl.u32 %v1035, 7
        %v1037 = vsub.s32 %v1034, %v1036
        %v1038 = vrot.slane %v1030, %v1037
        %v1040 = vunpack.c.l.s4 1934713408
        %v1041 = vunpack.c.0.s8 %v1040
        %v1042 = vlaneseq
        %v1043 = vshrl.u32 %v1042, 7
        %v1044 = vsub.s32 %v1041, %v1043
        %v1045 = vrot.slane %v1031, %v1044
        %v1046 = vcombine.low %v1014, %v1029
        %v1047 = vcombine.high %v1014, %v1029
        %v1049 = vunpack.c.l.s4 1934713408
        %v1050 = vunpack.c.0.s8 %v1049
        %v1051 = vlaneseq
        %v1052 = vshrl.u32 %v1051, 7
        %v1053 = vsub.s32 %v1050, %v1052
        %v1054 = vrot.slane %v1046, %v1053
        %v1056 = vunpack.c.l.s4 1934713408
        %v1057 = vunpack.c.0.s8 %v1056
        %v1058 = vlaneseq
        %v1059 = vshrl.u32 %v1058, 7
        %v1060 = vsub.s32 %v1057, %v1059
        %v1061 = vrot.slane %v1047, %v1060
        %v1062 = vcombine.high %v1038, 0
        %v1063 = vcombine.high %v1045, 0
        %v1064 = vcombine.high %v1054, 0
        %v1065 = vcombine.high %v1061, 0
        %v1066 = vcombine.low %v972, %v979
        %v1068 = vunpack.c.l.s4 1983009808
        %v1069 = vunpack.c.0.s8 %v1068
        %v1070 = vlaneseq
        %v1071 = vshrl.u32 %v1070, 7
        %v1072 = vsub.s32 %v1069, %v1071
        %v1073 = vrot.slane %v1066, %v1072
        %v1074 = vcombine.low %v996, %v997
        %v1076 = vunpack.c.l.s4 1983009808
        %v1077 = vunpack.c.0.s8 %v1076
        %v1078 = vlaneseq
        %v1079 = vshrl.u32 %v1078, 7
        %v1080 = vsub.s32 %v1077, %v1079
        %v1081 = vrot.slane %v1074, %v1080
        %v1082 = vcombine.low %v988, %v995
        %v1084 = vunpack.c.l.s4 1983009808
        %v1085 = vunpack.c.0.s8 %v1084
        %v1086 = vlaneseq
        %v1087 = vshrl.u32 %v1086, 7
        %v1088 = vsub.s32 %v1085, %v1087
        %v1089 = vrot.slane %v1082, %v1088
        %v1090 = vcombine.low %v998, %v999
        %v1092 = vunpack.c.l.s4 1983009808
        %v1093 = vunpack.c.0.s8 %v1092
        %v1094 = vlaneseq
        %v1095 = vshrl.u32 %v1094, 7
        %v1096 = vsub.s32 %v1093, %v1095
        %v1097 = vrot.slane %v1090, %v1096
        %v1098 = vcombine.low %v1073, %v1081
        %v1100 = vunpack.c.l.s4 1934713408
        %v1101 = vunpack.c.0.s8 %v1100
        %v1102 = vlaneseq
        %v1103 = vshrl.u32 %v1102, 7
        %v1104 = vsub.s32 %v1101, %v1103
        %v1105 = vrot.slane %v1098, %v1104
        %v1106 = vcombine.low %v1089, %v1097
        %v1108 = vunpack.c.l.s4 1934713408
        %v1109 = vunpack.c.0.s8 %v1108
        %v1110 = vlaneseq
        %v1111 = vshrl.u32 %v1110, 7
        %v1112 = vsub.s32 %v1109, %v1111
        %v1113 = vrot.slane %v1106, %v1112
        %v1114 = vcombine.low %v1105, %v1113
        %v1115 = vcombine.high %v1105, %v1113
        %v1116 = vcombine.low %v1038, %v1045
        %v1118 = vunpack.c.l.s4 1983009808
        %v1119 = vunpack.c.0.s8 %v1118
        %v1120 = vlaneseq
        %v1121 = vshrl.u32 %v1120, 7
        %v1122 = vsub.s32 %v1119, %v1121
        %v1123 = vrot.slane %v1116, %v1122
        %v1124 = vcombine.low %v1062, %v1063
        %v1126 = vunpack.c.l.s4 1983009808
        %v1127 = vunpack.c.0.s8 %v1126
        %v1128 = vlaneseq
        %v1129 = vshrl.u32 %v1128, 7
        %v1130 = vsub.s32 %v1127, %v1129
        %v1131 = vrot.slane %v1124, %v1130
        %v1132 = vcombine.low %v1054, %v1061
        %v1134 = vunpack.c.l.s4 1983009808
        %v1135 = vunpack.c.0.s8 %v1134
        %v1136 = vlaneseq
        %v1137 = vshrl.u32 %v1136, 7
        %v1138 = vsub.s32 %v1135, %v1137
        %v1139 = vrot.slane %v1132, %v1138
        %v1140 = vcombine.low %v1064, %v1065
        %v1142 = vunpack.c.l.s4 1983009808
        %v1143 = vunpack.c.0.s8 %v1142
        %v1144 = vlaneseq
        %v1145 = vshrl.u32 %v1144, 7
        %v1146 = vsub.s32 %v1143, %v1145
        %v1147 = vrot.slane %v1140, %v1146
        %v1148 = vcombine.low %v1123, %v1131
        %v1150 = vunpack.c.l.s4 1934713408
        %v1151 = vunpack.c.0.s8 %v1150
        %v1152 = vlaneseq
        %v1153 = vshrl.u32 %v1152, 7
        %v1154 = vsub.s32 %v1151, %v1153
        %v1155 = vrot.slane %v1148, %v1154
        %v1156 = vcombine.low %v1139, %v1147
        %v1158 = vunpack.c.l.s4 1934713408
        %v1159 = vunpack.c.0.s8 %v1158
        %v1160 = vlaneseq
        %v1161 = vshrl.u32 %v1160, 7
        %v1162 = vsub.s32 %v1159, %v1161
        %v1163 = vrot.slane %v1156, %v1162
        %v1164 = vcombine.low %v1155, %v1163
        %v1165 = vcombine.high %v1155, %v1163
        %v1168 = vpack.i.b16 %v1164, %v1114
        %v1170 = vshrl.u32 %v1114, 16
        %v1171 = vshrl.u32 %v1164, 16
        %v1172 = vpack.i.b16 %v1171, %v1170
        %v1176 = vpack.i.b16 %v1165, %v1115
        %v1178 = vshrl.u32 %v1115, 16
        %v1179 = vshrl.u32 %v1165, 16
        %v1180 = vpack.i.b16 %v1179, %v1178
        %vm1182 = vcmask 64512
        %v1184 = vsel %vm1182, %v632, 0
        %v1187 = vsel %vm1182, %v900, 0
        %1189 = vmatprep.subr.bf16.mxu0 0
        %1190 = vmatpush1.bf16.xpose.msra.mxu0 %v1187
        %1191 = vmatprep.subr.bf16.mxu0 0
        %1192 = vmatpush1.bf16.xpose.msra.mxu0 0
        %1193 = vmatprep.subr.bf16.mxu0 0
        %1194 = vmatpush1.bf16.xpose.msra.mxu0 0
        %1195 = vmatprep.subr.bf16.mxu0 0
        %1196 = vmatpush1.bf16.xpose.msra.mxu0 0
        %1197 = vmatprep.subr.bf16.mxu0 0
        %1198 = vmatpush1.bf16.xpose.msra.mxu0 0
        %1199 = vmatprep.subr.bf16.mxu0 0
        %1200 = vmatpush1.bf16.xpose.msra.mxu0 0
        %1201 = vmatprep.subr.bf16.mxu0 0
        %1202 = vmatpush1.bf16.xpose.msra.mxu0 0
        %1203 = vmatprep.subr.bf16.mxu0 0
        %1204 = vmatpush1.bf16.xpose.msra.mxu0 0
        %1205 = vmatprep.subr.bf16.mxu0 0
        %1206 = vmatpush1.bf16.xpose.msra.mxu0 0
        %1207 = vmatprep.subr.bf16.mxu0 0
        %1208 = vmatpush1.bf16.xpose.msra.mxu0 0
        %1209 = vmatprep.subr.bf16.mxu0 0
        %1210 = vmatpush1.bf16.xpose.msra.mxu0 0
        %1211 = vmatprep.subr.bf16.mxu0 0
        %1212 = vmatpush1.bf16.xpose.msra.mxu0 0
        %1213 = vmatprep.subr.bf16.mxu0 0
        %1214 = vmatpush1.bf16.xpose.msra.mxu0 0
        %1215 = vmatprep.subr.bf16.mxu0 0
        %1216 = vmatpush1.bf16.xpose.msra.mxu0 0
        %1217 = vmatprep.subr.bf16.mxu0 0
        %1218 = vmatpush1.bf16.xpose.msra.mxu0 0
        %1219 = vmatprep.subr.bf16.mxu0 0
        %1220 = vmatpush1.bf16.xpose.msra.mxu0 0
        %1221 = vmatprep.mubr.bf16.mxu0 0
        %1222 = vmatmul.mubr.bf16.gmra.mrb[0].mxu0 %v1184
        %v1223 = vpop.f32.mrb[0].mxu0
        %v1224 = vadd.f32 0.0, %v1223
        %v1225 = vpop.f32.mrb[0].mxu0
        %v1226 = vpop.f32.mrb[0].mxu0
        %v1227 = vadd.f32 0.0, %v1226
        %v1228 = vpop.f32.mrb[0].mxu0
        %1229 = vdwg.mxu0
        %v1231 = vsel %vm1182, %v635, 0
        %v1234 = vsel %vm1182, %v903, 0
        %1236 = vmatprep.subr.bf16.mxu0 0
        %1237 = vmatpush1.bf16.xpose.msra.mxu0 %v1234
        %1238 = vmatprep.subr.bf16.mxu0 0
        %1239 = vmatpush1.bf16.xpose.msra.mxu0 0
        %1240 = vmatprep.subr.bf16.mxu0 0
        %1241 = vmatpush1.bf16.xpose.msra.mxu0 0
        %1242 = vmatprep.subr.bf16.mxu0 0
        %1243 = vmatpush1.bf16.xpose.msra.mxu0 0
        %1244 = vmatprep.subr.bf16.mxu0 0
        %1245 = vmatpush1.bf16.xpose.msra.mxu0 0
        %1246 = vmatprep.subr.bf16.mxu0 0
        %1247 = vmatpush1.bf16.xpose.msra.mxu0 0
        %1248 = vmatprep.subr.bf16.mxu0 0
        %1249 = vmatpush1.bf16.xpose.msra.mxu0 0
        %1250 = vmatprep.subr.bf16.mxu0 0
        %1251 = vmatpush1.bf16.xpose.msra.mxu0 0
        %1252 = vmatprep.subr.bf16.mxu0 0
        %1253 = vmatpush1.bf16.xpose.msra.mxu0 0
        %1254 = vmatprep.subr.bf16.mxu0 0
        %1255 = vmatpush1.bf16.xpose.msra.mxu0 0
        %1256 = vmatprep.subr.bf16.mxu0 0
        %1257 = vmatpush1.bf16.xpose.msra.mxu0 0
        %1258 = vmatprep.subr.bf16.mxu0 0
        %1259 = vmatpush1.bf16.xpose.msra.mxu0 0
        %1260 = vmatprep.subr.bf16.mxu0 0
        %1261 = vmatpush1.bf16.xpose.msra.mxu0 0
        %1262 = vmatprep.subr.bf16.mxu0 0
        %1263 = vmatpush1.bf16.xpose.msra.mxu0 0
        %1264 = vmatprep.subr.bf16.mxu0 0
        %1265 = vmatpush1.bf16.xpose.msra.mxu0 0
        %1266 = vmatprep.subr.bf16.mxu0 0
        %1267 = vmatpush1.bf16.xpose.msra.mxu0 0
        %1268 = vmatprep.mubr.bf16.mxu0 0
        %1269 = vmatmul.mubr.bf16.gmra.mrb[0].mxu0 %v1231
        %v1270 = vpop.f32.mrb[0].mxu0
        %v1271 = vadd.f32 0.0, %v1270
        %v1272 = vpop.f32.mrb[0].mxu0
        %v1273 = vpop.f32.mrb[0].mxu0
        %v1274 = vadd.f32 0.0, %v1273
        %v1275 = vpop.f32.mrb[0].mxu0
        %1276 = vdwg.mxu0
        %v1278 = vsel %vm1182, %v638, 0
        %v1281 = vsel %vm1182, %v906, 0
        %1283 = vmatprep.subr.bf16.mxu0 0
        %1284 = vmatpush1.bf16.xpose.msra.mxu0 %v1281
        %1285 = vmatprep.subr.bf16.mxu0 0
        %1286 = vmatpush1.bf16.xpose.msra.mxu0 0
        %1287 = vmatprep.subr.bf16.mxu0 0
        %1288 = vmatpush1.bf16.xpose.msra.mxu0 0
        %1289 = vmatprep.subr.bf16.mxu0 0
        %1290 = vmatpush1.bf16.xpose.msra.mxu0 0
        %1291 = vmatprep.subr.bf16.mxu0 0
        %1292 = vmatpush1.bf16.xpose.msra.mxu0 0
        %1293 = vmatprep.subr.bf16.mxu0 0
        %1294 = vmatpush1.bf16.xpose.msra.mxu0 0
        %1295 = vmatprep.subr.bf16.mxu0 0
        %1296 = vmatpush1.bf16.xpose.msra.mxu0 0
        %1297 = vmatprep.subr.bf16.mxu0 0
        %1298 = vmatpush1.bf16.xpose.msra.mxu0 0
        %1299 = vmatprep.subr.bf16.mxu0 0
        %1300 = vmatpush1.bf16.xpose.msra.mxu0 0
        %1301 = vmatprep.subr.bf16.mxu0 0
        %1302 = vmatpush1.bf16.xpose.msra.mxu0 0
        %1303 = vmatprep.subr.bf16.mxu0 0
        %1304 = vmatpush1.bf16.xpose.msra.mxu0 0
        %1305 = vmatprep.subr.bf16.mxu0 0
        %1306 = vmatpush1.bf16.xpose.msra.mxu0 0
        %1307 = vmatprep.subr.bf16.mxu0 0
        %1308 = vmatpush1.bf16.xpose.msra.mxu0 0
        %1309 = vmatprep.subr.bf16.mxu0 0
        %1310 = vmatpush1.bf16.xpose.msra.mxu0 0
        %1311 = vmatprep.subr.bf16.mxu0 0
        %1312 = vmatpush1.bf16.xpose.msra.mxu0 0
        %1313 = vmatprep.subr.bf16.mxu0 0
        %1314 = vmatpush1.bf16.xpose.msra.mxu0 0
        %1315 = vmatprep.mubr.bf16.mxu0 0
        %1316 = vmatmul.mubr.bf16.gmra.mrb[0].mxu0 %v1278
        %v1317 = vpop.f32.mrb[0].mxu0
        %v1318 = vadd.f32 0.0, %v1317
        %v1319 = vpop.f32.mrb[0].mxu0
        %v1320 = vpop.f32.mrb[0].mxu0
        %v1321 = vadd.f32 0.0, %v1320
        %v1322 = vpop.f32.mrb[0].mxu0
        %1323 = vdwg.mxu0
        %v1325 = vsel %vm1182, %v641, 0
        %v1328 = vsel %vm1182, %v909, 0
        %1330 = vmatprep.subr.bf16.mxu0 0
        %1331 = vmatpush1.bf16.xpose.msra.mxu0 %v1328
        %1332 = vmatprep.subr.bf16.mxu0 0
        %1333 = vmatpush1.bf16.xpose.msra.mxu0 0
        %1334 = vmatprep.subr.bf16.mxu0 0
        %1335 = vmatpush1.bf16.xpose.msra.mxu0 0
        %1336 = vmatprep.subr.bf16.mxu0 0
        %1337 = vmatpush1.bf16.xpose.msra.mxu0 0
        %1338 = vmatprep.subr.bf16.mxu0 0
        %1339 = vmatpush1.bf16.xpose.msra.mxu0 0
        %1340 = vmatprep.subr.bf16.mxu0 0
        %1341 = vmatpush1.bf16.xpose.msra.mxu0 0
        %1342 = vmatprep.subr.bf16.mxu0 0
        %1343 = vmatpush1.bf16.xpose.msra.mxu0 0
        %1344 = vmatprep.subr.bf16.mxu0 0
        %1345 = vmatpush1.bf16.xpose.msra.mxu0 0
        %1346 = vmatprep.subr.bf16.mxu0 0
        %1347 = vmatpush1.bf16.xpose.msra.mxu0 0
        %1348 = vmatprep.subr.bf16.mxu0 0
        %1349 = vmatpush1.bf16.xpose.msra.mxu0 0
        %1350 = vmatprep.subr.bf16.mxu0 0
        %1351 = vmatpush1.bf16.xpose.msra.mxu0 0
        %1352 = vmatprep.subr.bf16.mxu0 0
        %1353 = vmatpush1.bf16.xpose.msra.mxu0 0
        %1354 = vmatprep.subr.bf16.mxu0 0
        %1355 = vmatpush1.bf16.xpose.msra.mxu0 0
        %1356 = vmatprep.subr.bf16.mxu0 0
        %1357 = vmatpush1.bf16.xpose.msra.mxu0 0
        %1358 = vmatprep.subr.bf16.mxu0 0
        %1359 = vmatpush1.bf16.xpose.msra.mxu0 0
        %1360 = vmatprep.subr.bf16.mxu0 0
        %1361 = vmatpush1.bf16.xpose.msra.mxu0 0
        %1362 = vmatprep.mubr.bf16.mxu0 0
        %1363 = vmatmul.mubr.bf16.gmra.mrb[0].mxu0 %v1325
        %v1364 = vpop.f32.mrb[0].mxu0
        %v1365 = vadd.f32 0.0, %v1364
        %v1366 = vpop.f32.mrb[0].mxu0
        %v1367 = vpop.f32.mrb[0].mxu0
        %v1368 = vadd.f32 0.0, %v1367
        %v1369 = vpop.f32.mrb[0].mxu0
        %1370 = vdwg.mxu0
        %vm1371 = vcmask 130048
        %v1372 = vsel %vm1371, %v1224, -inf
        %1373 = vmax.xlane.f32.xlu0 %v1372
        %v1374 = vpop.xlane.xlu0 %1373
        %v1375 = vsel %vm1371, %v1227, -inf
        %1376 = vmax.xlane.f32.xlu0 %v1375
        %v1377 = vpop.xlane.xlu0 %1376
        %v1378 = vsel %vm1371, %v1271, -inf
        %1379 = vmax.xlane.f32.xlu0 %v1378
        %v1380 = vpop.xlane.xlu0 %1379
        %v1381 = vsel %vm1371, %v1274, -inf
        %1382 = vmax.xlane.f32.xlu0 %v1381
        %v1383 = vpop.xlane.xlu0 %1382
        %v1384 = vsel %vm1371, %v1318, -inf
        %1385 = vmax.xlane.f32.xlu0 %v1384
        %v1386 = vpop.xlane.xlu0 %1385
        %v1387 = vsel %vm1371, %v1321, -inf
        %1388 = vmax.xlane.f32.xlu0 %v1387
        %v1389 = vpop.xlane.xlu0 %1388
        %v1390 = vsel %vm1371, %v1365, -inf
        %1391 = vmax.xlane.f32.xlu0 %v1390
        %v1392 = vpop.xlane.xlu0 %1391
        %v1393 = vsel %vm1371, %v1368, -inf
        %1394 = vmax.xlane.f32.xlu0 %v1393
        %v1395 = vpop.xlane.xlu0 %1394
        %v1396 = vsub.f32 %v1224, %v1374
        %v1397 = vsub.f32 %v1227, %v1377
        %v1398 = vsub.f32 %v1271, %v1380
        %v1399 = vsub.f32 %v1274, %v1383
        %v1400 = vsub.f32 %v1318, %v1386
        %v1401 = vsub.f32 %v1321, %v1389
        %v1402 = vsub.f32 %v1365, %v1392
        %v1403 = vsub.f32 %v1368, %v1395
        %v1404 = vmul.f32 %v1396, 1.442695
        %v1405 = vpow.pop %v1404
        %v1406 = vmul.f32 %v1397, 1.442695
        %v1407 = vpow.pop %v1406
        %v1408 = vmul.f32 %v1398, 1.442695
        %v1409 = vpow.pop %v1408
        %v1410 = vmul.f32 %v1399, 1.442695
        %v1411 = vpow.pop %v1410
        %v1412 = vmul.f32 %v1400, 1.442695
        %v1413 = vpow.pop %v1412
        %v1414 = vmul.f32 %v1401, 1.442695
        %v1415 = vpow.pop %v1414
        %v1416 = vmul.f32 %v1402, 1.442695
        %v1417 = vpow.pop %v1416
        %v1418 = vmul.f32 %v1403, 1.442695
        %v1419 = vpow.pop %v1418
        %v1420 = vld [vmem:[%s2] sm:$0xf]
        %v1423 = vunpack.c.l.s4 1966171168
        %v1424 = vunpack.c.0.s8 %v1423
        %v1425 = vlaneseq
        %v1426 = vshrl.u32 %v1425, 7
        %v1427 = vsub.s32 %v1424, %v1426
        %v1428 = vrot.slane %v1420, %v1427
        %v1429 = vcombine.high %v1428, %v1428
        %v1431 = vunpack.c.l.s4 1966171168
        %v1432 = vunpack.c.0.s8 %v1431
        %v1433 = vlaneseq
        %v1434 = vshrl.u32 %v1433, 7
        %v1435 = vsub.s32 %v1432, %v1434
        %v1436 = vrot.slane %v1428, %v1435
        %v1438 = vunpack.c.l.s4 1966171168
        %v1439 = vunpack.c.0.s8 %v1438
        %v1440 = vlaneseq
        %v1441 = vshrl.u32 %v1440, 7
        %v1442 = vsub.s32 %v1439, %v1441
        %v1443 = vrot.slane %v1429, %v1442
        %v1444 = vcombine.high %v1436, %v1436
        %v1445 = vcombine.high %v1443, %v1443
        %v1446 = vsel %vm1371, %v1405, 0.0
        %1447 = vadd.xlane.f32.xlu0 %v1446
        %v1448 = vpop.xlane.xlu0 %1447
        %v1449 = vsel %vm1371, %v1407, 0.0
        %1450 = vadd.xlane.f32.xlu0 %v1449
        %v1451 = vpop.xlane.xlu0 %1450
        %v1452 = vsel %vm1371, %v1409, 0.0
        %1453 = vadd.xlane.f32.xlu0 %v1452
        %v1454 = vpop.xlane.xlu0 %1453
        %v1455 = vsel %vm1371, %v1411, 0.0
        %1456 = vadd.xlane.f32.xlu0 %v1455
        %v1457 = vpop.xlane.xlu0 %1456
        %v1458 = vsel %vm1371, %v1413, 0.0
        %1459 = vadd.xlane.f32.xlu0 %v1458
        %v1460 = vpop.xlane.xlu0 %1459
        %v1461 = vsel %vm1371, %v1415, 0.0
        %1462 = vadd.xlane.f32.xlu0 %v1461
        %v1463 = vpop.xlane.xlu0 %1462
        %v1464 = vsel %vm1371, %v1417, 0.0
        %1465 = vadd.xlane.f32.xlu0 %v1464
        %v1466 = vpop.xlane.xlu0 %1465
        %v1467 = vsel %vm1371, %v1419, 0.0
        %1468 = vadd.xlane.f32.xlu0 %v1467
        %v1469 = vpop.xlane.xlu0 %1468
        %v1470 = vrcp.pop %v1448
        %v1471 = vrcp.pop %v1451
        %v1472 = vrcp.pop %v1454
        %v1473 = vrcp.pop %v1457
        %v1474 = vrcp.pop %v1460
        %v1475 = vrcp.pop %v1463
        %v1476 = vrcp.pop %v1466
        %v1477 = vrcp.pop %v1469
        %v1478 = vlaneseq
        %v1479 = vshrl.u32 %v1478, 7
        %v1480 = vsub.s32 0, %v1479
        %v1481 = vrot.slane %v1436, %v1480
        %v1482 = vlaneseq
        %v1483 = vshrl.u32 %v1482, 7
        %v1484 = vsub.s32 0, %v1483
        %v1485 = vrot.slane %v1443, %v1484
        %v1486 = vlaneseq
        %v1487 = vshrl.u32 %v1486, 7
        %v1488 = vsub.s32 0, %v1487
        %v1489 = vrot.slane %v1444, %v1488
        %v1490 = vlaneseq
        %v1491 = vshrl.u32 %v1490, 7
        %v1492 = vsub.s32 0, %v1491
        %v1493 = vrot.slane %v1445, %v1492
        %v1498 = vmul.f32 %v1481, %v1470
        %v1499 = vmul.f32 %v1481, %v1471
        %v1500 = vmul.f32 %v1485, %v1472
        %v1501 = vmul.f32 %v1485, %v1473
        %v1502 = vmul.f32 %v1489, %v1474
        %v1503 = vmul.f32 %v1489, %v1475
        %v1504 = vmul.f32 %v1493, %v1476
        %v1505 = vmul.f32 %v1493, %v1477
        %1507 = vset.pattern.permute.xlu0 0
        %1508 = vperm.xlu0 %1507, %v1498
        %v1509 = vpop.permute.xlu0 %1508
        %1512 = vset.pattern.permute.xlu0 0
        %1513 = vperm.xlu0 %1512, %v1499
        %v1514 = vpop.permute.xlu0 %1513
        %1517 = vset.pattern.permute.xlu0 0
        %1518 = vperm.xlu0 %1517, %v1500
        %v1519 = vpop.permute.xlu0 %1518
        %1522 = vset.pattern.permute.xlu0 0
        %1523 = vperm.xlu0 %1522, %v1501
        %v1524 = vpop.permute.xlu0 %1523
        %1527 = vset.pattern.permute.xlu0 0
        %1528 = vperm.xlu0 %1527, %v1502
        %v1529 = vpop.permute.xlu0 %1528
        %1532 = vset.pattern.permute.xlu0 0
        %1533 = vperm.xlu0 %1532, %v1503
        %v1534 = vpop.permute.xlu0 %1533
        %1537 = vset.pattern.permute.xlu0 0
        %1538 = vperm.xlu0 %1537, %v1504
        %v1539 = vpop.permute.xlu0 %1538
        %1542 = vset.pattern.permute.xlu0 0
        %1543 = vperm.xlu0 %1542, %v1505
        %v1544 = vpop.permute.xlu0 %1543
        %v1546 = vmul.f32 %v1405, %v1509
        %v1547 = vmul.f32 %v1407, %v1514
        %v1548 = vmul.f32 %v1409, %v1519
        %v1549 = vmul.f32 %v1411, %v1524
        %v1550 = vmul.f32 %v1413, %v1529
        %v1551 = vmul.f32 %v1415, %v1534
        %v1552 = vmul.f32 %v1417, %v1539
        %v1553 = vmul.f32 %v1419, %v1544
        %v1554 = vld [vmem:[#allocation5] sm:$0xff]
        %v1555 = vld [vmem:[#allocation5 + $0x8] sm:$0xff]
        %v1556 = vld [vmem:[#allocation5 + $0x10] sm:$0xff]
        %v1557 = vld [vmem:[#allocation5 + $0x18] sm:$0xff]
        %v1558 = vld [vmem:[#allocation5 + $0x20] sm:$0xff]
        %v1559 = vld [vmem:[#allocation5 + $0x28] sm:$0xff]
        %v1560 = vld [vmem:[#allocation5 + $0x30] sm:$0xff]
        %v1561 = vld [vmem:[#allocation5 + $0x38] sm:$0xff]
        %v1562 = vadd.f32 %v1546, %v1554
        %v1563 = vadd.f32 %v1547, %v1555
        %v1564 = vadd.f32 %v1548, %v1556
        %v1565 = vadd.f32 %v1549, %v1557
        %v1566 = vadd.f32 %v1550, %v1558
        %v1567 = vadd.f32 %v1551, %v1559
        %v1568 = vadd.f32 %v1552, %v1560
        %v1569 = vadd.f32 %v1553, %v1561
        %v1570 = vpack.c.bf16 %v1563, %v1562
        %v1571 = vpack.c.bf16 %v1565, %v1564
        %v1572 = vpack.c.bf16 %v1567, %v1566
        %v1573 = vpack.c.bf16 %v1569, %v1568
        %v1575 = vsel %vm1371, %v1570, 0
        %1577 = vmatprep.subr.bf16.mxu0 0
        %1578 = vmatpush1.bf16.msra.mxu0 %v1168
        %1579 = vmatprep.subr.bf16.mxu0 0
        %1580 = vmatpush1.bf16.msra.mxu0 0
        %1581 = vmatprep.subr.bf16.mxu0 0
        %1582 = vmatpush1.bf16.msra.mxu0 0
        %1583 = vmatprep.subr.bf16.mxu0 0
        %1584 = vmatpush1.bf16.msra.mxu0 0
        %1585 = vmatprep.subr.bf16.mxu0 0
        %1586 = vmatpush1.bf16.msra.mxu0 0
        %1587 = vmatprep.subr.bf16.mxu0 0
        %1588 = vmatpush1.bf16.msra.mxu0 0
        %1589 = vmatprep.subr.bf16.mxu0 0
        %1590 = vmatpush1.bf16.msra.mxu0 0
        %1591 = vmatprep.subr.bf16.mxu0 0
        %1592 = vmatpush1.bf16.msra.mxu0 0
        %1593 = vmatprep.subr.bf16.mxu0 0
        %1594 = vmatpush1.bf16.msra.mxu0 0
        %1595 = vmatprep.subr.bf16.mxu0 0
        %1596 = vmatpush1.bf16.msra.mxu0 0
        %1597 = vmatprep.subr.bf16.mxu0 0
        %1598 = vmatpush1.bf16.msra.mxu0 0
        %1599 = vmatprep.subr.bf16.mxu0 0
        %1600 = vmatpush1.bf16.msra.mxu0 0
        %1601 = vmatprep.subr.bf16.mxu0 0
        %1602 = vmatpush1.bf16.msra.mxu0 0
        %1603 = vmatprep.subr.bf16.mxu0 0
        %1604 = vmatpush1.bf16.msra.mxu0 0
        %1605 = vmatprep.subr.bf16.mxu0 0
        %1606 = vmatpush1.bf16.msra.mxu0 0
        %1607 = vmatprep.subr.bf16.mxu0 0
        %1608 = vmatpush1.bf16.msra.mxu0 0
        %1609 = vmatprep.mubr.bf16.mxu0 0
        %1610 = vmatmul.mubr.bf16.gmra.mrb[0].mxu0 %v1575
        %v1611 = vpop.f32.mrb[0].mxu0
        %v1612 = vadd.f32 0.0, %v1611
        %v1613 = vpop.f32.mrb[0].mxu0
        %v1614 = vpop.f32.mrb[0].mxu0
        %v1615 = vadd.f32 0.0, %v1614
        %v1616 = vpop.f32.mrb[0].mxu0
        %1617 = vdwg.mxu0
        %v1619 = vsel %vm1371, %v1571, 0
        %1621 = vmatprep.subr.bf16.mxu0 0
        %1622 = vmatpush1.bf16.msra.mxu0 %v1172
        %1623 = vmatprep.subr.bf16.mxu0 0
        %1624 = vmatpush1.bf16.msra.mxu0 0
        %1625 = vmatprep.subr.bf16.mxu0 0
        %1626 = vmatpush1.bf16.msra.mxu0 0
        %1627 = vmatprep.subr.bf16.mxu0 0
        %1628 = vmatpush1.bf16.msra.mxu0 0
        %1629 = vmatprep.subr.bf16.mxu0 0
        %1630 = vmatpush1.bf16.msra.mxu0 0
        %1631 = vmatprep.subr.bf16.mxu0 0
        %1632 = vmatpush1.bf16.msra.mxu0 0
        %1633 = vmatprep.subr.bf16.mxu0 0
        %1634 = vmatpush1.bf16.msra.mxu0 0
        %1635 = vmatprep.subr.bf16.mxu0 0
        %1636 = vmatpush1.bf16.msra.mxu0 0
        %1637 = vmatprep.subr.bf16.mxu0 0
        %1638 = vmatpush1.bf16.msra.mxu0 0
        %1639 = vmatprep.subr.bf16.mxu0 0
        %1640 = vmatpush1.bf16.msra.mxu0 0
        %1641 = vmatprep.subr.bf16.mxu0 0
        %1642 = vmatpush1.bf16.msra.mxu0 0
        %1643 = vmatprep.subr.bf16.mxu0 0
        %1644 = vmatpush1.bf16.msra.mxu0 0
        %1645 = vmatprep.subr.bf16.mxu0 0
        %1646 = vmatpush1.bf16.msra.mxu0 0
        %1647 = vmatprep.subr.bf16.mxu0 0
        %1648 = vmatpush1.bf16.msra.mxu0 0
        %1649 = vmatprep.subr.bf16.mxu0 0
        %1650 = vmatpush1.bf16.msra.mxu0 0
        %1651 = vmatprep.subr.bf16.mxu0 0
        %1652 = vmatpush1.bf16.msra.mxu0 0
        %1653 = vmatprep.mubr.bf16.mxu0 0
        %1654 = vmatmul.mubr.bf16.gmra.mrb[0].mxu0 %v1619
        %v1655 = vpop.f32.mrb[0].mxu0
        %v1656 = vadd.f32 0.0, %v1655
        %v1657 = vpop.f32.mrb[0].mxu0
        %v1658 = vpop.f32.mrb[0].mxu0
        %v1659 = vadd.f32 0.0, %v1658
        %v1660 = vpop.f32.mrb[0].mxu0
        %1661 = vdwg.mxu0
        %v1663 = vsel %vm1371, %v1572, 0
        %1665 = vmatprep.subr.bf16.mxu0 0
        %1666 = vmatpush1.bf16.msra.mxu0 %v1176
        %1667 = vmatprep.subr.bf16.mxu0 0
        %1668 = vmatpush1.bf16.msra.mxu0 0
        %1669 = vmatprep.subr.bf16.mxu0 0
        %1670 = vmatpush1.bf16.msra.mxu0 0
        %1671 = vmatprep.subr.bf16.mxu0 0
        %1672 = vmatpush1.bf16.msra.mxu0 0
        %1673 = vmatprep.subr.bf16.mxu0 0
        %1674 = vmatpush1.bf16.msra.mxu0 0
        %1675 = vmatprep.subr.bf16.mxu0 0
        %1676 = vmatpush1.bf16.msra.mxu0 0
        %1677 = vmatprep.subr.bf16.mxu0 0
        %1678 = vmatpush1.bf16.msra.mxu0 0
        %1679 = vmatprep.subr.bf16.mxu0 0
        %1680 = vmatpush1.bf16.msra.mxu0 0
        %1681 = vmatprep.subr.bf16.mxu0 0
        %1682 = vmatpush1.bf16.msra.mxu0 0
        %1683 = vmatprep.subr.bf16.mxu0 0
        %1684 = vmatpush1.bf16.msra.mxu0 0
        %1685 = vmatprep.subr.bf16.mxu0 0
        %1686 = vmatpush1.bf16.msra.mxu0 0
        %1687 = vmatprep.subr.bf16.mxu0 0
        %1688 = vmatpush1.bf16.msra.mxu0 0
        %1689 = vmatprep.subr.bf16.mxu0 0
        %1690 = vmatpush1.bf16.msra.mxu0 0
        %1691 = vmatprep.subr.bf16.mxu0 0
        %1692 = vmatpush1.bf16.msra.mxu0 0
        %1693 = vmatprep.subr.bf16.mxu0 0
        %1694 = vmatpush1.bf16.msra.mxu0 0
        %1695 = vmatprep.subr.bf16.mxu0 0
        %1696 = vmatpush1.bf16.msra.mxu0 0
        %1697 = vmatprep.mubr.bf16.mxu0 0
        %1698 = vmatmul.mubr.bf16.gmra.mrb[0].mxu0 %v1663
        %v1699 = vpop.f32.mrb[0].mxu0
        %v1700 = vadd.f32 0.0, %v1699
        %v1701 = vpop.f32.mrb[0].mxu0
        %v1702 = vpop.f32.mrb[0].mxu0
        %v1703 = vadd.f32 0.0, %v1702
        %v1704 = vpop.f32.mrb[0].mxu0
        %1705 = vdwg.mxu0
        %v1707 = vsel %vm1371, %v1573, 0
        %1709 = vmatprep.subr.bf16.mxu0 0
        %1710 = vmatpush1.bf16.msra.mxu0 %v1180
        %1711 = vmatprep.subr.bf16.mxu0 0
        %1712 = vmatpush1.bf16.msra.mxu0 0
        %1713 = vmatprep.subr.bf16.mxu0 0
        %1714 = vmatpush1.bf16.msra.mxu0 0
        %1715 = vmatprep.subr.bf16.mxu0 0
        %1716 = vmatpush1.bf16.msra.mxu0 0
        %1717 = vmatprep.subr.bf16.mxu0 0
        %1718 = vmatpush1.bf16.msra.mxu0 0
        %1719 = vmatprep.subr.bf16.mxu0 0
        %1720 = vmatpush1.bf16.msra.mxu0 0
        %1721 = vmatprep.subr.bf16.mxu0 0
        %1722 = vmatpush1.bf16.msra.mxu0 0
        %1723 = vmatprep.subr.bf16.mxu0 0
        %1724 = vmatpush1.bf16.msra.mxu0 0
        %1725 = vmatprep.subr.bf16.mxu0 0
        %1726 = vmatpush1.bf16.msra.mxu0 0
        %1727 = vmatprep.subr.bf16.mxu0 0
        %1728 = vmatpush1.bf16.msra.mxu0 0
        %1729 = vmatprep.subr.bf16.mxu0 0
        %1730 = vmatpush1.bf16.msra.mxu0 0
        %1731 = vmatprep.subr.bf16.mxu0 0
        %1732 = vmatpush1.bf16.msra.mxu0 0
        %1733 = vmatprep.subr.bf16.mxu0 0
        %1734 = vmatpush1.bf16.msra.mxu0 0
        %1735 = vmatprep.subr.bf16.mxu0 0
        %1736 = vmatpush1.bf16.msra.mxu0 0
        %1737 = vmatprep.subr.bf16.mxu0 0
        %1738 = vmatpush1.bf16.msra.mxu0 0
        %1739 = vmatprep.subr.bf16.mxu0 0
        %1740 = vmatpush1.bf16.msra.mxu0 0
        %1741 = vmatprep.mubr.bf16.mxu0 0
        %1742 = vmatmul.mubr.bf16.gmra.mrb[0].mxu0 %v1707
        %v1743 = vpop.f32.mrb[0].mxu0
        %v1744 = vadd.f32 0.0, %v1743
        %v1745 = vpop.f32.mrb[0].mxu0
        %v1746 = vpop.f32.mrb[0].mxu0
        %v1747 = vadd.f32 0.0, %v1746
        %v1748 = vpop.f32.mrb[0].mxu0
        %1749 = vdwg.mxu0
        %v1750 = vcombine.low %v1612, %v1700
        %v1751 = vcombine.high %v1612, %v1700
        %v1753 = vunpack.c.l.s4 1983009808
        %v1754 = vunpack.c.0.s8 %v1753
        %v1755 = vlaneseq
        %v1756 = vshrl.u32 %v1755, 7
        %v1757 = vsub.s32 %v1754, %v1756
        %v1758 = vrot.slane %v1750, %v1757
        %v1760 = vunpack.c.l.s4 1983009808
        %v1761 = vunpack.c.0.s8 %v1760
        %v1762 = vlaneseq
        %v1763 = vshrl.u32 %v1762, 7
        %v1764 = vsub.s32 %v1761, %v1763
        %v1765 = vrot.slane %v1751, %v1764
        %v1766 = vcombine.low %v1656, %v1744
        %v1767 = vcombine.high %v1656, %v1744
        %v1769 = vunpack.c.l.s4 1983009808
        %v1770 = vunpack.c.0.s8 %v1769
        %v1771 = vlaneseq
        %v1772 = vshrl.u32 %v1771, 7
        %v1773 = vsub.s32 %v1770, %v1772
        %v1774 = vrot.slane %v1766, %v1773
        %v1776 = vunpack.c.l.s4 1983009808
        %v1777 = vunpack.c.0.s8 %v1776
        %v1778 = vlaneseq
        %v1779 = vshrl.u32 %v1778, 7
        %v1780 = vsub.s32 %v1777, %v1779
        %v1781 = vrot.slane %v1767, %v1780
        %v1782 = vcombine.low %v1758, %v1774
        %v1783 = vcombine.high %v1758, %v1774
        %v1785 = vunpack.c.l.s4 1934713408
        %v1786 = vunpack.c.0.s8 %v1785
        %v1787 = vlaneseq
        %v1788 = vshrl.u32 %v1787, 7
        %v1789 = vsub.s32 %v1786, %v1788
        %v1790 = vrot.slane %v1782, %v1789
        %v1792 = vunpack.c.l.s4 1934713408
        %v1793 = vunpack.c.0.s8 %v1792
        %v1794 = vlaneseq
        %v1795 = vshrl.u32 %v1794, 7
        %v1796 = vsub.s32 %v1793, %v1795
        %v1797 = vrot.slane %v1783, %v1796
        %v1798 = vcombine.low %v1765, %v1781
        %v1799 = vcombine.high %v1765, %v1781
        %v1801 = vunpack.c.l.s4 1934713408
        %v1802 = vunpack.c.0.s8 %v1801
        %v1803 = vlaneseq
        %v1804 = vshrl.u32 %v1803, 7
        %v1805 = vsub.s32 %v1802, %v1804
        %v1806 = vrot.slane %v1798, %v1805
        %v1808 = vunpack.c.l.s4 1934713408
        %v1809 = vunpack.c.0.s8 %v1808
        %v1810 = vlaneseq
        %v1811 = vshrl.u32 %v1810, 7
        %v1812 = vsub.s32 %v1809, %v1811
        %v1813 = vrot.slane %v1799, %v1812
        %v1814 = vcombine.high %v1790, 0.0
        %v1815 = vcombine.high %v1797, 0.0
        %v1816 = vcombine.high %v1806, 0.0
        %v1817 = vcombine.high %v1813, 0.0
        %v1818 = vcombine.low %v1615, %v1703
        %v1819 = vcombine.high %v1615, %v1703
        %v1821 = vunpack.c.l.s4 1983009808
        %v1822 = vunpack.c.0.s8 %v1821
        %v1823 = vlaneseq
        %v1824 = vshrl.u32 %v1823, 7
        %v1825 = vsub.s32 %v1822, %v1824
        %v1826 = vrot.slane %v1818, %v1825
        %v1828 = vunpack.c.l.s4 1983009808
        %v1829 = vunpack.c.0.s8 %v1828
        %v1830 = vlaneseq
        %v1831 = vshrl.u32 %v1830, 7
        %v1832 = vsub.s32 %v1829, %v1831
        %v1833 = vrot.slane %v1819, %v1832
        %v1834 = vcombine.low %v1659, %v1747
        %v1835 = vcombine.high %v1659, %v1747
        %v1837 = vunpack.c.l.s4 1983009808
        %v1838 = vunpack.c.0.s8 %v1837
        %v1839 = vlaneseq
        %v1840 = vshrl.u32 %v1839, 7
        %v1841 = vsub.s32 %v1838, %v1840
        %v1842 = vrot.slane %v1834, %v1841
        %v1844 = vunpack.c.l.s4 1983009808
        %v1845 = vunpack.c.0.s8 %v1844
        %v1846 = vlaneseq
        %v1847 = vshrl.u32 %v1846, 7
        %v1848 = vsub.s32 %v1845, %v1847
        %v1849 = vrot.slane %v1835, %v1848
        %v1850 = vcombine.low %v1826, %v1842
        %v1851 = vcombine.high %v1826, %v1842
        %v1853 = vunpack.c.l.s4 1934713408
        %v1854 = vunpack.c.0.s8 %v1853
        %v1855 = vlaneseq
        %v1856 = vshrl.u32 %v1855, 7
        %v1857 = vsub.s32 %v1854, %v1856
        %v1858 = vrot.slane %v1850, %v1857
        %v1860 = vunpack.c.l.s4 1934713408
        %v1861 = vunpack.c.0.s8 %v1860
        %v1862 = vlaneseq
        %v1863 = vshrl.u32 %v1862, 7
        %v1864 = vsub.s32 %v1861, %v1863
        %v1865 = vrot.slane %v1851, %v1864
        %v1866 = vcombine.low %v1833, %v1849
        %v1867 = vcombine.high %v1833, %v1849
        %v1869 = vunpack.c.l.s4 1934713408
        %v1870 = vunpack.c.0.s8 %v1869
        %v1871 = vlaneseq
        %v1872 = vshrl.u32 %v1871, 7
        %v1873 = vsub.s32 %v1870, %v1872
        %v1874 = vrot.slane %v1866, %v1873
        %v1876 = vunpack.c.l.s4 1934713408
        %v1877 = vunpack.c.0.s8 %v1876
        %v1878 = vlaneseq
        %v1879 = vshrl.u32 %v1878, 7
        %v1880 = vsub.s32 %v1877, %v1879
        %v1881 = vrot.slane %v1867, %v1880
        %v1882 = vcombine.high %v1858, 0.0
        %v1883 = vcombine.high %v1865, 0.0
        %v1884 = vcombine.high %v1874, 0.0
        %v1885 = vcombine.high %v1881, 0.0
        %v1886 = vcombine.low %v1790, %v1797
        %v1888 = vunpack.c.l.s4 1983009808
        %v1889 = vunpack.c.0.s8 %v1888
        %v1890 = vlaneseq
        %v1891 = vshrl.u32 %v1890, 7
        %v1892 = vsub.s32 %v1889, %v1891
        %v1893 = vrot.slane %v1886, %v1892
        %v1894 = vcombine.low %v1814, %v1815
        %v1896 = vunpack.c.l.s4 1983009808
        %v1897 = vunpack.c.0.s8 %v1896
        %v1898 = vlaneseq
        %v1899 = vshrl.u32 %v1898, 7
        %v1900 = vsub.s32 %v1897, %v1899
        %v1901 = vrot.slane %v1894, %v1900
        %v1902 = vcombine.low %v1806, %v1813
        %v1904 = vunpack.c.l.s4 1983009808
        %v1905 = vunpack.c.0.s8 %v1904
        %v1906 = vlaneseq
        %v1907 = vshrl.u32 %v1906, 7
        %v1908 = vsub.s32 %v1905, %v1907
        %v1909 = vrot.slane %v1902, %v1908
        %v1910 = vcombine.low %v1816, %v1817
        %v1912 = vunpack.c.l.s4 1983009808
        %v1913 = vunpack.c.0.s8 %v1912
        %v1914 = vlaneseq
        %v1915 = vshrl.u32 %v1914, 7
        %v1916 = vsub.s32 %v1913, %v1915
        %v1917 = vrot.slane %v1910, %v1916
        %v1918 = vcombine.low %v1893, %v1901
        %v1919 = vcombine.high %v1893, %v1901
        %v1921 = vunpack.c.l.s4 1934713408
        %v1922 = vunpack.c.0.s8 %v1921
        %v1923 = vlaneseq
        %v1924 = vshrl.u32 %v1923, 7
        %v1925 = vsub.s32 %v1922, %v1924
        %v1926 = vrot.slane %v1918, %v1925
        %v1928 = vunpack.c.l.s4 1934713408
        %v1929 = vunpack.c.0.s8 %v1928
        %v1930 = vlaneseq
        %v1931 = vshrl.u32 %v1930, 7
        %v1932 = vsub.s32 %v1929, %v1931
        %v1933 = vrot.slane %v1919, %v1932
        %v1934 = vcombine.low %v1909, %v1917
        %v1935 = vcombine.high %v1909, %v1917
        %v1937 = vunpack.c.l.s4 1934713408
        %v1938 = vunpack.c.0.s8 %v1937
        %v1939 = vlaneseq
        %v1940 = vshrl.u32 %v1939, 7
        %v1941 = vsub.s32 %v1938, %v1940
        %v1942 = vrot.slane %v1934, %v1941
        %v1944 = vunpack.c.l.s4 1934713408
        %v1945 = vunpack.c.0.s8 %v1944
        %v1946 = vlaneseq
        %v1947 = vshrl.u32 %v1946, 7
        %v1948 = vsub.s32 %v1945, %v1947
        %v1949 = vrot.slane %v1935, %v1948
        %v1950 = vcombine.low %v1926, %v1942
        %v1951 = vcombine.high %v1926, %v1942
        %v1952 = vcombine.low %v1933, %v1949
        %v1953 = vcombine.high %v1933, %v1949
        %v1954 = vcombine.low %v1858, %v1865
        %v1956 = vunpack.c.l.s4 1983009808
        %v1957 = vunpack.c.0.s8 %v1956
        %v1958 = vlaneseq
        %v1959 = vshrl.u32 %v1958, 7
        %v1960 = vsub.s32 %v1957, %v1959
        %v1961 = vrot.slane %v1954, %v1960
        %v1962 = vcombine.low %v1882, %v1883
        %v1964 = vunpack.c.l.s4 1983009808
        %v1965 = vunpack.c.0.s8 %v1964
        %v1966 = vlaneseq
        %v1967 = vshrl.u32 %v1966, 7
        %v1968 = vsub.s32 %v1965, %v1967
        %v1969 = vrot.slane %v1962, %v1968
        %v1970 = vcombine.low %v1874, %v1881
        %v1972 = vunpack.c.l.s4 1983009808
        %v1973 = vunpack.c.0.s8 %v1972
        %v1974 = vlaneseq
        %v1975 = vshrl.u32 %v1974, 7
        %v1976 = vsub.s32 %v1973, %v1975
        %v1977 = vrot.slane %v1970, %v1976
        %v1978 = vcombine.low %v1884, %v1885
        %v1980 = vunpack.c.l.s4 1983009808
        %v1981 = vunpack.c.0.s8 %v1980
        %v1982 = vlaneseq
        %v1983 = vshrl.u32 %v1982, 7
        %v1984 = vsub.s32 %v1981, %v1983
        %v1985 = vrot.slane %v1978, %v1984
        %v1986 = vcombine.low %v1961, %v1969
        %v1987 = vcombine.high %v1961, %v1969
        %v1989 = vunpack.c.l.s4 1934713408
        %v1990 = vunpack.c.0.s8 %v1989
        %v1991 = vlaneseq
        %v1992 = vshrl.u32 %v1991, 7
        %v1993 = vsub.s32 %v1990, %v1992
        %v1994 = vrot.slane %v1986, %v1993
        %v1996 = vunpack.c.l.s4 1934713408
        %v1997 = vunpack.c.0.s8 %v1996
        %v1998 = vlaneseq
        %v1999 = vshrl.u32 %v1998, 7
        %v2000 = vsub.s32 %v1997, %v1999
        %v2001 = vrot.slane %v1987, %v2000
        %v2002 = vcombine.low %v1977, %v1985
        %v2003 = vcombine.high %v1977, %v1985
        %v2005 = vunpack.c.l.s4 1934713408
        %v2006 = vunpack.c.0.s8 %v2005
        %v2007 = vlaneseq
        %v2008 = vshrl.u32 %v2007, 7
        %v2009 = vsub.s32 %v2006, %v2008
        %v2010 = vrot.slane %v2002, %v2009
        %v2012 = vunpack.c.l.s4 1934713408
        %v2013 = vunpack.c.0.s8 %v2012
        %v2014 = vlaneseq
        %v2015 = vshrl.u32 %v2014, 7
        %v2016 = vsub.s32 %v2013, %v2015
        %v2017 = vrot.slane %v2003, %v2016
        %v2018 = vcombine.low %v1994, %v2010
        %v2019 = vcombine.high %v1994, %v2010
        %v2020 = vcombine.low %v2001, %v2017
        %v2021 = vcombine.high %v2001, %v2017
        %2024 = vrot.lane.b32.xlu0 %v1951, 8
        %v2025 = vpop.permute.xlu0 %2024
        %2026 = vrot.lane.b32.xlu0 %v2019, 8
        %v2027 = vpop.permute.xlu0 %2026
        %2032 = vrot.lane.b32.xlu0 %v1952, 16
        %v2033 = vpop.permute.xlu0 %2032
        %2034 = vrot.lane.b32.xlu0 %v2020, 16
        %v2035 = vpop.permute.xlu0 %2034
        %2040 = vrot.lane.b32.xlu0 %v1953, 24
        %v2041 = vpop.permute.xlu0 %2040
        %2042 = vrot.lane.b32.xlu0 %v2021, 24
        %v2043 = vpop.permute.xlu0 %2042
        %v2046 = vsel %vm1182, %v1950, %v2025
        %v2047 = vsel %vm1182, %v2018, %v2027
        %v2048 = vsel %vm1371, %v2046, %v2033
        %v2049 = vsel %vm1371, %v2047, %v2035
        %vm2050 = vcmask 195584
        %v2051 = vsel %vm2050, %v2048, %v2041
        %v2052 = vsel %vm2050, %v2049, %v2043
        %v2053 = vpack.c.bf16 %v2052, %v2051
        %v2054 = vld [vmem:[#allocation7] sm:$0xf]
        %v2055 = vld [vmem:[#allocation7 + $0x4] sm:$0xf]
        %v2056 = vld [vmem:[#allocation7 + $0x8] sm:$0xf]
        %v2057 = vld [vmem:[#allocation7 + $0xc] sm:$0xf]
        %v2058 = vld [vmem:[%s5] sm:$0x1]
        %v2060 = vlaneseq
        %v2061 = vshrl.u32 %v2060, 7
        %v2062 = vsub.s32 0, %v2061
        %v2063 = vrot.slane %v2058, %v2062
        %v2069 = vunpack.c.l.b16 %v2054
        %v2070 = vunpack.c.l.b16 %v2055
        %v2071 = vunpack.c.l.b16 %v2056
        %v2072 = vunpack.c.l.b16 %v2057
        %v2073 = vpack.c.b16 %v2070, %v2069
        %v2074 = vpack.c.b16 %v2072, %v2071
        %v2078 = vsel %vm323, %v2053, 0
        %2080 = vmatprep.subr.bf16.mxu0 0
        %2081 = vmatpush1.bf16.msra.mxu0 %v2073
        %2082 = vmatprep.subr.bf16.mxu0 0
        %2083 = vmatpush1.bf16.msra.mxu0 %v2074
        %2084 = vmatprep.subr.bf16.mxu0 0
        %2085 = vmatpush1.bf16.msra.mxu0 0
        %2086 = vmatprep.subr.bf16.mxu0 0
        %2087 = vmatpush1.bf16.msra.mxu0 0
        %2088 = vmatprep.subr.bf16.mxu0 0
        %2089 = vmatpush1.bf16.msra.mxu0 0
        %2090 = vmatprep.subr.bf16.mxu0 0
        %2091 = vmatpush1.bf16.msra.mxu0 0
        %2092 = vmatprep.subr.bf16.mxu0 0
        %2093 = vmatpush1.bf16.msra.mxu0 0
        %2094 = vmatprep.subr.bf16.mxu0 0
        %2095 = vmatpush1.bf16.msra.mxu0 0
        %2096 = vmatprep.subr.bf16.mxu0 0
        %2097 = vmatpush1.bf16.msra.mxu0 0
        %2098 = vmatprep.subr.bf16.mxu0 0
        %2099 = vmatpush1.bf16.msra.mxu0 0
        %2100 = vmatprep.subr.bf16.mxu0 0
        %2101 = vmatpush1.bf16.msra.mxu0 0
        %2102 = vmatprep.subr.bf16.mxu0 0
        %2103 = vmatpush1.bf16.msra.mxu0 0
        %2104 = vmatprep.subr.bf16.mxu0 0
        %2105 = vmatpush1.bf16.msra.mxu0 0
        %2106 = vmatprep.subr.bf16.mxu0 0
        %2107 = vmatpush1.bf16.msra.mxu0 0
        %2108 = vmatprep.subr.bf16.mxu0 0
        %2109 = vmatpush1.bf16.msra.mxu0 0
        %2110 = vmatprep.subr.bf16.mxu0 0
        %2111 = vmatpush1.bf16.msra.mxu0 0
        %2112 = vmatprep.mubr.bf16.mxu0 0
        %2113 = vmatmul.mubr.bf16.gmra.mrb[0].mxu0 %v2078
        %v2114 = vpop.f32.mrb[0].mxu0
        %v2115 = vadd.f32 %v2063, %v2114
        %v2116 = vpop.f32.mrb[0].mxu0
        %v2117 = vpop.f32.mrb[0].mxu0
        %v2118 = vadd.f32 %v2063, %v2117
        %v2119 = vpop.f32.mrb[0].mxu0
        %2120 = vdwg.mxu0
        %v2121 = vpack.c.bf16 %v2118, %v2115
        %v2123 = vunpack.c.l.b16 %v2121
        %v2124 = vunpack.c.h.b16 %v2121
        %v2125 = vpack.c.b16 %v2123, %v2123
        %v2126 = vpack.c.b16 %v2124, %v2124
        %vm2129 = vcmask 257024
        %2130 = vst.msk [vmem:[%s298] sm:$0xf] %vm2129, %v2125
        %2131 = vst.msk [vmem:[%s298 + $0x4] sm:$0xf] %vm2129, %v2126
        %s2132 = sand.u32 %s163, 1
        %s2133 = scalar_lea.sflag [#allocation4], %s2132
        %s2134 = sand.u32 %s163, 1
        %s2135 = smul.addr %s2134, 8
        %s2136 = scalar_lea.vmem [#allocation8], %s2135
        // Predicated region
        $region57: #{tpu_custom_call.1} parent=43 // pred_check
          %p2137 = pneg %p173
        $region58: #{tpu_custom_call.1} parent=43 // pred_check_branch
          %2139 = sbr.rel (%p2137) target = $region60
        $region59: #{tpu_custom_call.1} parent=43 // pred_region
          %s2141 = ssub.s32 128, 128
          %2142 = vsyncadd %s2133, %s2141
          %s2143 = smul.addr %s24, 2
          %s2144 = smul.addr %s2143, 64
          %s2145 = scalar_lea.hbm %s6, %s2144
          %s2146 = sshll.u32 %s2136, 4
          %s2147 = int_to_ptr.vmem [resolvable:$true] %s2146
          %2152 = dma.vmem_to_hbm [thread:$0]  %s2147, 128, %s2145, %s2133, 64, 64, 4
        $region60: #{tpu_custom_call.1} parent=43 // pred_fallthru
          _
      $region44: #{tpu_custom_call.1} parent=5 // pred_fallthru
        _
      %p2153 = scmp.le.s32.totalorder 2, %s19
      // Predicated region
      $region61: #{tpu_custom_call.1} parent=5 // pred_check
        %p2154 = pneg %p2153
      $region62: #{tpu_custom_call.1} parent=5 // pred_check_branch
        %2156 = sbr.rel (%p2154) target = $region64
      $region63: #{tpu_custom_call.1} parent=5 // pred_region
        %s2157 = ssub.s32 %s19, 2
        // Predicated region
        $region65: #{tpu_custom_call.1} parent=63 // pred_check
          %p2158 = pneg %p179
        $region66: #{tpu_custom_call.1} parent=63 // pred_check_branch
          %2160 = sbr.rel (%p2158) target = $region68
        $region67: #{tpu_custom_call.1} parent=63 // pred_region
          %s2161 = sand.u32 %s164, 1
          %s2162 = scalar_lea.sflag [#allocation4], %s2161
          %s2163 = sand.u32 %s164, 1
          %s2164 = smul.addr %s2163, 8
          %s2165 = scalar_lea.vmem [#allocation8], %s2164
          %2166 = dma.done %s2162, 128
        $region68: #{tpu_custom_call.1} parent=63 // pred_fallthru
          _
      $region64: #{tpu_custom_call.1} parent=5 // pred_fallthru
        _
    $region6: #{tpu_custom_call.1} parent=1 // loop_footer
      %s23 = sadd.s32 1, %s19
    $region7: #{tpu_custom_call.1} parent=1 // loop_footer_branch
      %18 = sbr.rel target = $region3
    $region8: #{tpu_custom_call.1} parent=1 // loop_exit
      _
    %2167 = vsyncpa [#allocation3], 1
    %s2168 = scalar_lea.sflag [#allocation3], 1
    %2169 = vsyncpa %s2168, 1
    %2170 = vsyncpa [#allocation6], 1
    %2171 = vsyncpa [#allocation4], 1
    %s2172 = scalar_lea.sflag [#allocation4], 1
    %2173 = vsyncpa %s2172, 1

// kernel: tpu_custom_call.1
$region0: #{tpu_custom_call.1}
  #allocation0 [shape = 'u32[]', space=smem, size = 0x4, offset = 0x4, fixed_abs, tag = 'smem constant byte address 0x4 - core index']
  #allocation1 [shape = 'u32[144,128]{1,0:T(1,128)}', space=vmem, size = 0x12000, scoped, tag = 'internal scratch']
  %s0 = inlined_call_operand.hbm [shape: bf16[2,16,32], index: 0, kind: input, shape index: {}]
  %s1 = inlined_call_operand.hbm [shape: f32[4,16,16], index: 1, kind: input, shape index: {}]
  %s2 = inlined_call_operand.vmem [shape: f32[4,1], index: 2, kind: input, shape index: {}]
  %s3 = inlined_call_operand.vmem [shape: bf16[32,96], index: 3, kind: input, shape index: {}]
  %s4 = inlined_call_operand.hbm [shape: bf16[32,32], index: 4, kind: input, shape index: {}]
  %s5 = inlined_call_operand.vmem [shape: f32[1,32], index: 5, kind: input, shape index: {}]
  %s6 = inlined_call_operand.hbm [shape: bf16[2,16,32], index: 6, kind: output, shape index: {}]
  %s7 = sld [smem:[#allocation0]]
  $region69: #{tpu_custom_call.1} parent=0
    _
  %s9 = ssub.s32 1, %s7
  %s10 = scalar_select 0, %s9, %s7
  $region1: #{tpu_custom_call.1} parent=0
    #allocation2 [shape = 'u8[8192]{0}', space=vmem, size = 0x2000, scoped, tag = 'input window, operand 0']
    #allocation3 [shape = 's32[2]{0}', space=sflag, size = 0x8, scoped, tag = 'scoped memory for tpu_custom_call.1']
    #allocation4 [shape = 's32[2]{0}', space=sflag, size = 0x8, scoped, tag = 'scoped memory for tpu_custom_call.1']
    #allocation5 [shape = 'u8[32768]{0}', space=vmem, size = 0x8000, scoped, tag = 'input window, operand 1, single buffered']
    #allocation6 [shape = 's32[1]{0}', space=sflag, size = 0x4, scoped, tag = 'scoped memory for tpu_custom_call.1']
    #allocation7 [shape = 'u8[8192]{0}', space=vmem, size = 0x2000, scoped, tag = 'input window, operand 4, single buffered']
    #allocation8 [shape = 'u8[8192]{0}', space=vmem, size = 0x2000, scoped, tag = 'output window, operand 0']
    %11 = vsyncpa [#allocation3], 0
    %s12 = scalar_lea.sflag [#allocation3], 1
    %13 = vsyncpa %s12, 0
    %14 = vsyncpa [#allocation6], 0
    %15 = vsyncpa [#allocation4], 0
    %s16 = scalar_lea.sflag [#allocation4], 1
    %17 = vsyncpa %s16, 0
    loop: start=0, step=1, limit=4
    $region2: #{tpu_custom_call.1} parent=1 // loop_pre_header
      _
    $region3: #{tpu_custom_call.1} parent=1 // loop_header
      %s19 = sphi 0, %s23
      %p20 = scmp.ge.s32.totalorder %s19, 4
      %s29 = sphi 0, %s31
      %s32 = sphi 0, %s29
      %s33 = sphi 0, %s32
      %s49 = sphi 0, %s33
      %s53 = sphi 0, %s53
      %s55 = sphi 0, %s53
      %s56 = sphi 0, %s55
      %s70 = sphi 0, %s56
      %s74 = sphi 0, %s74
      %s76 = sphi 0, %s74
      %s77 = sphi 0, %s76
      %s91 = sphi 0, %s77
      %s95 = sphi 0, %s95
      %s97 = sphi 0, %s95
      %s98 = sphi 0, %s97
      %s112 = sphi 0, %s98
      %s116 = sphi 0, %s116
      %s118 = sphi 0, %s116
      %s119 = sphi 0, %s118
      %s133 = sphi 0, %s119
      %s137 = sphi 0, %s137
      %s139 = sphi 0, %s137
      %s140 = sphi 0, %s139
      %s154 = sphi 0, %s140
      %s160 = sphi 0, %s162
      %s163 = sphi 0, %s160
      %s164 = sphi 0, %s163
      %s180 = sphi 0, %s164
    $region4: #{tpu_custom_call.1} parent=1 // loop_header_branch
      %22 = sbr.rel (%p20) target = $region8
    $region5: #{tpu_custom_call.1} parent=1 // loop_body
      %s24 = ssub.s32 %s19, 1
      %s25 = ssub.s32 %s19, 2
      %s26 = sadd.s32 %s19, 1
      %s27 = ssub.s32 %s19, %s26
      %p28 = scmp.eq.s32.totalorder %s27, 0
      %s30 = sadd.s32 %s29, 1
      %s31 = scalar_select %p28, %s29, %s30
      %p34 = pneg %p28
      %p35 = scmp.eq.s32.totalorder %s19, 1
      %p36 = por %p34, %p35
      %p37 = scmp.ne.s32.totalorder %s29, %s32
      %p38 = scmp.eq.s32.totalorder %s19, 0
      %p39 = por %p37, %p38
      %p40 = scmp.ne.s32.totalorder %s29, %s32
      %p41 = scmp.eq.s32.totalorder %s24, 1
      %p42 = por %p40, %p41
      %p43 = scmp.ne.s32.totalorder %s32, %s33
      %p44 = scmp.eq.s32.totalorder %s24, 0
      %p45 = por %p43, %p44
      %p46 = scmp.ne.s32.totalorder %s32, %s33
      %p47 = scmp.eq.s32.totalorder %s25, 1
      %p48 = por %p46, %p47
      %p50 = scmp.ne.s32.totalorder %s33, %s49
      %p51 = scmp.eq.s32.totalorder %s25, 0
      %p52 = por %p50, %p51
      %s54 = sadd.s32 %s53, 1
      %p57 = scmp.eq.s32.totalorder %s19, 1
      %p58 = scmp.ne.s32.totalorder %s53, %s55
      %p59 = scmp.eq.s32.totalorder %s19, 0
      %p60 = por %p58, %p59
      %p61 = scmp.ne.s32.totalorder %s53, %s55
      %p62 = scmp.eq.s32.totalorder %s24, 1
      %p63 = por %p61, %p62
      %p64 = scmp.ne.s32.totalorder %s55, %s56
      %p65 = scmp.eq.s32.totalorder %s24, 0
      %p66 = por %p64, %p65
      %p67 = scmp.ne.s32.totalorder %s55, %s56
      %p68 = scmp.eq.s32.totalorder %s25, 1
      %p69 = por %p67, %p68
      %p71 = scmp.ne.s32.totalorder %s56, %s70
      %p72 = scmp.eq.s32.totalorder %s25, 0
      %p73 = por %p71, %p72
      %s75 = sadd.s32 %s74, 1
      %p78 = scmp.eq.s32.totalorder %s19, 1
      %p79 = scmp.ne.s32.totalorder %s74, %s76
      %p80 = scmp.eq.s32.totalorder %s19, 0
      %p81 = por %p79, %p80
      %p82 = scmp.ne.s32.totalorder %s74, %s76
      %p83 = scmp.eq.s32.totalorder %s24, 1
      %p84 = por %p82, %p83
      %p85 = scmp.ne.s32.totalorder %s76, %s77
      %p86 = scmp.eq.s32.totalorder %s24, 0
      %p87 = por %p85, %p86
      %p88 = scmp.ne.s32.totalorder %s76, %s77
      %p89 = scmp.eq.s32.totalorder %s25, 1
      %p90 = por %p88, %p89
      %p92 = scmp.ne.s32.totalorder %s77, %s91
      %p93 = scmp.eq.s32.totalorder %s25, 0
      %p94 = por %p92, %p93
      %s96 = sadd.s32 %s95, 1
      %p99 = scmp.eq.s32.totalorder %s19, 1
      %p100 = scmp.ne.s32.totalorder %s95, %s97
      %p101 = scmp.eq.s32.totalorder %s19, 0
      %p102 = por %p100, %p101
      %p103 = scmp.ne.s32.totalorder %s95, %s97
      %p104 = scmp.eq.s32.totalorder %s24, 1
      %p105 = por %p103, %p104
      %p106 = scmp.ne.s32.totalorder %s97, %s98
      %p107 = scmp.eq.s32.totalorder %s24, 0
      %p108 = por %p106, %p107
      %p109 = scmp.ne.s32.totalorder %s97, %s98
      %p110 = scmp.eq.s32.totalorder %s25, 1
      %p111 = por %p109, %p110
      %p113 = scmp.ne.s32.totalorder %s98, %s112
      %p114 = scmp.eq.s32.totalorder %s25, 0
      %p115 = por %p113, %p114
      %s117 = sadd.s32 %s116, 1
      %p120 = scmp.eq.s32.totalorder %s19, 1
      %p121 = scmp.ne.s32.totalorder %s116, %s118
      %p122 = scmp.eq.s32.totalorder %s19, 0
      %p123 = por %p121, %p122
      %p124 = scmp.ne.s32.totalorder %s116, %s118
      %p125 = scmp.eq.s32.totalorder %s24, 1
      %p126 = por %p124, %p125
      %p127 = scmp.ne.s32.totalorder %s118, %s119
      %p128 = scmp.eq.s32.totalorder %s24, 0
      %p129 = por %p127, %p128
      %p130 = scmp.ne.s32.totalorder %s118, %s119
      %p131 = scmp.eq.s32.totalorder %s25, 1
      %p132 = por %p130, %p131
      %p134 = scmp.ne.s32.totalorder %s119, %s133
      %p135 = scmp.eq.s32.totalorder %s25, 0
      %p136 = por %p134, %p135
      %s138 = sadd.s32 %s137, 1
      %p141 = scmp.eq.s32.totalorder %s19, 1
      %p142 = scmp.ne.s32.totalorder %s137, %s139
      %p143 = scmp.eq.s32.totalorder %s19, 0
      %p144 = por %p142, %p143
      %p145 = scmp.ne.s32.totalorder %s137, %s139
      %p146 = scmp.eq.s32.totalorder %s24, 1
      %p147 = por %p145, %p146
      %p148 = scmp.ne.s32.totalorder %s139, %s140
      %p149 = scmp.eq.s32.totalorder %s24, 0
      %p150 = por %p148, %p149
      %p151 = scmp.ne.s32.totalorder %s139, %s140
      %p152 = scmp.eq.s32.totalorder %s25, 1
      %p153 = por %p151, %p152
      %p155 = scmp.ne.s32.totalorder %s140, %s154
      %p156 = scmp.eq.s32.totalorder %s25, 0
      %p157 = por %p155, %p156
      %s158 = ssub.s32 %s19, %s26
      %p159 = scmp.eq.s32.totalorder %s158, 0
      %s161 = sadd.s32 %s160, 1
      %s162 = scalar_select %p159, %s160, %s161
      %p165 = pneg %p159
      %p166 = scmp.eq.s32.totalorder %s19, 1
      %p167 = por %p165, %p166
      %p168 = scmp.ne.s32.totalorder %s160, %s163
      %p169 = scmp.eq.s32.totalorder %s19, 0
      %p170 = por %p168, %p169
      %p171 = scmp.ne.s32.totalorder %s160, %s163
      %p172 = scmp.eq.s32.totalorder %s24, 1
      %p173 = por %p171, %p172
      %p174 = scmp.ne.s32.totalorder %s163, %s164
      %p175 = scmp.eq.s32.totalorder %s24, 0
      %p176 = por %p174, %p175
      %p177 = scmp.ne.s32.totalorder %s163, %s164
      %p178 = scmp.eq.s32.totalorder %s25, 1
      %p179 = por %p177, %p178
      %p181 = scmp.ne.s32.totalorder %s164, %s180
      %p182 = scmp.eq.s32.totalorder %s25, 0
      %p183 = por %p181, %p182
      %p184 = scmp.le.s32.totalorder 1, %s19
      %p185 = scmp.lt.s32.totalorder %s19, 3
      %p186 = pnand %p184, %p185
      %p187 = pneg %p186
      // Predicated region
      $region9: #{tpu_custom_call.1} parent=5 // pred_check
        _
      $region10: #{tpu_custom_call.1} parent=5 // pred_check_branch
        %189 = sbr.rel (%p186) target = $region12
      $region11: #{tpu_custom_call.1} parent=5 // pred_region
        %s190 = ssub.s32 %s19, 1
        // Predicated region
        $region13: #{tpu_custom_call.1} parent=11 // pred_check
          %p191 = pneg %p66
        $region14: #{tpu_custom_call.1} parent=11 // pred_check_branch
          %193 = sbr.rel (%p191) target = $region16
        $region15: #{tpu_custom_call.1} parent=11 // pred_region
          %s195 = ssub.s32 1024, 1024
          %196 = vsyncadd [#allocation6], %s195
          %s197 = sshll.u32 [#allocation5], 4
          %s198 = int_to_ptr.vmem [resolvable:$true] %s197
          %203 = dma.hbm_to_vmem [thread:$0]  %s1, 1024, %s198, [#allocation6], 128, 128, 8
        $region16: #{tpu_custom_call.1} parent=11 // pred_fallthru
          _
        // Predicated region
        $region17: #{tpu_custom_call.1} parent=11 // pred_check
          %p204 = pneg %p87
        $region18: #{tpu_custom_call.1} parent=11 // pred_check_branch
          %206 = sbr.rel (%p204) target = $region20
        $region19: #{tpu_custom_call.1} parent=11 // pred_region
          _
        $region20: #{tpu_custom_call.1} parent=11 // pred_fallthru
          _
        // Predicated region
        $region21: #{tpu_custom_call.1} parent=11 // pred_check
          %p207 = pneg %p108
        $region22: #{tpu_custom_call.1} parent=11 // pred_check_branch
          %209 = sbr.rel (%p207) target = $region24
        $region23: #{tpu_custom_call.1} parent=11 // pred_region
          _
        $region24: #{tpu_custom_call.1} parent=11 // pred_fallthru
          _
        // Predicated region
        $region25: #{tpu_custom_call.1} parent=11 // pred_check
          %p210 = pneg %p129
        $region26: #{tpu_custom_call.1} parent=11 // pred_check_branch
          %212 = sbr.rel (%p210) target = $region28
        $region27: #{tpu_custom_call.1} parent=11 // pred_region
          %s214 = ssub.s32 256, 256
          %215 = vsyncadd [#allocation6], %s214
          %s216 = sshll.u32 [#allocation7], 4
          %s217 = int_to_ptr.vmem [resolvable:$true] %s216
          %222 = dma.hbm_to_vmem [thread:$0]  %s4, 256, %s217, [#allocation6], 64, 64, 4
        $region28: #{tpu_custom_call.1} parent=11 // pred_fallthru
          _
        // Predicated region
        $region29: #{tpu_custom_call.1} parent=11 // pred_check
          %p223 = pneg %p150
        $region30: #{tpu_custom_call.1} parent=11 // pred_check_branch
          %225 = sbr.rel (%p223) target = $region32
        $region31: #{tpu_custom_call.1} parent=11 // pred_region
          _
        $region32: #{tpu_custom_call.1} parent=11 // pred_fallthru
          _
      $region12: #{tpu_custom_call.1} parent=5 // pred_fallthru
        _
      %p226 = scmp.lt.s32.totalorder %s19, 2
      // Predicated region
      $region33: #{tpu_custom_call.1} parent=5 // pred_check
        %p227 = pneg %p226
      $region34: #{tpu_custom_call.1} parent=5 // pred_check_branch
        %229 = sbr.rel (%p227) target = $region36
      $region35: #{tpu_custom_call.1} parent=5 // pred_region
        // Predicated region
        $region37: #{tpu_custom_call.1} parent=35 // pred_check
          %p230 = pneg %p39
        $region38: #{tpu_custom_call.1} parent=35 // pred_check_branch
          %232 = sbr.rel (%p230) target = $region40
        $region39: #{tpu_custom_call.1} parent=35 // pred_region
          %s233 = sand.u32 %s29, 1
          %s234 = scalar_lea.sflag [#allocation3], %s233
          %s235 = sand.u32 %s29, 1
          %s236 = smul.addr %s235, 8
          %s237 = scalar_lea.vmem [#allocation2], %s236
          %s239 = ssub.s32 128, 128
          %240 = vsyncadd %s234, %s239
          %s241 = smul.addr %s19, 2
          %s242 = smul.addr %s241, 64
          %s243 = scalar_lea.hbm %s0, %s242
          %s244 = sshll.u32 %s237, 4
          %s245 = int_to_ptr.vmem [resolvable:$true] %s244
          %250 = dma.hbm_to_vmem [thread:$0]  %s243, 128, %s245, %s234, 64, 64, 4
        $region40: #{tpu_custom_call.1} parent=35 // pred_fallthru
          _
      $region36: #{tpu_custom_call.1} parent=5 // pred_fallthru
        _
      %p251 = scmp.le.s32.totalorder 1, %s19
      %p252 = scmp.lt.s32.totalorder %s19, 3
      %p253 = pnand %p251, %p252
      %p254 = pneg %p253
      // Predicated region
      $region41: #{tpu_custom_call.1} parent=5 // pred_check
        _
      $region42: #{tpu_custom_call.1} parent=5 // pred_check_branch
        %256 = sbr.rel (%p253) target = $region44
      $region43: #{tpu_custom_call.1} parent=5 // pred_region
        %s257 = ssub.s32 %s19, 1
        %s258 = sand.u32 %s32, 1
        %s259 = scalar_lea.sflag [#allocation3], %s258
        %s260 = sand.u32 %s32, 1
        %s261 = smul.addr %s260, 8
        %s262 = scalar_lea.vmem [#allocation2], %s261
        // Predicated region
        $region45: #{tpu_custom_call.1} parent=43 // pred_check
          %p263 = pneg %p45
        $region46: #{tpu_custom_call.1} parent=43 // pred_check_branch
          %265 = sbr.rel (%p263) target = $region48
        $region47: #{tpu_custom_call.1} parent=43 // pred_region
          %266 = dma.done %s259, 128
        $region48: #{tpu_custom_call.1} parent=43 // pred_fallthru
          _
        // Predicated region
        $region49: #{tpu_custom_call.1} parent=43 // pred_check
          %p267 = pneg %p66
        $region50: #{tpu_custom_call.1} parent=43 // pred_check_branch
          %269 = sbr.rel (%p267) target = $region52
        $region51: #{tpu_custom_call.1} parent=43 // pred_region
          %270 = dma.done [#allocation6], 1024
        $region52: #{tpu_custom_call.1} parent=43 // pred_fallthru
          _
        // Predicated region
        $region53: #{tpu_custom_call.1} parent=43 // pred_check
          %p271 = pneg %p129
        $region54: #{tpu_custom_call.1} parent=43 // pred_check_branch
          %273 = sbr.rel (%p271) target = $region56
        $region55: #{tpu_custom_call.1} parent=43 // pred_region
          %274 = dma.done [#allocation6], 256
        $region56: #{tpu_custom_call.1} parent=43 // pred_fallthru
          _
        %s275 = sand.u32 %s32, 1
        %s276 = scalar_lea.sflag [#allocation3], %s275
        %s277 = sand.u32 %s32, 1
        %s278 = smul.addr %s277, 8
        %s279 = scalar_lea.vmem [#allocation2], %s278
        %p280 = pneg %p45
        %p281 = pneg %p42
        %p282 = pneg %p66
        %p283 = pneg %p63
        %p284 = pneg %p87
        %p285 = pneg %p84
        %p286 = pneg %p108
        %p287 = pneg %p105
        %p288 = pneg %p129
        %p289 = pneg %p126
        %p290 = pneg %p150
        %p291 = pneg %p147
        %p292 = pneg %p176
        %p293 = pneg %p173
        %s294 = sand.u32 %s163, 1
        %s295 = scalar_lea.sflag [#allocation4], %s294
        %s296 = sand.u32 %s163, 1
        %s297 = smul.addr %s296, 8
        %s298 = scalar_lea.vmem [#allocation8], %s297
        %v300 = vld [vmem:[%s262] sm:$0xf]
        %v301 = vld [vmem:[%s262 + $0x4] sm:$0xf]
        %v302 = vld [vmem:[%s3] sm:$0xf]
        %v303 = vld [vmem:[%s3 + $0x4] sm:$0xf]
        %v304 = vld [vmem:[%s3 + $0x8] sm:$0xf]
        %v305 = vld [vmem:[%s3 + $0xc] sm:$0xf]
        %v308 = vunpack.c.l.b16 %v300
        %v309 = vunpack.c.l.b16 %v301
        %v310 = vpack.c.b16 %v309, %v308
        %v315 = vunpack.c.l.b16 %v302
        %v316 = vunpack.c.l.b16 %v303
        %v317 = vunpack.c.l.b16 %v304
        %v318 = vunpack.c.l.b16 %v305
        %v319 = vpack.c.b16 %v316, %v315
        %v320 = vpack.c.b16 %v318, %v317
        %vm323 = vcmask 261120
        %v325 = vsel %vm323, %v310, 0
        %327 = vmatprep.subr.bf16.mxu0 0
        %328 = vmatpush1.bf16.msra.mxu0 %v319
        %329 = vmatprep.subr.bf16.mxu0 0
        %330 = vmatpush1.bf16.msra.mxu0 %v320
        %331 = vmatprep.subr.bf16.mxu0 0
        %332 = vmatpush1.bf16.msra.mxu0 0
        %333 = vmatprep.subr.bf16.mxu0 0
        %334 = vmatpush1.bf16.msra.mxu0 0
        %335 = vmatprep.subr.bf16.mxu0 0
        %336 = vmatpush1.bf16.msra.mxu0 0
        %337 = vmatprep.subr.bf16.mxu0 0
        %338 = vmatpush1.bf16.msra.mxu0 0
        %339 = vmatprep.subr.bf16.mxu0 0
        %340 = vmatpush1.bf16.msra.mxu0 0
        %341 = vmatprep.subr.bf16.mxu0 0
        %342 = vmatpush1.bf16.msra.mxu0 0
        %343 = vmatprep.subr.bf16.mxu0 0
        %344 = vmatpush1.bf16.msra.mxu0 0
        %345 = vmatprep.subr.bf16.mxu0 0
        %346 = vmatpush1.bf16.msra.mxu0 0
        %347 = vmatprep.subr.bf16.mxu0 0
        %348 = vmatpush1.bf16.msra.mxu0 0
        %349 = vmatprep.subr.bf16.mxu0 0
        %350 = vmatpush1.bf16.msra.mxu0 0
        %351 = vmatprep.subr.bf16.mxu0 0
        %352 = vmatpush1.bf16.msra.mxu0 0
        %353 = vmatprep.subr.bf16.mxu0 0
        %354 = vmatpush1.bf16.msra.mxu0 0
        %355 = vmatprep.subr.bf16.mxu0 0
        %356 = vmatpush1.bf16.msra.mxu0 0
        %357 = vmatprep.subr.bf16.mxu0 0
        %358 = vmatpush1.bf16.msra.mxu0 0
        %359 = vmatprep.mubr.bf16.mxu0 0
        %360 = vmatmul.mubr.bf16.gmra.mrb[0].mxu0 %v325
        %v361 = vpop.f32.mrb[0].mxu0
        %v362 = vadd.f32 0.0, %v361
        %v363 = vpop.f32.mrb[0].mxu0
        %v364 = vpop.f32.mrb[0].mxu0
        %v365 = vadd.f32 0.0, %v364
        %v366 = vpop.f32.mrb[0].mxu0
        %367 = vdwg.mxu0
        %v368 = vpack.c.bf16 %v365, %v362
        %370 = vrot.lane.b32.xlu0 %v368, 120
        %v371 = vpop.permute.xlu0 %370
        %372 = vrot.lane.b32.xlu0 %v368, 112
        %v373 = vpop.permute.xlu0 %372
        %374 = vrot.lane.b32.xlu0 %v368, 104
        %v375 = vpop.permute.xlu0 %374
        %v378 = vpack.i.b16 %v371, %v368
        %v380 = vshrl.u32 %v368, 16
        %v381 = vshrl.u32 %v371, 16
        %v382 = vpack.i.b16 %v381, %v380
        %v386 = vpack.i.b16 %v375, %v373
        %v388 = vshrl.u32 %v373, 16
        %v389 = vshrl.u32 %v375, 16
        %v390 = vpack.i.b16 %v389, %v388
        %v393 = vpack.i.b16 0, 0
        %v395 = vshrl.u32 0, 16
        %v396 = vpack.i.b16 %v395, %v395
        %v398 = vcombine.high %v378, %v393
        %v400 = vunpack.c.l.s4 1983009808
        %v401 = vunpack.c.0.s8 %v400
        %v402 = vlaneseq
        %v403 = vshrl.u32 %v402, 7
        %v404 = vsub.s32 %v401, %v403
        %v405 = vrot.slane %v378, %v404
        %v407 = vunpack.c.l.s4 1983009808
        %v408 = vunpack.c.0.s8 %v407
        %v409 = vlaneseq
        %v410 = vshrl.u32 %v409, 7
        %v411 = vsub.s32 %v408, %v410
        %v412 = vrot.slane %v398, %v411
        %v413 = vcombine.high %v386, %v393
        %v415 = vunpack.c.l.s4 1983009808
        %v416 = vunpack.c.0.s8 %v415
        %v417 = vlaneseq
        %v418 = vshrl.u32 %v417, 7
        %v419 = vsub.s32 %v416, %v418
        %v420 = vrot.slane %v386, %v419
        %v422 = vunpack.c.l.s4 1983009808
        %v423 = vunpack.c.0.s8 %v422
        %v424 = vlaneseq
        %v425 = vshrl.u32 %v424, 7
        %v426 = vsub.s32 %v423, %v425
        %v427 = vrot.slane %v413, %v426
        %v428 = vcombine.low %v405, %v420
        %v429 = vcombine.high %v405, %v420
        %v431 = vunpack.c.l.s4 1934713408
        %v432 = vunpack.c.0.s8 %v431
        %v433 = vlaneseq
        %v434 = vshrl.u32 %v433, 7
        %v435 = vsub.s32 %v432, %v434
        %v436 = vrot.slane %v428, %v435
        %v438 = vunpack.c.l.s4 1934713408
        %v439 = vunpack.c.0.s8 %v438
        %v440 = vlaneseq
        %v441 = vshrl.u32 %v440, 7
        %v442 = vsub.s32 %v439, %v441
        %v443 = vrot.slane %v429, %v442
        %v444 = vcombine.low %v412, %v427
        %v445 = vcombine.high %v412, %v427
        %v447 = vunpack.c.l.s4 1934713408
        %v448 = vunpack.c.0.s8 %v447
        %v449 = vlaneseq
        %v450 = vshrl.u32 %v449, 7
        %v451 = vsub.s32 %v448, %v450
        %v452 = vrot.slane %v444, %v451
        %v454 = vunpack.c.l.s4 1934713408
        %v455 = vunpack.c.0.s8 %v454
        %v456 = vlaneseq
        %v457 = vshrl.u32 %v456, 7
        %v458 = vsub.s32 %v455, %v457
        %v459 = vrot.slane %v445, %v458
        %v460 = vcombine.high %v436, 0
        %v461 = vcombine.high %v443, 0
        %v462 = vcombine.high %v452, 0
        %v463 = vcombine.high %v459, 0
        %v464 = vcombine.high %v382, %v396
        %v466 = vunpack.c.l.s4 1983009808
        %v467 = vunpack.c.0.s8 %v466
        %v468 = vlaneseq
        %v469 = vshrl.u32 %v468, 7
        %v470 = vsub.s32 %v467, %v469
        %v471 = vrot.slane %v382, %v470
        %v473 = vunpack.c.l.s4 1983009808
        %v474 = vunpack.c.0.s8 %v473
        %v475 = vlaneseq
        %v476 = vshrl.u32 %v475, 7
        %v477 = vsub.s32 %v474, %v476
        %v478 = vrot.slane %v464, %v477
        %v479 = vcombine.high %v390, %v396
        %v481 = vunpack.c.l.s4 1983009808
        %v482 = vunpack.c.0.s8 %v481
        %v483 = vlaneseq
        %v484 = vshrl.u32 %v483, 7
        %v485 = vsub.s32 %v482, %v484
        %v486 = vrot.slane %v390, %v485
        %v488 = vunpack.c.l.s4 1983009808
        %v489 = vunpack.c.0.s8 %v488
        %v490 = vlaneseq
        %v491 = vshrl.u32 %v490, 7
        %v492 = vsub.s32 %v489, %v491
        %v493 = vrot.slane %v479, %v492
        %v494 = vcombine.low %v471, %v486
        %v495 = vcombine.high %v471, %v486
        %v497 = vunpack.c.l.s4 1934713408
        %v498 = vunpack.c.0.s8 %v497
        %v499 = vlaneseq
        %v500 = vshrl.u32 %v499, 7
        %v501 = vsub.s32 %v498, %v500
        %v502 = vrot.slane %v494, %v501
        %v504 = vunpack.c.l.s4 1934713408
        %v505 = vunpack.c.0.s8 %v504
        %v506 = vlaneseq
        %v507 = vshrl.u32 %v506, 7
        %v508 = vsub.s32 %v505, %v507
        %v509 = vrot.slane %v495, %v508
        %v510 = vcombine.low %v478, %v493
        %v511 = vcombine.high %v478, %v493
        %v513 = vunpack.c.l.s4 1934713408
        %v514 = vunpack.c.0.s8 %v513
        %v515 = vlaneseq
        %v516 = vshrl.u32 %v515, 7
        %v517 = vsub.s32 %v514, %v516
        %v518 = vrot.slane %v510, %v517
        %v520 = vunpack.c.l.s4 1934713408
        %v521 = vunpack.c.0.s8 %v520
        %v522 = vlaneseq
        %v523 = vshrl.u32 %v522, 7
        %v524 = vsub.s32 %v521, %v523
        %v525 = vrot.slane %v511, %v524
        %v526 = vcombine.high %v502, 0
        %v527 = vcombine.high %v509, 0
        %v528 = vcombine.high %v518, 0
        %v529 = vcombine.high %v525, 0
        %v530 = vcombine.low %v436, %v443
        %v532 = vunpack.c.l.s4 1983009808
        %v533 = vunpack.c.0.s8 %v532
        %v534 = vlaneseq
        %v535 = vshrl.u32 %v534, 7
        %v536 = vsub.s32 %v533, %v535
        %v537 = vrot.slane %v530, %v536
        %v538 = vcombine.low %v460, %v461
        %v540 = vunpack.c.l.s4 1983009808
        %v541 = vunpack.c.0.s8 %v540
        %v542 = vlaneseq
        %v543 = vshrl.u32 %v542, 7
        %v544 = vsub.s32 %v541, %v543
        %v545 = vrot.slane %v538, %v544
        %v546 = vcombine.low %v452, %v459
        %v548 = vunpack.c.l.s4 1983009808
        %v549 = vunpack.c.0.s8 %v548
        %v550 = vlaneseq
        %v551 = vshrl.u32 %v550, 7
        %v552 = vsub.s32 %v549, %v551
        %v553 = vrot.slane %v546, %v552
        %v554 = vcombine.low %v462, %v463
        %v556 = vunpack.c.l.s4 1983009808
        %v557 = vunpack.c.0.s8 %v556
        %v558 = vlaneseq
        %v559 = vshrl.u32 %v558, 7
        %v560 = vsub.s32 %v557, %v559
        %v561 = vrot.slane %v554, %v560
        %v562 = vcombine.low %v537, %v545
        %v564 = vunpack.c.l.s4 1934713408
        %v565 = vunpack.c.0.s8 %v564
        %v566 = vlaneseq
        %v567 = vshrl.u32 %v566, 7
        %v568 = vsub.s32 %v565, %v567
        %v569 = vrot.slane %v562, %v568
        %v570 = vcombine.low %v553, %v561
        %v572 = vunpack.c.l.s4 1934713408
        %v573 = vunpack.c.0.s8 %v572
        %v574 = vlaneseq
        %v575 = vshrl.u32 %v574, 7
        %v576 = vsub.s32 %v573, %v575
        %v577 = vrot.slane %v570, %v576
        %v578 = vcombine.low %v569, %v577
        %v579 = vcombine.high %v569, %v577
        %v580 = vcombine.low %v502, %v509
        %v582 = vunpack.c.l.s4 1983009808
        %v583 = vunpack.c.0.s8 %v582
        %v584 = vlaneseq
        %v585 = vshrl.u32 %v584, 7
        %v586 = vsub.s32 %v583, %v585
        %v587 = vrot.slane %v580, %v586
        %v588 = vcombine.low %v526, %v527
        %v590 = vunpack.c.l.s4 1983009808
        %v591 = vunpack.c.0.s8 %v590
        %v592 = vlaneseq
        %v593 = vshrl.u32 %v592, 7
        %v594 = vsub.s32 %v591, %v593
        %v595 = vrot.slane %v588, %v594
        %v596 = vcombine.low %v518, %v525
        %v598 = vunpack.c.l.s4 1983009808
        %v599 = vunpack.c.0.s8 %v598
        %v600 = vlaneseq
        %v601 = vshrl.u32 %v600, 7
        %v602 = vsub.s32 %v599, %v601
        %v603 = vrot.slane %v596, %v602
        %v604 = vcombine.low %v528, %v529
        %v606 = vunpack.c.l.s4 1983009808
        %v607 = vunpack.c.0.s8 %v606
        %v608 = vlaneseq
        %v609 = vshrl.u32 %v608, 7
        %v610 = vsub.s32 %v607, %v609
        %v611 = vrot.slane %v604, %v610
        %v612 = vcombine.low %v587, %v595
        %v614 = vunpack.c.l.s4 1934713408
        %v615 = vunpack.c.0.s8 %v614
        %v616 = vlaneseq
        %v617 = vshrl.u32 %v616, 7
        %v618 = vsub.s32 %v615, %v617
        %v619 = vrot.slane %v612, %v618
        %v620 = vcombine.low %v603, %v611
        %v622 = vunpack.c.l.s4 1934713408
        %v623 = vunpack.c.0.s8 %v622
        %v624 = vlaneseq
        %v625 = vshrl.u32 %v624, 7
        %v626 = vsub.s32 %v623, %v625
        %v627 = vrot.slane %v620, %v626
        %v628 = vcombine.low %v619, %v627
        %v629 = vcombine.high %v619, %v627
        %v632 = vpack.i.b16 %v628, %v578
        %v633 = vshrl.u32 %v578, 16
        %v634 = vshrl.u32 %v628, 16
        %v635 = vpack.i.b16 %v634, %v633
        %v638 = vpack.i.b16 %v629, %v579
        %v639 = vshrl.u32 %v579, 16
        %v640 = vshrl.u32 %v629, 16
        %v641 = vpack.i.b16 %v640, %v639
        %642 = vrot.lane.b32.xlu0 %v368, 96
        %v643 = vpop.permute.xlu0 %642
        %644 = vrot.lane.b32.xlu0 %v371, 96
        %v645 = vpop.permute.xlu0 %644
        %646 = vrot.lane.b32.xlu0 %v373, 96
        %v647 = vpop.permute.xlu0 %646
        %648 = vrot.lane.b32.xlu0 %v375, 96
        %v649 = vpop.permute.xlu0 %648
        %v652 = vpack.i.b16 %v645, %v643
        %v654 = vshrl.u32 %v643, 16
        %v655 = vshrl.u32 %v645, 16
        %v656 = vpack.i.b16 %v655, %v654
        %v660 = vpack.i.b16 %v649, %v647
        %v662 = vshrl.u32 %v647, 16
        %v663 = vshrl.u32 %v649, 16
        %v664 = vpack.i.b16 %v663, %v662
        %v666 = vcombine.high %v652, %v393
        %v668 = vunpack.c.l.s4 1983009808
        %v669 = vunpack.c.0.s8 %v668
        %v670 = vlaneseq
        %v671 = vshrl.u32 %v670, 7
        %v672 = vsub.s32 %v669, %v671
        %v673 = vrot.slane %v652, %v672
        %v675 = vunpack.c.l.s4 1983009808
        %v676 = vunpack.c.0.s8 %v675
        %v677 = vlaneseq
        %v678 = vshrl.u32 %v677, 7
        %v679 = vsub.s32 %v676, %v678
        %v680 = vrot.slane %v666, %v679
        %v681 = vcombine.high %v660, %v393
        %v683 = vunpack.c.l.s4 1983009808
        %v684 = vunpack.c.0.s8 %v683
        %v685 = vlaneseq
        %v686 = vshrl.u32 %v685, 7
        %v687 = vsub.s32 %v684, %v686
        %v688 = vrot.slane %v660, %v687
        %v690 = vunpack.c.l.s4 1983009808
        %v691 = vunpack.c.0.s8 %v690
        %v692 = vlaneseq
        %v693 = vshrl.u32 %v692, 7
        %v694 = vsub.s32 %v691, %v693
        %v695 = vrot.slane %v681, %v694
        %v696 = vcombine.low %v673, %v688
        %v697 = vcombine.high %v673, %v688
        %v699 = vunpack.c.l.s4 1934713408
        %v700 = vunpack.c.0.s8 %v699
        %v701 = vlaneseq
        %v702 = vshrl.u32 %v701, 7
        %v703 = vsub.s32 %v700, %v702
        %v704 = vrot.slane %v696, %v703
        %v706 = vunpack.c.l.s4 1934713408
        %v707 = vunpack.c.0.s8 %v706
        %v708 = vlaneseq
        %v709 = vshrl.u32 %v708, 7
        %v710 = vsub.s32 %v707, %v709
        %v711 = vrot.slane %v697, %v710
        %v712 = vcombine.low %v680, %v695
        %v713 = vcombine.high %v680, %v695
        %v715 = vunpack.c.l.s4 1934713408
        %v716 = vunpack.c.0.s8 %v715
        %v717 = vlaneseq
        %v718 = vshrl.u32 %v717, 7
        %v719 = vsub.s32 %v716, %v718
        %v720 = vrot.slane %v712, %v719
        %v722 = vunpack.c.l.s4 1934713408
        %v723 = vunpack.c.0.s8 %v722
        %v724 = vlaneseq
        %v725 = vshrl.u32 %v724, 7
        %v726 = vsub.s32 %v723, %v725
        %v727 = vrot.slane %v713, %v726
        %v728 = vcombine.high %v704, 0
        %v729 = vcombine.high %v711, 0
        %v730 = vcombine.high %v720, 0
        %v731 = vcombine.high %v727, 0
        %v732 = vcombine.high %v656, %v396
        %v734 = vunpack.c.l.s4 1983009808
        %v735 = vunpack.c.0.s8 %v734
        %v736 = vlaneseq
        %v737 = vshrl.u32 %v736, 7
        %v738 = vsub.s32 %v735, %v737
        %v739 = vrot.slane %v656, %v738
        %v741 = vunpack.c.l.s4 1983009808
        %v742 = vunpack.c.0.s8 %v741
        %v743 = vlaneseq
        %v744 = vshrl.u32 %v743, 7
        %v745 = vsub.s32 %v742, %v744
        %v746 = vrot.slane %v732, %v745
        %v747 = vcombine.high %v664, %v396
        %v749 = vunpack.c.l.s4 1983009808
        %v750 = vunpack.c.0.s8 %v749
        %v751 = vlaneseq
        %v752 = vshrl.u32 %v751, 7
        %v753 = vsub.s32 %v750, %v752
        %v754 = vrot.slane %v664, %v753
        %v756 = vunpack.c.l.s4 1983009808
        %v757 = vunpack.c.0.s8 %v756
        %v758 = vlaneseq
        %v759 = vshrl.u32 %v758, 7
        %v760 = vsub.s32 %v757, %v759
        %v761 = vrot.slane %v747, %v760
        %v762 = vcombine.low %v739, %v754
        %v763 = vcombine.high %v739, %v754
        %v765 = vunpack.c.l.s4 1934713408
        %v766 = vunpack.c.0.s8 %v765
        %v767 = vlaneseq
        %v768 = vshrl.u32 %v767, 7
        %v769 = vsub.s32 %v766, %v768
        %v770 = vrot.slane %v762, %v769
        %v772 = vunpack.c.l.s4 1934713408
        %v773 = vunpack.c.0.s8 %v772
        %v774 = vlaneseq
        %v775 = vshrl.u32 %v774, 7
        %v776 = vsub.s32 %v773, %v775
        %v777 = vrot.slane %v763, %v776
        %v778 = vcombine.low %v746, %v761
        %v779 = vcombine.high %v746, %v761
        %v781 = vunpack.c.l.s4 1934713408
        %v782 = vunpack.c.0.s8 %v781
        %v783 = vlaneseq
        %v784 = vshrl.u32 %v783, 7
        %v785 = vsub.s32 %v782, %v784
        %v786 = vrot.slane %v778, %v785
        %v788 = vunpack.c.l.s4 1934713408
        %v789 = vunpack.c.0.s8 %v788
        %v790 = vlaneseq
        %v791 = vshrl.u32 %v790, 7
        %v792 = vsub.s32 %v789, %v791
        %v793 = vrot.slane %v779, %v792
        %v794 = vcombine.high %v770, 0
        %v795 = vcombine.high %v777, 0
        %v796 = vcombine.high %v786, 0
        %v797 = vcombine.high %v793, 0
        %v798 = vcombine.low %v704, %v711
        %v800 = vunpack.c.l.s4 1983009808
        %v801 = vunpack.c.0.s8 %v800
        %v802 = vlaneseq
        %v803 = vshrl.u32 %v802, 7
        %v804 = vsub.s32 %v801, %v803
        %v805 = vrot.slane %v798, %v804
        %v806 = vcombine.low %v728, %v729
        %v808 = vunpack.c.l.s4 1983009808
        %v809 = vunpack.c.0.s8 %v808
        %v810 = vlaneseq
        %v811 = vshrl.u32 %v810, 7
        %v812 = vsub.s32 %v809, %v811
        %v813 = vrot.slane %v806, %v812
        %v814 = vcombine.low %v720, %v727
        %v816 = vunpack.c.l.s4 1983009808
        %v817 = vunpack.c.0.s8 %v816
        %v818 = vlaneseq
        %v819 = vshrl.u32 %v818, 7
        %v820 = vsub.s32 %v817, %v819
        %v821 = vrot.slane %v814, %v820
        %v822 = vcombine.low %v730, %v731
        %v824 = vunpack.c.l.s4 1983009808
        %v825 = vunpack.c.0.s8 %v824
        %v826 = vlaneseq
        %v827 = vshrl.u32 %v826, 7
        %v828 = vsub.s32 %v825, %v827
        %v829 = vrot.slane %v822, %v828
        %v830 = vcombine.low %v805, %v813
        %v832 = vunpack.c.l.s4 1934713408
        %v833 = vunpack.c.0.s8 %v832
        %v834 = vlaneseq
        %v835 = vshrl.u32 %v834, 7
        %v836 = vsub.s32 %v833, %v835
        %v837 = vrot.slane %v830, %v836
        %v838 = vcombine.low %v821, %v829
        %v840 = vunpack.c.l.s4 1934713408
        %v841 = vunpack.c.0.s8 %v840
        %v842 = vlaneseq
        %v843 = vshrl.u32 %v842, 7
        %v844 = vsub.s32 %v841, %v843
        %v845 = vrot.slane %v838, %v844
        %v846 = vcombine.low %v837, %v845
        %v847 = vcombine.high %v837, %v845
        %v848 = vcombine.low %v770, %v777
        %v850 = vunpack.c.l.s4 1983009808
        %v851 = vunpack.c.0.s8 %v850
        %v852 = vlaneseq
        %v853 = vshrl.u32 %v852, 7
        %v854 = vsub.s32 %v851, %v853
        %v855 = vrot.slane %v848, %v854
        %v856 = vcombine.low %v794, %v795
        %v858 = vunpack.c.l.s4 1983009808
        %v859 = vunpack.c.0.s8 %v858
        %v860 = vlaneseq
        %v861 = vshrl.u32 %v860, 7
        %v862 = vsub.s32 %v859, %v861
        %v863 = vrot.slane %v856, %v862
        %v864 = vcombine.low %v786, %v793
        %v866 = vunpack.c.l.s4 1983009808
        %v867 = vunpack.c.0.s8 %v866
        %v868 = vlaneseq
        %v869 = vshrl.u32 %v868, 7
        %v870 = vsub.s32 %v867, %v869
        %v871 = vrot.slane %v864, %v870
        %v872 = vcombine.low %v796, %v797
        %v874 = vunpack.c.l.s4 1983009808
        %v875 = vunpack.c.0.s8 %v874
        %v876 = vlaneseq
        %v877 = vshrl.u32 %v876, 7
        %v878 = vsub.s32 %v875, %v877
        %v879 = vrot.slane %v872, %v878
        %v880 = vcombine.low %v855, %v863
        %v882 = vunpack.c.l.s4 1934713408
        %v883 = vunpack.c.0.s8 %v882
        %v884 = vlaneseq
        %v885 = vshrl.u32 %v884, 7
        %v886 = vsub.s32 %v883, %v885
        %v887 = vrot.slane %v880, %v886
        %v888 = vcombine.low %v871, %v879
        %v890 = vunpack.c.l.s4 1934713408
        %v891 = vunpack.c.0.s8 %v890
        %v892 = vlaneseq
        %v893 = vshrl.u32 %v892, 7
        %v894 = vsub.s32 %v891, %v893
        %v895 = vrot.slane %v888, %v894
        %v896 = vcombine.low %v887, %v895
        %v897 = vcombine.high %v887, %v895
        %v900 = vpack.i.b16 %v896, %v846
        %v901 = vshrl.u32 %v846, 16
        %v902 = vshrl.u32 %v896, 16
        %v903 = vpack.i.b16 %v902, %v901
        %v906 = vpack.i.b16 %v897, %v847
        %v907 = vshrl.u32 %v847, 16
        %v908 = vshrl.u32 %v897, 16
        %v909 = vpack.i.b16 %v908, %v907
        %910 = vrot.lane.b32.xlu0 %v368, 64
        %v911 = vpop.permute.xlu0 %910
        %912 = vrot.lane.b32.xlu0 %v371, 64
        %v913 = vpop.permute.xlu0 %912
        %914 = vrot.lane.b32.xlu0 %v373, 64
        %v915 = vpop.permute.xlu0 %914
        %916 = vrot.lane.b32.xlu0 %v375, 64
        %v917 = vpop.permute.xlu0 %916
        %v920 = vpack.i.b16 %v913, %v911
        %v922 = vshrl.u32 %v911, 16
        %v923 = vshrl.u32 %v913, 16
        %v924 = vpack.i.b16 %v923, %v922
        %v928 = vpack.i.b16 %v917, %v915
        %v930 = vshrl.u32 %v915, 16
        %v931 = vshrl.u32 %v917, 16
        %v932 = vpack.i.b16 %v931, %v930
        %v934 = vcombine.high %v920, %v393
        %v936 = vunpack.c.l.s4 1983009808
        %v937 = vunpack.c.0.s8 %v936
        %v938 = vlaneseq
        %v939 = vshrl.u32 %v938, 7
        %v940 = vsub.s32 %v937, %v939
        %v941 = vrot.slane %v920, %v940
        %v943 = vunpack.c.l.s4 1983009808
        %v944 = vunpack.c.0.s8 %v943
        %v945 = vlaneseq
        %v946 = vshrl.u32 %v945, 7
        %v947 = vsub.s32 %v944, %v946
        %v948 = vrot.slane %v934, %v947
        %v949 = vcombine.high %v928, %v393
        %v951 = vunpack.c.l.s4 1983009808
        %v952 = vunpack.c.0.s8 %v951
        %v953 = vlaneseq
        %v954 = vshrl.u32 %v953, 7
        %v955 = vsub.s32 %v952, %v954
        %v956 = vrot.slane %v928, %v955
        %v958 = vunpack.c.l.s4 1983009808
        %v959 = vunpack.c.0.s8 %v958
        %v960 = vlaneseq
        %v961 = vshrl.u32 %v960, 7
        %v962 = vsub.s32 %v959, %v961
        %v963 = vrot.slane %v949, %v962
        %v964 = vcombine.low %v941, %v956
        %v965 = vcombine.high %v941, %v956
        %v967 = vunpack.c.l.s4 1934713408
        %v968 = vunpack.c.0.s8 %v967
        %v969 = vlaneseq
        %v970 = vshrl.u32 %v969, 7
        %v971 = vsub.s32 %v968, %v970
        %v972 = vrot.slane %v964, %v971
        %v974 = vunpack.c.l.s4 1934713408
        %v975 = vunpack.c.0.s8 %v974
        %v976 = vlaneseq
        %v977 = vshrl.u32 %v976, 7
        %v978 = vsub.s32 %v975, %v977
        %v979 = vrot.slane %v965, %v978
        %v980 = vcombine.low %v948, %v963
        %v981 = vcombine.high %v948, %v963
        %v983 = vunpack.c.l.s4 1934713408
        %v984 = vunpack.c.0.s8 %v983
        %v985 = vlaneseq
        %v986 = vshrl.u32 %v985, 7
        %v987 = vsub.s32 %v984, %v986
        %v988 = vrot.slane %v980, %v987
        %v990 = vunpack.c.l.s4 1934713408
        %v991 = vunpack.c.0.s8 %v990
        %v992 = vlaneseq
        %v993 = vshrl.u32 %v992, 7
        %v994 = vsub.s32 %v991, %v993
        %v995 = vrot.slane %v981, %v994
        %v996 = vcombine.high %v972, 0
        %v997 = vcombine.high %v979, 0
        %v998 = vcombine.high %v988, 0
        %v999 = vcombine.high %v995, 0
        %v1000 = vcombine.high %v924, %v396
        %v1002 = vunpack.c.l.s4 1983009808
        %v1003 = vunpack.c.0.s8 %v1002
        %v1004 = vlaneseq
        %v1005 = vshrl.u32 %v1004, 7
        %v1006 = vsub.s32 %v1003, %v1005
        %v1007 = vrot.slane %v924, %v1006
        %v1009 = vunpack.c.l.s4 1983009808
        %v1010 = vunpack.c.0.s8 %v1009
        %v1011 = vlaneseq
        %v1012 = vshrl.u32 %v1011, 7
        %v1013 = vsub.s32 %v1010, %v1012
        %v1014 = vrot.slane %v1000, %v1013
        %v1015 = vcombine.high %v932, %v396
        %v1017 = vunpack.c.l.s4 1983009808
        %v1018 = vunpack.c.0.s8 %v1017
        %v1019 = vlaneseq
        %v1020 = vshrl.u32 %v1019, 7
        %v1021 = vsub.s32 %v1018, %v1020
        %v1022 = vrot.slane %v932, %v1021
        %v1024 = vunpack.c.l.s4 1983009808
        %v1025 = vunpack.c.0.s8 %v1024
        %v1026 = vlaneseq
        %v1027 = vshrl.u32 %v1026, 7
        %v1028 = vsub.s32 %v1025, %v1027
        %v1029 = vrot.slane %v1015, %v1028
        %v1030 = vcombine.low %v1007, %v1022
        %v1031 = vcombine.high %v1007, %v1022
        %v1033 = vunpack.c.l.s4 1934713408
        %v1034 = vunpack.c.0.s8 %v1033
        %v1035 = vlaneseq
        %v1036 = vshrl.u32 %v1035, 7
        %v1037 = vsub.s32 %v1034, %v1036
        %v1038 = vrot.slane %v1030, %v1037
        %v1040 = vunpack.c.l.s4 1934713408
        %v1041 = vunpack.c.0.s8 %v1040
        %v1042 = vlaneseq
        %v1043 = vshrl.u32 %v1042, 7
        %v1044 = vsub.s32 %v1041, %v1043
        %v1045 = vrot.slane %v1031, %v1044
        %v1046 = vcombine.low %v1014, %v1029
        %v1047 = vcombine.high %v1014, %v1029
        %v1049 = vunpack.c.l.s4 1934713408
        %v1050 = vunpack.c.0.s8 %v1049
        %v1051 = vlaneseq
        %v1052 = vshrl.u32 %v1051, 7
        %v1053 = vsub.s32 %v1050, %v1052
        %v1054 = vrot.slane %v1046, %v1053
        %v1056 = vunpack.c.l.s4 1934713408
        %v1057 = vunpack.c.0.s8 %v1056
        %v1058 = vlaneseq
        %v1059 = vshrl.u32 %v1058, 7
        %v1060 = vsub.s32 %v1057, %v1059
        %v1061 = vrot.slane %v1047, %v1060
        %v1062 = vcombine.high %v1038, 0
        %v1063 = vcombine.high %v1045, 0
        %v1064 = vcombine.high %v1054, 0
        %v1065 = vcombine.high %v1061, 0
        %v1066 = vcombine.low %v972, %v979
        %v1068 = vunpack.c.l.s4 1983009808
        %v1069 = vunpack.c.0.s8 %v1068
        %v1070 = vlaneseq
        %v1071 = vshrl.u32 %v1070, 7
        %v1072 = vsub.s32 %v1069, %v1071
        %v1073 = vrot.slane %v1066, %v1072
        %v1074 = vcombine.low %v996, %v997
        %v1076 = vunpack.c.l.s4 1983009808
        %v1077 = vunpack.c.0.s8 %v1076
        %v1078 = vlaneseq
        %v1079 = vshrl.u32 %v1078, 7
        %v1080 = vsub.s32 %v1077, %v1079
        %v1081 = vrot.slane %v1074, %v1080
        %v1082 = vcombine.low %v988, %v995
        %v1084 = vunpack.c.l.s4 1983009808
        %v1085 = vunpack.c.0.s8 %v1084
        %v1086 = vlaneseq
        %v1087 = vshrl.u32 %v1086, 7
        %v1088 = vsub.s32 %v1085, %v1087
        %v1089 = vrot.slane %v1082, %v1088
        %v1090 = vcombine.low %v998, %v999
        %v1092 = vunpack.c.l.s4 1983009808
        %v1093 = vunpack.c.0.s8 %v1092
        %v1094 = vlaneseq
        %v1095 = vshrl.u32 %v1094, 7
        %v1096 = vsub.s32 %v1093, %v1095
        %v1097 = vrot.slane %v1090, %v1096
        %v1098 = vcombine.low %v1073, %v1081
        %v1100 = vunpack.c.l.s4 1934713408
        %v1101 = vunpack.c.0.s8 %v1100
        %v1102 = vlaneseq
        %v1103 = vshrl.u32 %v1102, 7
        %v1104 = vsub.s32 %v1101, %v1103
        %v1105 = vrot.slane %v1098, %v1104
        %v1106 = vcombine.low %v1089, %v1097
        %v1108 = vunpack.c.l.s4 1934713408
        %v1109 = vunpack.c.0.s8 %v1108
        %v1110 = vlaneseq
        %v1111 = vshrl.u32 %v1110, 7
        %v1112 = vsub.s32 %v1109, %v1111
        %v1113 = vrot.slane %v1106, %v1112
        %v1114 = vcombine.low %v1105, %v1113
        %v1115 = vcombine.high %v1105, %v1113
        %v1116 = vcombine.low %v1038, %v1045
        %v1118 = vunpack.c.l.s4 1983009808
        %v1119 = vunpack.c.0.s8 %v1118
        %v1120 = vlaneseq
        %v1121 = vshrl.u32 %v1120, 7
        %v1122 = vsub.s32 %v1119, %v1121
        %v1123 = vrot.slane %v1116, %v1122
        %v1124 = vcombine.low %v1062, %v1063
        %v1126 = vunpack.c.l.s4 1983009808
        %v1127 = vunpack.c.0.s8 %v1126
        %v1128 = vlaneseq
        %v1129 = vshrl.u32 %v1128, 7
        %v1130 = vsub.s32 %v1127, %v1129
        %v1131 = vrot.slane %v1124, %v1130
        %v1132 = vcombine.low %v1054, %v1061
        %v1134 = vunpack.c.l.s4 1983009808
        %v1135 = vunpack.c.0.s8 %v1134
        %v1136 = vlaneseq
        %v1137 = vshrl.u32 %v1136, 7
        %v1138 = vsub.s32 %v1135, %v1137
        %v1139 = vrot.slane %v1132, %v1138
        %v1140 = vcombine.low %v1064, %v1065
        %v1142 = vunpack.c.l.s4 1983009808
        %v1143 = vunpack.c.0.s8 %v1142
        %v1144 = vlaneseq
        %v1145 = vshrl.u32 %v1144, 7
        %v1146 = vsub.s32 %v1143, %v1145
        %v1147 = vrot.slane %v1140, %v1146
        %v1148 = vcombine.low %v1123, %v1131
        %v1150 = vunpack.c.l.s4 1934713408
        %v1151 = vunpack.c.0.s8 %v1150
        %v1152 = vlaneseq
        %v1153 = vshrl.u32 %v1152, 7
        %v1154 = vsub.s32 %v1151, %v1153
        %v1155 = vrot.slane %v1148, %v1154
        %v1156 = vcombine.low %v1139, %v1147
        %v1158 = vunpack.c.l.s4 1934713408
        %v1159 = vunpack.c.0.s8 %v1158
        %v1160 = vlaneseq
        %v1161 = vshrl.u32 %v1160, 7
        %v1162 = vsub.s32 %v1159, %v1161
        %v1163 = vrot.slane %v1156, %v1162
        %v1164 = vcombine.low %v1155, %v1163
        %v1165 = vcombine.high %v1155, %v1163
        %v1168 = vpack.i.b16 %v1164, %v1114
        %v1170 = vshrl.u32 %v1114, 16
        %v1171 = vshrl.u32 %v1164, 16
        %v1172 = vpack.i.b16 %v1171, %v1170
        %v1176 = vpack.i.b16 %v1165, %v1115
        %v1178 = vshrl.u32 %v1115, 16
        %v1179 = vshrl.u32 %v1165, 16
        %v1180 = vpack.i.b16 %v1179, %v1178
        %vm1182 = vcmask 64512
        %v1184 = vsel %vm1182, %v632, 0
        %v1187 = vsel %vm1182, %v900, 0
        %1189 = vmatprep.subr.bf16.mxu0 0
        %1190 = vmatpush1.bf16.xpose.msra.mxu0 %v1187
        %1191 = vmatprep.subr.bf16.mxu0 0
        %1192 = vmatpush1.bf16.xpose.msra.mxu0 0
        %1193 = vmatprep.subr.bf16.mxu0 0
        %1194 = vmatpush1.bf16.xpose.msra.mxu0 0
        %1195 = vmatprep.subr.bf16.mxu0 0
        %1196 = vmatpush1.bf16.xpose.msra.mxu0 0
        %1197 = vmatprep.subr.bf16.mxu0 0
        %1198 = vmatpush1.bf16.xpose.msra.mxu0 0
        %1199 = vmatprep.subr.bf16.mxu0 0
        %1200 = vmatpush1.bf16.xpose.msra.mxu0 0
        %1201 = vmatprep.subr.bf16.mxu0 0
        %1202 = vmatpush1.bf16.xpose.msra.mxu0 0
        %1203 = vmatprep.subr.bf16.mxu0 0
        %1204 = vmatpush1.bf16.xpose.msra.mxu0 0
        %1205 = vmatprep.subr.bf16.mxu0 0
        %1206 = vmatpush1.bf16.xpose.msra.mxu0 0
        %1207 = vmatprep.subr.bf16.mxu0 0
        %1208 = vmatpush1.bf16.xpose.msra.mxu0 0
        %1209 = vmatprep.subr.bf16.mxu0 0
        %1210 = vmatpush1.bf16.xpose.msra.mxu0 0
        %1211 = vmatprep.subr.bf16.mxu0 0
        %1212 = vmatpush1.bf16.xpose.msra.mxu0 0
        %1213 = vmatprep.subr.bf16.mxu0 0
        %1214 = vmatpush1.bf16.xpose.msra.mxu0 0
        %1215 = vmatprep.subr.bf16.mxu0 0
        %1216 = vmatpush1.bf16.xpose.msra.mxu0 0
        %1217 = vmatprep.subr.bf16.mxu0 0
        %1218 = vmatpush1.bf16.xpose.msra.mxu0 0
        %1219 = vmatprep.subr.bf16.mxu0 0
        %1220 = vmatpush1.bf16.xpose.msra.mxu0 0
        %1221 = vmatprep.mubr.bf16.mxu0 0
        %1222 = vmatmul.mubr.bf16.gmra.mrb[0].mxu0 %v1184
        %v1223 = vpop.f32.mrb[0].mxu0
        %v1224 = vadd.f32 0.0, %v1223
        %v1225 = vpop.f32.mrb[0].mxu0
        %v1226 = vpop.f32.mrb[0].mxu0
        %v1227 = vadd.f32 0.0, %v1226
        %v1228 = vpop.f32.mrb[0].mxu0
        %1229 = vdwg.mxu0
        %v1231 = vsel %vm1182, %v635, 0
        %v1234 = vsel %vm1182, %v903, 0
        %1236 = vmatprep.subr.bf16.mxu0 0
        %1237 = vmatpush1.bf16.xpose.msra.mxu0 %v1234
        %1238 = vmatprep.subr.bf16.mxu0 0
        %1239 = vmatpush1.bf16.xpose.msra.mxu0 0
        %1240 = vmatprep.subr.bf16.mxu0 0
        %1241 = vmatpush1.bf16.xpose.msra.mxu0 0
        %1242 = vmatprep.subr.bf16.mxu0 0
        %1243 = vmatpush1.bf16.xpose.msra.mxu0 0
        %1244 = vmatprep.subr.bf16.mxu0 0
        %1245 = vmatpush1.bf16.xpose.msra.mxu0 0
        %1246 = vmatprep.subr.bf16.mxu0 0
        %1247 = vmatpush1.bf16.xpose.msra.mxu0 0
        %1248 = vmatprep.subr.bf16.mxu0 0
        %1249 = vmatpush1.bf16.xpose.msra.mxu0 0
        %1250 = vmatprep.subr.bf16.mxu0 0
        %1251 = vmatpush1.bf16.xpose.msra.mxu0 0
        %1252 = vmatprep.subr.bf16.mxu0 0
        %1253 = vmatpush1.bf16.xpose.msra.mxu0 0
        %1254 = vmatprep.subr.bf16.mxu0 0
        %1255 = vmatpush1.bf16.xpose.msra.mxu0 0
        %1256 = vmatprep.subr.bf16.mxu0 0
        %1257 = vmatpush1.bf16.xpose.msra.mxu0 0
        %1258 = vmatprep.subr.bf16.mxu0 0
        %1259 = vmatpush1.bf16.xpose.msra.mxu0 0
        %1260 = vmatprep.subr.bf16.mxu0 0
        %1261 = vmatpush1.bf16.xpose.msra.mxu0 0
        %1262 = vmatprep.subr.bf16.mxu0 0
        %1263 = vmatpush1.bf16.xpose.msra.mxu0 0
        %1264 = vmatprep.subr.bf16.mxu0 0
        %1265 = vmatpush1.bf16.xpose.msra.mxu0 0
        %1266 = vmatprep.subr.bf16.mxu0 0
        %1267 = vmatpush1.bf16.xpose.msra.mxu0 0
        %1268 = vmatprep.mubr.bf16.mxu0 0
        %1269 = vmatmul.mubr.bf16.gmra.mrb[0].mxu0 %v1231
        %v1270 = vpop.f32.mrb[0].mxu0
        %v1271 = vadd.f32 0.0, %v1270
        %v1272 = vpop.f32.mrb[0].mxu0
        %v1273 = vpop.f32.mrb[0].mxu0
        %v1274 = vadd.f32 0.0, %v1273
        %v1275 = vpop.f32.mrb[0].mxu0
        %1276 = vdwg.mxu0
        %v1278 = vsel %vm1182, %v638, 0
        %v1281 = vsel %vm1182, %v906, 0
        %1283 = vmatprep.subr.bf16.mxu0 0
        %1284 = vmatpush1.bf16.xpose.msra.mxu0 %v1281
        %1285 = vmatprep.subr.bf16.mxu0 0
        %1286 = vmatpush1.bf16.xpose.msra.mxu0 0
        %1287 = vmatprep.subr.bf16.mxu0 0
        %1288 = vmatpush1.bf16.xpose.msra.mxu0 0
        %1289 = vmatprep.subr.bf16.mxu0 0
        %1290 = vmatpush1.bf16.xpose.msra.mxu0 0
        %1291 = vmatprep.subr.bf16.mxu0 0
        %1292 = vmatpush1.bf16.xpose.msra.mxu0 0
        %1293 = vmatprep.subr.bf16.mxu0 0
        %1294 = vmatpush1.bf16.xpose.msra.mxu0 0
        %1295 = vmatprep.subr.bf16.mxu0 0
        %1296 = vmatpush1.bf16.xpose.msra.mxu0 0
        %1297 = vmatprep.subr.bf16.mxu0 0
        %1298 = vmatpush1.bf16.xpose.msra.mxu0 0
        %1299 = vmatprep.subr.bf16.mxu0 0
        %1300 = vmatpush1.bf16.xpose.msra.mxu0 0
        %1301 = vmatprep.subr.bf16.mxu0 0
        %1302 = vmatpush1.bf16.xpose.msra.mxu0 0
        %1303 = vmatprep.subr.bf16.mxu0 0
        %1304 = vmatpush1.bf16.xpose.msra.mxu0 0
        %1305 = vmatprep.subr.bf16.mxu0 0
        %1306 = vmatpush1.bf16.xpose.msra.mxu0 0
        %1307 = vmatprep.subr.bf16.mxu0 0
        %1308 = vmatpush1.bf16.xpose.msra.mxu0 0
        %1309 = vmatprep.subr.bf16.mxu0 0
        %1310 = vmatpush1.bf16.xpose.msra.mxu0 0
        %1311 = vmatprep.subr.bf16.mxu0 0
        %1312 = vmatpush1.bf16.xpose.msra.mxu0 0
        %1313 = vmatprep.subr.bf16.mxu0 0
        %1314 = vmatpush1.bf16.xpose.msra.mxu0 0
        %1315 = vmatprep.mubr.bf16.mxu0 0
        %1316 = vmatmul.mubr.bf16.gmra.mrb[0].mxu0 %v1278
        %v1317 = vpop.f32.mrb[0].mxu0
        %v1318 = vadd.f32 0.0, %v1317
        %v1319 = vpop.f32.mrb[0].mxu0
        %v1320 = vpop.f32.mrb[0].mxu0
        %v1321 = vadd.f32 0.0, %v1320
        %v1322 = vpop.f32.mrb[0].mxu0
        %1323 = vdwg.mxu0
        %v1325 = vsel %vm1182, %v641, 0
        %v1328 = vsel %vm1182, %v909, 0
        %1330 = vmatprep.subr.bf16.mxu0 0
        %1331 = vmatpush1.bf16.xpose.msra.mxu0 %v1328
        %1332 = vmatprep.subr.bf16.mxu0 0
        %1333 = vmatpush1.bf16.xpose.msra.mxu0 0
        %1334 = vmatprep.subr.bf16.mxu0 0
        %1335 = vmatpush1.bf16.xpose.msra.mxu0 0
        %1336 = vmatprep.subr.bf16.mxu0 0
        %1337 = vmatpush1.bf16.xpose.msra.mxu0 0
        %1338 = vmatprep.subr.bf16.mxu0 0
        %1339 = vmatpush1.bf16.xpose.msra.mxu0 0
        %1340 = vmatprep.subr.bf16.mxu0 0
        %1341 = vmatpush1.bf16.xpose.msra.mxu0 0
        %1342 = vmatprep.subr.bf16.mxu0 0
        %1343 = vmatpush1.bf16.xpose.msra.mxu0 0
        %1344 = vmatprep.subr.bf16.mxu0 0
        %1345 = vmatpush1.bf16.xpose.msra.mxu0 0
        %1346 = vmatprep.subr.bf16.mxu0 0
        %1347 = vmatpush1.bf16.xpose.msra.mxu0 0
        %1348 = vmatprep.subr.bf16.mxu0 0
        %1349 = vmatpush1.bf16.xpose.msra.mxu0 0
        %1350 = vmatprep.subr.bf16.mxu0 0
        %1351 = vmatpush1.bf16.xpose.msra.mxu0 0
        %1352 = vmatprep.subr.bf16.mxu0 0
        %1353 = vmatpush1.bf16.xpose.msra.mxu0 0
        %1354 = vmatprep.subr.bf16.mxu0 0
        %1355 = vmatpush1.bf16.xpose.msra.mxu0 0
        %1356 = vmatprep.subr.bf16.mxu0 0
        %1357 = vmatpush1.bf16.xpose.msra.mxu0 0
        %1358 = vmatprep.subr.bf16.mxu0 0
        %1359 = vmatpush1.bf16.xpose.msra.mxu0 0
        %1360 = vmatprep.subr.bf16.mxu0 0
        %1361 = vmatpush1.bf16.xpose.msra.mxu0 0
        %1362 = vmatprep.mubr.bf16.mxu0 0
        %1363 = vmatmul.mubr.bf16.gmra.mrb[0].mxu0 %v1325
        %v1364 = vpop.f32.mrb[0].mxu0
        %v1365 = vadd.f32 0.0, %v1364
        %v1366 = vpop.f32.mrb[0].mxu0
        %v1367 = vpop.f32.mrb[0].mxu0
        %v1368 = vadd.f32 0.0, %v1367
        %v1369 = vpop.f32.mrb[0].mxu0
        %1370 = vdwg.mxu0
        %vm1371 = vcmask 130048
        %v1372 = vsel %vm1371, %v1224, -inf
        %1373 = vmax.xlane.f32.xlu0 %v1372
        %v1374 = vpop.xlane.xlu0 %1373
        %v1375 = vsel %vm1371, %v1227, -inf
        %1376 = vmax.xlane.f32.xlu0 %v1375
        %v1377 = vpop.xlane.xlu0 %1376
        %v1378 = vsel %vm1371, %v1271, -inf
        %1379 = vmax.xlane.f32.xlu0 %v1378
        %v1380 = vpop.xlane.xlu0 %1379
        %v1381 = vsel %vm1371, %v1274, -inf
        %1382 = vmax.xlane.f32.xlu0 %v1381
        %v1383 = vpop.xlane.xlu0 %1382
        %v1384 = vsel %vm1371, %v1318, -inf
        %1385 = vmax.xlane.f32.xlu0 %v1384
        %v1386 = vpop.xlane.xlu0 %1385
        %v1387 = vsel %vm1371, %v1321, -inf
        %1388 = vmax.xlane.f32.xlu0 %v1387
        %v1389 = vpop.xlane.xlu0 %1388
        %v1390 = vsel %vm1371, %v1365, -inf
        %1391 = vmax.xlane.f32.xlu0 %v1390
        %v1392 = vpop.xlane.xlu0 %1391
        %v1393 = vsel %vm1371, %v1368, -inf
        %1394 = vmax.xlane.f32.xlu0 %v1393
        %v1395 = vpop.xlane.xlu0 %1394
        %v1396 = vsub.f32 %v1224, %v1374
        %v1397 = vsub.f32 %v1227, %v1377
        %v1398 = vsub.f32 %v1271, %v1380
        %v1399 = vsub.f32 %v1274, %v1383
        %v1400 = vsub.f32 %v1318, %v1386
        %v1401 = vsub.f32 %v1321, %v1389
        %v1402 = vsub.f32 %v1365, %v1392
        %v1403 = vsub.f32 %v1368, %v1395
        %v1404 = vmul.f32 %v1396, 1.442695
        %v1405 = vpow.pop %v1404
        %v1406 = vmul.f32 %v1397, 1.442695
        %v1407 = vpow.pop %v1406
        %v1408 = vmul.f32 %v1398, 1.442695
        %v1409 = vpow.pop %v1408
        %v1410 = vmul.f32 %v1399, 1.442695
        %v1411 = vpow.pop %v1410
        %v1412 = vmul.f32 %v1400, 1.442695
        %v1413 = vpow.pop %v1412
        %v1414 = vmul.f32 %v1401, 1.442695
        %v1415 = vpow.pop %v1414
        %v1416 = vmul.f32 %v1402, 1.442695
        %v1417 = vpow.pop %v1416
        %v1418 = vmul.f32 %v1403, 1.442695
        %v1419 = vpow.pop %v1418
        %v1420 = vld [vmem:[%s2] sm:$0xf]
        %v1423 = vunpack.c.l.s4 1966171168
        %v1424 = vunpack.c.0.s8 %v1423
        %v1425 = vlaneseq
        %v1426 = vshrl.u32 %v1425, 7
        %v1427 = vsub.s32 %v1424, %v1426
        %v1428 = vrot.slane %v1420, %v1427
        %v1429 = vcombine.high %v1428, %v1428
        %v1431 = vunpack.c.l.s4 1966171168
        %v1432 = vunpack.c.0.s8 %v1431
        %v1433 = vlaneseq
        %v1434 = vshrl.u32 %v1433, 7
        %v1435 = vsub.s32 %v1432, %v1434
        %v1436 = vrot.slane %v1428, %v1435
        %v1438 = vunpack.c.l.s4 1966171168
        %v1439 = vunpack.c.0.s8 %v1438
        %v1440 = vlaneseq
        %v1441 = vshrl.u32 %v1440, 7
        %v1442 = vsub.s32 %v1439, %v1441
        %v1443 = vrot.slane %v1429, %v1442
        %v1444 = vcombine.high %v1436, %v1436
        %v1445 = vcombine.high %v1443, %v1443
        %v1446 = vsel %vm1371, %v1405, 0.0
        %1447 = vadd.xlane.f32.xlu0 %v1446
        %v1448 = vpop.xlane.xlu0 %1447
        %v1449 = vsel %vm1371, %v1407, 0.0
        %1450 = vadd.xlane.f32.xlu0 %v1449
        %v1451 = vpop.xlane.xlu0 %1450
        %v1452 = vsel %vm1371, %v1409, 0.0
        %1453 = vadd.xlane.f32.xlu0 %v1452
        %v1454 = vpop.xlane.xlu0 %1453
        %v1455 = vsel %vm1371, %v1411, 0.0
        %1456 = vadd.xlane.f32.xlu0 %v1455
        %v1457 = vpop.xlane.xlu0 %1456
        %v1458 = vsel %vm1371, %v1413, 0.0
        %1459 = vadd.xlane.f32.xlu0 %v1458
        %v1460 = vpop.xlane.xlu0 %1459
        %v1461 = vsel %vm1371, %v1415, 0.0
        %1462 = vadd.xlane.f32.xlu0 %v1461
        %v1463 = vpop.xlane.xlu0 %1462
        %v1464 = vsel %vm1371, %v1417, 0.0
        %1465 = vadd.xlane.f32.xlu0 %v1464
        %v1466 = vpop.xlane.xlu0 %1465
        %v1467 = vsel %vm1371, %v1419, 0.0
        %1468 = vadd.xlane.f32.xlu0 %v1467
        %v1469 = vpop.xlane.xlu0 %1468
        %v1470 = vrcp.pop %v1448
        %v1471 = vrcp.pop %v1451
        %v1472 = vrcp.pop %v1454
        %v1473 = vrcp.pop %v1457
        %v1474 = vrcp.pop %v1460
        %v1475 = vrcp.pop %v1463
        %v1476 = vrcp.pop %v1466
        %v1477 = vrcp.pop %v1469
        %v1478 = vlaneseq
        %v1479 = vshrl.u32 %v1478, 7
        %v1480 = vsub.s32 0, %v1479
        %v1481 = vrot.slane %v1436, %v1480
        %v1482 = vlaneseq
        %v1483 = vshrl.u32 %v1482, 7
        %v1484 = vsub.s32 0, %v1483
        %v1485 = vrot.slane %v1443, %v1484
        %v1486 = vlaneseq
        %v1487 = vshrl.u32 %v1486, 7
        %v1488 = vsub.s32 0, %v1487
        %v1489 = vrot.slane %v1444, %v1488
        %v1490 = vlaneseq
        %v1491 = vshrl.u32 %v1490, 7
        %v1492 = vsub.s32 0, %v1491
        %v1493 = vrot.slane %v1445, %v1492
        %v1498 = vmul.f32 %v1481, %v1470
        %v1499 = vmul.f32 %v1481, %v1471
        %v1500 = vmul.f32 %v1485, %v1472
        %v1501 = vmul.f32 %v1485, %v1473
        %v1502 = vmul.f32 %v1489, %v1474
        %v1503 = vmul.f32 %v1489, %v1475
        %v1504 = vmul.f32 %v1493, %v1476
        %v1505 = vmul.f32 %v1493, %v1477
        %1507 = vset.pattern.permute.xlu0 0
        %1508 = vperm.xlu0 %1507, %v1498
        %v1509 = vpop.permute.xlu0 %1508
        %1512 = vset.pattern.permute.xlu0 0
        %1513 = vperm.xlu0 %1512, %v1499
        %v1514 = vpop.permute.xlu0 %1513
        %1517 = vset.pattern.permute.xlu0 0
        %1518 = vperm.xlu0 %1517, %v1500
        %v1519 = vpop.permute.xlu0 %1518
        %1522 = vset.pattern.permute.xlu0 0
        %1523 = vperm.xlu0 %1522, %v1501
        %v1524 = vpop.permute.xlu0 %1523
        %1527 = vset.pattern.permute.xlu0 0
        %1528 = vperm.xlu0 %1527, %v1502
        %v1529 = vpop.permute.xlu0 %1528
        %1532 = vset.pattern.permute.xlu0 0
        %1533 = vperm.xlu0 %1532, %v1503
        %v1534 = vpop.permute.xlu0 %1533
        %1537 = vset.pattern.permute.xlu0 0
        %1538 = vperm.xlu0 %1537, %v1504
        %v1539 = vpop.permute.xlu0 %1538
        %1542 = vset.pattern.permute.xlu0 0
        %1543 = vperm.xlu0 %1542, %v1505
        %v1544 = vpop.permute.xlu0 %1543
        %v1546 = vmul.f32 %v1405, %v1509
        %v1547 = vmul.f32 %v1407, %v1514
        %v1548 = vmul.f32 %v1409, %v1519
        %v1549 = vmul.f32 %v1411, %v1524
        %v1550 = vmul.f32 %v1413, %v1529
        %v1551 = vmul.f32 %v1415, %v1534
        %v1552 = vmul.f32 %v1417, %v1539
        %v1553 = vmul.f32 %v1419, %v1544
        %v1554 = vld [vmem:[#allocation5] sm:$0xff]
        %v1555 = vld [vmem:[#allocation5 + $0x8] sm:$0xff]
        %v1556 = vld [vmem:[#allocation5 + $0x10] sm:$0xff]
        %v1557 = vld [vmem:[#allocation5 + $0x18] sm:$0xff]
        %v1558 = vld [vmem:[#allocation5 + $0x20] sm:$0xff]
        %v1559 = vld [vmem:[#allocation5 + $0x28] sm:$0xff]
        %v1560 = vld [vmem:[#allocation5 + $0x30] sm:$0xff]
        %v1561 = vld [vmem:[#allocation5 + $0x38] sm:$0xff]
        %v1562 = vadd.f32 %v1546, %v1554
        %v1563 = vadd.f32 %v1547, %v1555
        %v1564 = vadd.f32 %v1548, %v1556
        %v1565 = vadd.f32 %v1549, %v1557
        %v1566 = vadd.f32 %v1550, %v1558
        %v1567 = vadd.f32 %v1551, %v1559
        %v1568 = vadd.f32 %v1552, %v1560
        %v1569 = vadd.f32 %v1553, %v1561
        %v1570 = vpack.c.bf16 %v1563, %v1562
        %v1571 = vpack.c.bf16 %v1565, %v1564
        %v1572 = vpack.c.bf16 %v1567, %v1566
        %v1573 = vpack.c.bf16 %v1569, %v1568
        %v1575 = vsel %vm1371, %v1570, 0
        %1577 = vmatprep.subr.bf16.mxu0 0
        %1578 = vmatpush1.bf16.msra.mxu0 %v1168
        %1579 = vmatprep.subr.bf16.mxu0 0
        %1580 = vmatpush1.bf16.msra.mxu0 0
        %1581 = vmatprep.subr.bf16.mxu0 0
        %1582 = vmatpush1.bf16.msra.mxu0 0
        %1583 = vmatprep.subr.bf16.mxu0 0
        %1584 = vmatpush1.bf16.msra.mxu0 0
        %1585 = vmatprep.subr.bf16.mxu0 0
        %1586 = vmatpush1.bf16.msra.mxu0 0
        %1587 = vmatprep.subr.bf16.mxu0 0
        %1588 = vmatpush1.bf16.msra.mxu0 0
        %1589 = vmatprep.subr.bf16.mxu0 0
        %1590 = vmatpush1.bf16.msra.mxu0 0
        %1591 = vmatprep.subr.bf16.mxu0 0
        %1592 = vmatpush1.bf16.msra.mxu0 0
        %1593 = vmatprep.subr.bf16.mxu0 0
        %1594 = vmatpush1.bf16.msra.mxu0 0
        %1595 = vmatprep.subr.bf16.mxu0 0
        %1596 = vmatpush1.bf16.msra.mxu0 0
        %1597 = vmatprep.subr.bf16.mxu0 0
        %1598 = vmatpush1.bf16.msra.mxu0 0
        %1599 = vmatprep.subr.bf16.mxu0 0
        %1600 = vmatpush1.bf16.msra.mxu0 0
        %1601 = vmatprep.subr.bf16.mxu0 0
        %1602 = vmatpush1.bf16.msra.mxu0 0
        %1603 = vmatprep.subr.bf16.mxu0 0
        %1604 = vmatpush1.bf16.msra.mxu0 0
        %1605 = vmatprep.subr.bf16.mxu0 0
        %1606 = vmatpush1.bf16.msra.mxu0 0
        %1607 = vmatprep.subr.bf16.mxu0 0
        %1608 = vmatpush1.bf16.msra.mxu0 0
        %1609 = vmatprep.mubr.bf16.mxu0 0
        %1610 = vmatmul.mubr.bf16.gmra.mrb[0].mxu0 %v1575
        %v1611 = vpop.f32.mrb[0].mxu0
        %v1612 = vadd.f32 0.0, %v1611
        %v1613 = vpop.f32.mrb[0].mxu0
        %v1614 = vpop.f32.mrb[0].mxu0
        %v1615 = vadd.f32 0.0, %v1614
        %v1616 = vpop.f32.mrb[0].mxu0
        %1617 = vdwg.mxu0
        %v1619 = vsel %vm1371, %v1571, 0
        %1621 = vmatprep.subr.bf16.mxu0 0
        %1622 = vmatpush1.bf16.msra.mxu0 %v1172
        %1623 = vmatprep.subr.bf16.mxu0 0
        %1624 = vmatpush1.bf16.msra.mxu0 0
        %1625 = vmatprep.subr.bf16.mxu0 0
        %1626 = vmatpush1.bf16.msra.mxu0 0
        %1627 = vmatprep.subr.bf16.mxu0 0
        %1628 = vmatpush1.bf16.msra.mxu0 0
        %1629 = vmatprep.subr.bf16.mxu0 0
        %1630 = vmatpush1.bf16.msra.mxu0 0
        %1631 = vmatprep.subr.bf16.mxu0 0
        %1632 = vmatpush1.bf16.msra.mxu0 0
        %1633 = vmatprep.subr.bf16.mxu0 0
        %1634 = vmatpush1.bf16.msra.mxu0 0
        %1635 = vmatprep.subr.bf16.mxu0 0
        %1636 = vmatpush1.bf16.msra.mxu0 0
        %1637 = vmatprep.subr.bf16.mxu0 0
        %1638 = vmatpush1.bf16.msra.mxu0 0
        %1639 = vmatprep.subr.bf16.mxu0 0
        %1640 = vmatpush1.bf16.msra.mxu0 0
        %1641 = vmatprep.subr.bf16.mxu0 0
        %1642 = vmatpush1.bf16.msra.mxu0 0
        %1643 = vmatprep.subr.bf16.mxu0 0
        %1644 = vmatpush1.bf16.msra.mxu0 0
        %1645 = vmatprep.subr.bf16.mxu0 0
        %1646 = vmatpush1.bf16.msra.mxu0 0
        %1647 = vmatprep.subr.bf16.mxu0 0
        %1648 = vmatpush1.bf16.msra.mxu0 0
        %1649 = vmatprep.subr.bf16.mxu0 0
        %1650 = vmatpush1.bf16.msra.mxu0 0
        %1651 = vmatprep.subr.bf16.mxu0 0
        %1652 = vmatpush1.bf16.msra.mxu0 0
        %1653 = vmatprep.mubr.bf16.mxu0 0
        %1654 = vmatmul.mubr.bf16.gmra.mrb[0].mxu0 %v1619
        %v1655 = vpop.f32.mrb[0].mxu0
        %v1656 = vadd.f32 0.0, %v1655
        %v1657 = vpop.f32.mrb[0].mxu0
        %v1658 = vpop.f32.mrb[0].mxu0
        %v1659 = vadd.f32 0.0, %v1658
        %v1660 = vpop.f32.mrb[0].mxu0
        %1661 = vdwg.mxu0
        %v1663 = vsel %vm1371, %v1572, 0
        %1665 = vmatprep.subr.bf16.mxu0 0
        %1666 = vmatpush1.bf16.msra.mxu0 %v1176
        %1667 = vmatprep.subr.bf16.mxu0 0
        %1668 = vmatpush1.bf16.msra.mxu0 0
        %1669 = vmatprep.subr.bf16.mxu0 0
        %1670 = vmatpush1.bf16.msra.mxu0 0
        %1671 = vmatprep.subr.bf16.mxu0 0
        %1672 = vmatpush1.bf16.msra.mxu0 0
        %1673 = vmatprep.subr.bf16.mxu0 0
        %1674 = vmatpush1.bf16.msra.mxu0 0
        %1675 = vmatprep.subr.bf16.mxu0 0
        %1676 = vmatpush1.bf16.msra.mxu0 0
        %1677 = vmatprep.subr.bf16.mxu0 0
        %1678 = vmatpush1.bf16.msra.mxu0 0
        %1679 = vmatprep.subr.bf16.mxu0 0
        %1680 = vmatpush1.bf16.msra.mxu0 0
        %1681 = vmatprep.subr.bf16.mxu0 0
        %1682 = vmatpush1.bf16.msra.mxu0 0
        %1683 = vmatprep.subr.bf16.mxu0 0
        %1684 = vmatpush1.bf16.msra.mxu0 0
        %1685 = vmatprep.subr.bf16.mxu0 0
        %1686 = vmatpush1.bf16.msra.mxu0 0
        %1687 = vmatprep.subr.bf16.mxu0 0
        %1688 = vmatpush1.bf16.msra.mxu0 0
        %1689 = vmatprep.subr.bf16.mxu0 0
        %1690 = vmatpush1.bf16.msra.mxu0 0
        %1691 = vmatprep.subr.bf16.mxu0 0
        %1692 = vmatpush1.bf16.msra.mxu0 0
        %1693 = vmatprep.subr.bf16.mxu0 0
        %1694 = vmatpush1.bf16.msra.mxu0 0
        %1695 = vmatprep.subr.bf16.mxu0 0
        %1696 = vmatpush1.bf16.msra.mxu0 0
        %1697 = vmatprep.mubr.bf16.mxu0 0
        %1698 = vmatmul.mubr.bf16.gmra.mrb[0].mxu0 %v1663
        %v1699 = vpop.f32.mrb[0].mxu0
        %v1700 = vadd.f32 0.0, %v1699
        %v1701 = vpop.f32.mrb[0].mxu0
        %v1702 = vpop.f32.mrb[0].mxu0
        %v1703 = vadd.f32 0.0, %v1702
        %v1704 = vpop.f32.mrb[0].mxu0
        %1705 = vdwg.mxu0
        %v1707 = vsel %vm1371, %v1573, 0
        %1709 = vmatprep.subr.bf16.mxu0 0
        %1710 = vmatpush1.bf16.msra.mxu0 %v1180
        %1711 = vmatprep.subr.bf16.mxu0 0
        %1712 = vmatpush1.bf16.msra.mxu0 0
        %1713 = vmatprep.subr.bf16.mxu0 0
        %1714 = vmatpush1.bf16.msra.mxu0 0
        %1715 = vmatprep.subr.bf16.mxu0 0
        %1716 = vmatpush1.bf16.msra.mxu0 0
        %1717 = vmatprep.subr.bf16.mxu0 0
        %1718 = vmatpush1.bf16.msra.mxu0 0
        %1719 = vmatprep.subr.bf16.mxu0 0
        %1720 = vmatpush1.bf16.msra.mxu0 0
        %1721 = vmatprep.subr.bf16.mxu0 0
        %1722 = vmatpush1.bf16.msra.mxu0 0
        %1723 = vmatprep.subr.bf16.mxu0 0
        %1724 = vmatpush1.bf16.msra.mxu0 0
        %1725 = vmatprep.subr.bf16.mxu0 0
        %1726 = vmatpush1.bf16.msra.mxu0 0
        %1727 = vmatprep.subr.bf16.mxu0 0
        %1728 = vmatpush1.bf16.msra.mxu0 0
        %1729 = vmatprep.subr.bf16.mxu0 0
        %1730 = vmatpush1.bf16.msra.mxu0 0
        %1731 = vmatprep.subr.bf16.mxu0 0
        %1732 = vmatpush1.bf16.msra.mxu0 0
        %1733 = vmatprep.subr.bf16.mxu0 0
        %1734 = vmatpush1.bf16.msra.mxu0 0
        %1735 = vmatprep.subr.bf16.mxu0 0
        %1736 = vmatpush1.bf16.msra.mxu0 0
        %1737 = vmatprep.subr.bf16.mxu0 0
        %1738 = vmatpush1.bf16.msra.mxu0 0
        %1739 = vmatprep.subr.bf16.mxu0 0
        %1740 = vmatpush1.bf16.msra.mxu0 0
        %1741 = vmatprep.mubr.bf16.mxu0 0
        %1742 = vmatmul.mubr.bf16.gmra.mrb[0].mxu0 %v1707
        %v1743 = vpop.f32.mrb[0].mxu0
        %v1744 = vadd.f32 0.0, %v1743
        %v1745 = vpop.f32.mrb[0].mxu0
        %v1746 = vpop.f32.mrb[0].mxu0
        %v1747 = vadd.f32 0.0, %v1746
        %v1748 = vpop.f32.mrb[0].mxu0
        %1749 = vdwg.mxu0
        %v1750 = vcombine.low %v1612, %v1700
        %v1751 = vcombine.high %v1612, %v1700
        %v1753 = vunpack.c.l.s4 1983009808
        %v1754 = vunpack.c.0.s8 %v1753
        %v1755 = vlaneseq
        %v1756 = vshrl.u32 %v1755, 7
        %v1757 = vsub.s32 %v1754, %v1756
        %v1758 = vrot.slane %v1750, %v1757
        %v1760 = vunpack.c.l.s4 1983009808
        %v1761 = vunpack.c.0.s8 %v1760
        %v1762 = vlaneseq
        %v1763 = vshrl.u32 %v1762, 7
        %v1764 = vsub.s32 %v1761, %v1763
        %v1765 = vrot.slane %v1751, %v1764
        %v1766 = vcombine.low %v1656, %v1744
        %v1767 = vcombine.high %v1656, %v1744
        %v1769 = vunpack.c.l.s4 1983009808
        %v1770 = vunpack.c.0.s8 %v1769
        %v1771 = vlaneseq
        %v1772 = vshrl.u32 %v1771, 7
        %v1773 = vsub.s32 %v1770, %v1772
        %v1774 = vrot.slane %v1766, %v1773
        %v1776 = vunpack.c.l.s4 1983009808
        %v1777 = vunpack.c.0.s8 %v1776
        %v1778 = vlaneseq
        %v1779 = vshrl.u32 %v1778, 7
        %v1780 = vsub.s32 %v1777, %v1779
        %v1781 = vrot.slane %v1767, %v1780
        %v1782 = vcombine.low %v1758, %v1774
        %v1783 = vcombine.high %v1758, %v1774
        %v1785 = vunpack.c.l.s4 1934713408
        %v1786 = vunpack.c.0.s8 %v1785
        %v1787 = vlaneseq
        %v1788 = vshrl.u32 %v1787, 7
        %v1789 = vsub.s32 %v1786, %v1788
        %v1790 = vrot.slane %v1782, %v1789
        %v1792 = vunpack.c.l.s4 1934713408
        %v1793 = vunpack.c.0.s8 %v1792
        %v1794 = vlaneseq
        %v1795 = vshrl.u32 %v1794, 7
        %v1796 = vsub.s32 %v1793, %v1795
        %v1797 = vrot.slane %v1783, %v1796
        %v1798 = vcombine.low %v1765, %v1781
        %v1799 = vcombine.high %v1765, %v1781
        %v1801 = vunpack.c.l.s4 1934713408
        %v1802 = vunpack.c.0.s8 %v1801
        %v1803 = vlaneseq
        %v1804 = vshrl.u32 %v1803, 7
        %v1805 = vsub.s32 %v1802, %v1804
        %v1806 = vrot.slane %v1798, %v1805
        %v1808 = vunpack.c.l.s4 1934713408
        %v1809 = vunpack.c.0.s8 %v1808
        %v1810 = vlaneseq
        %v1811 = vshrl.u32 %v1810, 7
        %v1812 = vsub.s32 %v1809, %v1811
        %v1813 = vrot.slane %v1799, %v1812
        %v1814 = vcombine.high %v1790, 0.0
        %v1815 = vcombine.high %v1797, 0.0
        %v1816 = vcombine.high %v1806, 0.0
        %v1817 = vcombine.high %v1813, 0.0
        %v1818 = vcombine.low %v1615, %v1703
        %v1819 = vcombine.high %v1615, %v1703
        %v1821 = vunpack.c.l.s4 1983009808
        %v1822 = vunpack.c.0.s8 %v1821
        %v1823 = vlaneseq
        %v1824 = vshrl.u32 %v1823, 7
        %v1825 = vsub.s32 %v1822, %v1824
        %v1826 = vrot.slane %v1818, %v1825
        %v1828 = vunpack.c.l.s4 1983009808
        %v1829 = vunpack.c.0.s8 %v1828
        %v1830 = vlaneseq
        %v1831 = vshrl.u32 %v1830, 7
        %v1832 = vsub.s32 %v1829, %v1831
        %v1833 = vrot.slane %v1819, %v1832
        %v1834 = vcombine.low %v1659, %v1747
        %v1835 = vcombine.high %v1659, %v1747
        %v1837 = vunpack.c.l.s4 1983009808
        %v1838 = vunpack.c.0.s8 %v1837
        %v1839 = vlaneseq
        %v1840 = vshrl.u32 %v1839, 7
        %v1841 = vsub.s32 %v1838, %v1840
        %v1842 = vrot.slane %v1834, %v1841
        %v1844 = vunpack.c.l.s4 1983009808
        %v1845 = vunpack.c.0.s8 %v1844
        %v1846 = vlaneseq
        %v1847 = vshrl.u32 %v1846, 7
        %v1848 = vsub.s32 %v1845, %v1847
        %v1849 = vrot.slane %v1835, %v1848
        %v1850 = vcombine.low %v1826, %v1842
        %v1851 = vcombine.high %v1826, %v1842
        %v1853 = vunpack.c.l.s4 1934713408
        %v1854 = vunpack.c.0.s8 %v1853
        %v1855 = vlaneseq
        %v1856 = vshrl.u32 %v1855, 7
        %v1857 = vsub.s32 %v1854, %v1856
        %v1858 = vrot.slane %v1850, %v1857
        %v1860 = vunpack.c.l.s4 1934713408
        %v1861 = vunpack.c.0.s8 %v1860
        %v1862 = vlaneseq
        %v1863 = vshrl.u32 %v1862, 7
        %v1864 = vsub.s32 %v1861, %v1863
        %v1865 = vrot.slane %v1851, %v1864
        %v1866 = vcombine.low %v1833, %v1849
        %v1867 = vcombine.high %v1833, %v1849
        %v1869 = vunpack.c.l.s4 1934713408
        %v1870 = vunpack.c.0.s8 %v1869
        %v1871 = vlaneseq
        %v1872 = vshrl.u32 %v1871, 7
        %v1873 = vsub.s32 %v1870, %v1872
        %v1874 = vrot.slane %v1866, %v1873
        %v1876 = vunpack.c.l.s4 1934713408
        %v1877 = vunpack.c.0.s8 %v1876
        %v1878 = vlaneseq
        %v1879 = vshrl.u32 %v1878, 7
        %v1880 = vsub.s32 %v1877, %v1879
        %v1881 = vrot.slane %v1867, %v1880
        %v1882 = vcombine.high %v1858, 0.0
        %v1883 = vcombine.high %v1865, 0.0
        %v1884 = vcombine.high %v1874, 0.0
        %v1885 = vcombine.high %v1881, 0.0
        %v1886 = vcombine.low %v1790, %v1797
        %v1888 = vunpack.c.l.s4 1983009808
        %v1889 = vunpack.c.0.s8 %v1888
        %v1890 = vlaneseq
        %v1891 = vshrl.u32 %v1890, 7
        %v1892 = vsub.s32 %v1889, %v1891
        %v1893 = vrot.slane %v1886, %v1892
        %v1894 = vcombine.low %v1814, %v1815
        %v1896 = vunpack.c.l.s4 1983009808
        %v1897 = vunpack.c.0.s8 %v1896
        %v1898 = vlaneseq
        %v1899 = vshrl.u32 %v1898, 7
        %v1900 = vsub.s32 %v1897, %v1899
        %v1901 = vrot.slane %v1894, %v1900
        %v1902 = vcombine.low %v1806, %v1813
        %v1904 = vunpack.c.l.s4 1983009808
        %v1905 = vunpack.c.0.s8 %v1904
        %v1906 = vlaneseq
        %v1907 = vshrl.u32 %v1906, 7
        %v1908 = vsub.s32 %v1905, %v1907
        %v1909 = vrot.slane %v1902, %v1908
        %v1910 = vcombine.low %v1816, %v1817
        %v1912 = vunpack.c.l.s4 1983009808
        %v1913 = vunpack.c.0.s8 %v1912
        %v1914 = vlaneseq
        %v1915 = vshrl.u32 %v1914, 7
        %v1916 = vsub.s32 %v1913, %v1915
        %v1917 = vrot.slane %v1910, %v1916
        %v1918 = vcombine.low %v1893, %v1901
        %v1919 = vcombine.high %v1893, %v1901
        %v1921 = vunpack.c.l.s4 1934713408
        %v1922 = vunpack.c.0.s8 %v1921
        %v1923 = vlaneseq
        %v1924 = vshrl.u32 %v1923, 7
        %v1925 = vsub.s32 %v1922, %v1924
        %v1926 = vrot.slane %v1918, %v1925
        %v1928 = vunpack.c.l.s4 1934713408
        %v1929 = vunpack.c.0.s8 %v1928
        %v1930 = vlaneseq
        %v1931 = vshrl.u32 %v1930, 7
        %v1932 = vsub.s32 %v1929, %v1931
        %v1933 = vrot.slane %v1919, %v1932
        %v1934 = vcombine.low %v1909, %v1917
        %v1935 = vcombine.high %v1909, %v1917
        %v1937 = vunpack.c.l.s4 1934713408
        %v1938 = vunpack.c.0.s8 %v1937
        %v1939 = vlaneseq
        %v1940 = vshrl.u32 %v1939, 7
        %v1941 = vsub.s32 %v1938, %v1940
        %v1942 = vrot.slane %v1934, %v1941
        %v1944 = vunpack.c.l.s4 1934713408
        %v1945 = vunpack.c.0.s8 %v1944
        %v1946 = vlaneseq
        %v1947 = vshrl.u32 %v1946, 7
        %v1948 = vsub.s32 %v1945, %v1947
        %v1949 = vrot.slane %v1935, %v1948
        %v1950 = vcombine.low %v1926, %v1942
        %v1951 = vcombine.high %v1926, %v1942
        %v1952 = vcombine.low %v1933, %v1949
        %v1953 = vcombine.high %v1933, %v1949
        %v1954 = vcombine.low %v1858, %v1865
        %v1956 = vunpack.c.l.s4 1983009808
        %v1957 = vunpack.c.0.s8 %v1956
        %v1958 = vlaneseq
        %v1959 = vshrl.u32 %v1958, 7
        %v1960 = vsub.s32 %v1957, %v1959
        %v1961 = vrot.slane %v1954, %v1960
        %v1962 = vcombine.low %v1882, %v1883
        %v1964 = vunpack.c.l.s4 1983009808
        %v1965 = vunpack.c.0.s8 %v1964
        %v1966 = vlaneseq
        %v1967 = vshrl.u32 %v1966, 7
        %v1968 = vsub.s32 %v1965, %v1967
        %v1969 = vrot.slane %v1962, %v1968
        %v1970 = vcombine.low %v1874, %v1881
        %v1972 = vunpack.c.l.s4 1983009808
        %v1973 = vunpack.c.0.s8 %v1972
        %v1974 = vlaneseq
        %v1975 = vshrl.u32 %v1974, 7
        %v1976 = vsub.s32 %v1973, %v1975
        %v1977 = vrot.slane %v1970, %v1976
        %v1978 = vcombine.low %v1884, %v1885
        %v1980 = vunpack.c.l.s4 1983009808
        %v1981 = vunpack.c.0.s8 %v1980
        %v1982 = vlaneseq
        %v1983 = vshrl.u32 %v1982, 7
        %v1984 = vsub.s32 %v1981, %v1983
        %v1985 = vrot.slane %v1978, %v1984
        %v1986 = vcombine.low %v1961, %v1969
        %v1987 = vcombine.high %v1961, %v1969
        %v1989 = vunpack.c.l.s4 1934713408
        %v1990 = vunpack.c.0.s8 %v1989
        %v1991 = vlaneseq
        %v1992 = vshrl.u32 %v1991, 7
        %v1993 = vsub.s32 %v1990, %v1992
        %v1994 = vrot.slane %v1986, %v1993
        %v1996 = vunpack.c.l.s4 1934713408
        %v1997 = vunpack.c.0.s8 %v1996
        %v1998 = vlaneseq
        %v1999 = vshrl.u32 %v1998, 7
        %v2000 = vsub.s32 %v1997, %v1999
        %v2001 = vrot.slane %v1987, %v2000
        %v2002 = vcombine.low %v1977, %v1985
        %v2003 = vcombine.high %v1977, %v1985
        %v2005 = vunpack.c.l.s4 1934713408
        %v2006 = vunpack.c.0.s8 %v2005
        %v2007 = vlaneseq
        %v2008 = vshrl.u32 %v2007, 7
        %v2009 = vsub.s32 %v2006, %v2008
        %v2010 = vrot.slane %v2002, %v2009
        %v2012 = vunpack.c.l.s4 1934713408
        %v2013 = vunpack.c.0.s8 %v2012
        %v2014 = vlaneseq
        %v2015 = vshrl.u32 %v2014, 7
        %v2016 = vsub.s32 %v2013, %v2015
        %v2017 = vrot.slane %v2003, %v2016
        %v2018 = vcombine.low %v1994, %v2010
        %v2019 = vcombine.high %v1994, %v2010
        %v2020 = vcombine.low %v2001, %v2017
        %v2021 = vcombine.high %v2001, %v2017
        %2024 = vrot.lane.b32.xlu0 %v1951, 8
        %v2025 = vpop.permute.xlu0 %2024
        %2026 = vrot.lane.b32.xlu0 %v2019, 8
        %v2027 = vpop.permute.xlu0 %2026
        %2032 = vrot.lane.b32.xlu0 %v1952, 16
        %v2033 = vpop.permute.xlu0 %2032
        %2034 = vrot.lane.b32.xlu0 %v2020, 16
        %v2035 = vpop.permute.xlu0 %2034
        %2040 = vrot.lane.b32.xlu0 %v1953, 24
        %v2041 = vpop.permute.xlu0 %2040
        %2042 = vrot.lane.b32.xlu0 %v2021, 24
        %v2043 = vpop.permute.xlu0 %2042
        %v2046 = vsel %vm1182, %v1950, %v2025
        %v2047 = vsel %vm1182, %v2018, %v2027
        %v2048 = vsel %vm1371, %v2046, %v2033
        %v2049 = vsel %vm1371, %v2047, %v2035
        %vm2050 = vcmask 195584
        %v2051 = vsel %vm2050, %v2048, %v2041
        %v2052 = vsel %vm2050, %v2049, %v2043
        %v2053 = vpack.c.bf16 %v2052, %v2051
        %v2054 = vld [vmem:[#allocation7] sm:$0xf]
        %v2055 = vld [vmem:[#allocation7 + $0x4] sm:$0xf]
        %v2056 = vld [vmem:[#allocation7 + $0x8] sm:$0xf]
        %v2057 = vld [vmem:[#allocation7 + $0xc] sm:$0xf]
        %v2058 = vld [vmem:[%s5] sm:$0x1]
        %v2060 = vlaneseq
        %v2061 = vshrl.u32 %v2060, 7
        %v2062 = vsub.s32 0, %v2061
        %v2063 = vrot.slane %v2058, %v2062
        %v2069 = vunpack.c.l.b16 %v2054
        %v2070 = vunpack.c.l.b16 %v2055
        %v2071 = vunpack.c.l.b16 %v2056
        %v2072 = vunpack.c.l.b16 %v2057
        %v2073 = vpack.c.b16 %v2070, %v2069
        %v2074 = vpack.c.b16 %v2072, %v2071
        %v2078 = vsel %vm323, %v2053, 0
        %2080 = vmatprep.subr.bf16.mxu0 0
        %2081 = vmatpush1.bf16.msra.mxu0 %v2073
        %2082 = vmatprep.subr.bf16.mxu0 0
        %2083 = vmatpush1.bf16.msra.mxu0 %v2074
        %2084 = vmatprep.subr.bf16.mxu0 0
        %2085 = vmatpush1.bf16.msra.mxu0 0
        %2086 = vmatprep.subr.bf16.mxu0 0
        %2087 = vmatpush1.bf16.msra.mxu0 0
        %2088 = vmatprep.subr.bf16.mxu0 0
        %2089 = vmatpush1.bf16.msra.mxu0 0
        %2090 = vmatprep.subr.bf16.mxu0 0
        %2091 = vmatpush1.bf16.msra.mxu0 0
        %2092 = vmatprep.subr.bf16.mxu0 0
        %2093 = vmatpush1.bf16.msra.mxu0 0
        %2094 = vmatprep.subr.bf16.mxu0 0
        %2095 = vmatpush1.bf16.msra.mxu0 0
        %2096 = vmatprep.subr.bf16.mxu0 0
        %2097 = vmatpush1.bf16.msra.mxu0 0
        %2098 = vmatprep.subr.bf16.mxu0 0
        %2099 = vmatpush1.bf16.msra.mxu0 0
        %2100 = vmatprep.subr.bf16.mxu0 0
        %2101 = vmatpush1.bf16.msra.mxu0 0
        %2102 = vmatprep.subr.bf16.mxu0 0
        %2103 = vmatpush1.bf16.msra.mxu0 0
        %2104 = vmatprep.subr.bf16.mxu0 0
        %2105 = vmatpush1.bf16.msra.mxu0 0
        %2106 = vmatprep.subr.bf16.mxu0 0
        %2107 = vmatpush1.bf16.msra.mxu0 0
        %2108 = vmatprep.subr.bf16.mxu0 0
        %2109 = vmatpush1.bf16.msra.mxu0 0
        %2110 = vmatprep.subr.bf16.mxu0 0
        %2111 = vmatpush1.bf16.msra.mxu0 0
        %2112 = vmatprep.mubr.bf16.mxu0 0
        %2113 = vmatmul.mubr.bf16.gmra.mrb[0].mxu0 %v2078
        %v2114 = vpop.f32.mrb[0].mxu0
        %v2115 = vadd.f32 %v2063, %v2114
        %v2116 = vpop.f32.mrb[0].mxu0
        %v2117 = vpop.f32.mrb[0].mxu0
        %v2118 = vadd.f32 %v2063, %v2117
        %v2119 = vpop.f32.mrb[0].mxu0
        %2120 = vdwg.mxu0
        %v2121 = vpack.c.bf16 %v2118, %v2115
        %v2123 = vunpack.c.l.b16 %v2121
        %v2124 = vunpack.c.h.b16 %v2121
        %v2125 = vpack.c.b16 %v2123, %v2123
        %v2126 = vpack.c.b16 %v2124, %v2124
        %vm2129 = vcmask 257024
        %2130 = vst.msk [vmem:[%s298] sm:$0xf] %vm2129, %v2125
        %2131 = vst.msk [vmem:[%s298 + $0x4] sm:$0xf] %vm2129, %v2126
        %s2132 = sand.u32 %s163, 1
        %s2133 = scalar_lea.sflag [#allocation4], %s2132
        %s2134 = sand.u32 %s163, 1
        %s2135 = smul.addr %s2134, 8
        %s2136 = scalar_lea.vmem [#allocation8], %s2135
        // Predicated region
        $region57: #{tpu_custom_call.1} parent=43 // pred_check
          %p2137 = pneg %p173
        $region58: #{tpu_custom_call.1} parent=43 // pred_check_branch
          %2139 = sbr.rel (%p2137) target = $region60
        $region59: #{tpu_custom_call.1} parent=43 // pred_region
          %s2141 = ssub.s32 128, 128
          %2142 = vsyncadd %s2133, %s2141
          %s2143 = smul.addr %s24, 2
          %s2144 = smul.addr %s2143, 64
          %s2145 = scalar_lea.hbm %s6, %s2144
          %s2146 = sshll.u32 %s2136, 4
          %s2147 = int_to_ptr.vmem [resolvable:$true] %s2146
          %2152 = dma.vmem_to_hbm [thread:$0]  %s2147, 128, %s2145, %s2133, 64, 64, 4
        $region60: #{tpu_custom_call.1} parent=43 // pred_fallthru
          _
      $region44: #{tpu_custom_call.1} parent=5 // pred_fallthru
        _
      %p2153 = scmp.le.s32.totalorder 2, %s19
      // Predicated region
      $region61: #{tpu_custom_call.1} parent=5 // pred_check
        %p2154 = pneg %p2153
      $region62: #{tpu_custom_call.1} parent=5 // pred_check_branch
        %2156 = sbr.rel (%p2154) target = $region64
      $region63: #{tpu_custom_call.1} parent=5 // pred_region
        %s2157 = ssub.s32 %s19, 2
        // Predicated region
        $region65: #{tpu_custom_call.1} parent=63 // pred_check
          %p2158 = pneg %p179
        $region66: #{tpu_custom_call.1} parent=63 // pred_check_branch
          %2160 = sbr.rel (%p2158) target = $region68
        $region67: #{tpu_custom_call.1} parent=63 // pred_region
          %s2161 = sand.u32 %s164, 1
          %s2162 = scalar_lea.sflag [#allocation4], %s2161
          %s2163 = sand.u32 %s164, 1
          %s2164 = smul.addr %s2163, 8
          %s2165 = scalar_lea.vmem [#allocation8], %s2164
          %2166 = dma.done %s2162, 128
        $region68: #{tpu_custom_call.1} parent=63 // pred_fallthru
          _
      $region64: #{tpu_custom_call.1} parent=5 // pred_fallthru
        _
    $region6: #{tpu_custom_call.1} parent=1 // loop_footer
      %s23 = sadd.s32 1, %s19
    $region7: #{tpu_custom_call.1} parent=1 // loop_footer_branch
      %18 = sbr.rel target = $region3
    $region8: #{tpu_custom_call.1} parent=1 // loop_exit
      _
    %2167 = vsyncpa [#allocation3], 1
    %s2168 = scalar_lea.sflag [#allocation3], 1
    %2169 = vsyncpa %s2168, 1
    %2170 = vsyncpa [#allocation6], 1
    %2171 = vsyncpa [#allocation4], 1
    %s2172 = scalar_lea.sflag [#allocation4], 1
    %2173 = vsyncpa %s2172, 1

</llo_original>
